<compile_context>
chip_gen: v7x
topology: tpu7x:2x2x1
jax: 0.10.0
libtpu: 0.0.40
codegen_flags: <defaults>
</compile_context>

<pallas_src>
import jax
import jax.numpy as jnp
from jax.experimental import pallas as pl
from jax.experimental.pallas import tpu as pltpu
import numpy as np


def gru_fc_logsoftmax_kernel(x_ref, wih_ref, whh_ref, bi_ref, bhn_ref,
                             wfc_ref, bfc_ref, out_ref, h_ref):
    # x_ref:   (bb, bt, D)  time-chunk of the batch-first input
    # wih_ref: (3, D, H)    input->gate weights, gate order [r | z | n], pre-transposed
    # whh_ref: (3, H, H)    hidden->gate weights, pre-transposed
    # bi_ref:  (3, 1, H)    [b_ir+b_hr, b_iz+b_hz, b_in]  (folded r/z biases)
    # bhn_ref: (1, H)       b_hn (must stay inside r*(...))
    # wfc_ref: (H, Cp), bfc_ref: (1, Cp)   Cp = C padded to a multiple of 128
    # out_ref: (bb, Cp)     log_softmax of last-timestep logits (lane-dense store)
    # h_ref:   (bb, H)      persistent hidden-state scratch (carried across time grid)
    t_idx = pl.program_id(1)
    bb, bt, D = x_ref.shape
    H = whh_ref.shape[1]

    @pl.when(t_idx == 0)
    def _():
        h_ref[...] = jnp.zeros_like(h_ref)

    # ---- hoisted input projection: one MXU matmul per gate for the whole chunk ----
    x_flat = x_ref[...].reshape(bb * bt, D)
    gi_r = (jnp.dot(x_flat, wih_ref[0], preferred_element_type=jnp.float32)
            + bi_ref[0]).reshape(bb, bt, H)
    gi_z = (jnp.dot(x_flat, wih_ref[1], preferred_element_type=jnp.float32)
            + bi_ref[1]).reshape(bb, bt, H)
    gi_n = (jnp.dot(x_flat, wih_ref[2], preferred_element_type=jnp.float32)
            + bi_ref[2]).reshape(bb, bt, H)

    # whole-vreg gate selection via leading gate axis (no lane slicing in the loop)
    w_hr = whh_ref[0]
    w_hz = whh_ref[1]
    w_hn = whh_ref[2]
    bhn = jnp.broadcast_to(bhn_ref[...], (bb, H))   # broadcast hoisted out of the loop

    # ---- serial recurrence over the chunk: static Python loop -> fully unrolled ----
    h = h_ref[...]
    for tt in range(bt):
        gh_r = jnp.dot(h, w_hr, preferred_element_type=jnp.float32)
        gh_z = jnp.dot(h, w_hz, preferred_element_type=jnp.float32)
        gh_n = jnp.dot(h, w_hn, preferred_element_type=jnp.float32)
        r = jax.nn.sigmoid(gi_r[:, tt, :] + gh_r)
        z = jax.nn.sigmoid(gi_z[:, tt, :] + gh_z)
        n = jnp.tanh(gi_n[:, tt, :] + r * (gh_n + bhn))
        h = (1.0 - z) * n + z * h
    h_ref[...] = h

    # ---- finalize on the last time chunk: FC + stable log_softmax ----
    @pl.when(t_idx == pl.num_programs(1) - 1)
    def _():
        logits = (jnp.dot(h, wfc_ref[...], preferred_element_type=jnp.float32)
                  + bfc_ref[...])                       # (bb, Cp); pad cols = -1e30
        m = jnp.max(logits, axis=-1, keepdims=True)
        lse = jnp.log(jnp.sum(jnp.exp(logits - m), axis=-1, keepdims=True)) + m
        out_ref[...] = logits - lse


def net_forward(x, params, *, block_b=None, block_t=None):
    """x: (B, T, D) float32 (batch_first).  Returns (B, 1, C) log-probs like PyTorch Net."""
    w_ih, w_hh, b_ih, b_hh, w_fc, b_fc = params
    B, T, D = x.shape
    H = w_hh.shape[1]
    C = w_fc.shape[0]
    Cp = ((C + 127) // 128) * 128

    if block_b is None:
        block_b = 8 if (B % 8 == 0) else B
    if block_t is None:
        block_t = 8 if (T % 8 == 0) else T
    assert B % block_b == 0 and T % block_t == 0
    assert (block_b % 8 == 0) or (block_b == B)
    assert (block_t % 8 == 0) or (block_t == T)

    # Per-gate weights, pre-transposed for (M,K)x(K,N) matmuls, stacked on a leading gate axis.
    wih_s = jnp.stack([w_ih[0:H].T, w_ih[H:2 * H].T, w_ih[2 * H:3 * H].T])        # (3, D, H)
    whh_s = jnp.stack([w_hh[0:H].T, w_hh[H:2 * H].T, w_hh[2 * H:3 * H].T])        # (3, H, H)
    bi_s = jnp.stack([(b_ih[0:H] + b_hh[0:H]).reshape(1, H),
                      (b_ih[H:2 * H] + b_hh[H:2 * H]).reshape(1, H),
                      b_ih[2 * H:3 * H].reshape(1, H)])                            # (3, 1, H)
    bhn = b_hh[2 * H:3 * H].reshape(1, H)                                          # (1, H)

    # Lane-dense FC output: pad classes to 128; padded bias = -1e30 keeps log_softmax exact.
    wfc_p = jnp.zeros((H, Cp), jnp.float32).at[:, :C].set(w_fc.T)
    bfc_p = jnp.full((1, Cp), -1e30, jnp.float32).at[0, :C].set(b_fc)

    grid = (B // block_b, T // block_t)
    out_p = pl.pallas_call(
        gru_fc_logsoftmax_kernel,
        out_shape=jax.ShapeDtypeStruct((B, Cp), jnp.float32),
        grid_spec=pltpu.PrefetchScalarGridSpec(
            num_scalar_prefetch=0,
            grid=grid,
            in_specs=[
                pl.BlockSpec((block_b, block_t, D), lambda b, t: (b, t, 0)),
                pl.BlockSpec((3, D, H), lambda b, t: (0, 0, 0)),
                pl.BlockSpec((3, H, H), lambda b, t: (0, 0, 0)),
                pl.BlockSpec((3, 1, H), lambda b, t: (0, 0, 0)),
                pl.BlockSpec((1, H), lambda b, t: (0, 0)),
                pl.BlockSpec((H, Cp), lambda b, t: (0, 0)),
                pl.BlockSpec((1, Cp), lambda b, t: (0, 0)),
            ],
            out_specs=pl.BlockSpec((block_b, Cp), lambda b, t: (b, 0)),
            scratch_shapes=[pltpu.VMEM((block_b, H), jnp.float32)],
        ),
        compiler_params=pltpu.CompilerParams(
            dimension_semantics=("parallel", "arbitrary")),
    )(x, wih_s, whh_s, bi_s, bhn, wfc_p, bfc_p)

    return out_p[:, :C].reshape(B, 1, C)


def net_forward_ref(x, params):
    """Pure-JAX reference (same math as nn.GRU + Linear + log_softmax)."""
    w_ih, w_hh, b_ih, b_hh, w_fc, b_fc = params
    B, T, D = x.shape
    H = w_hh.shape[1]
    h = jnp.zeros((B, H), jnp.float32)
    for t in range(T):
        x_t = x[:, t, :]
        gi = x_t @ w_ih.T + b_ih
        gh = h @ w_hh.T + b_hh
        r = jax.nn.sigmoid(gi[:, 0:H] + gh[:, 0:H])
        z = jax.nn.sigmoid(gi[:, H:2 * H] + gh[:, H:2 * H])
        n = jnp.tanh(gi[:, 2 * H:3 * H] + r * gh[:, 2 * H:3 * H])
        h = (1.0 - z) * n + z * h
    logits = h @ w_fc.T + b_fc
    return jax.nn.log_softmax(logits, axis=-1)[:, None, :]


def init_params(key, input_dim, hidden_size, n_classes):
    """Deterministic uniform init (PyTorch-style +-1/sqrt(H) range)."""
    ks = jax.random.split(key, 6)
    s = 1.0 / np.sqrt(hidden_size)
    w_ih = jax.random.uniform(ks[0], (3 * hidden_size, input_dim), jnp.float32, -s, s)
    w_hh = jax.random.uniform(ks[1], (3 * hidden_size, hidden_size), jnp.float32, -s, s)
    b_ih = jax.random.uniform(ks[2], (3 * hidden_size,), jnp.float32, -s, s)
    b_hh = jax.random.uniform(ks[3], (3 * hidden_size,), jnp.float32, -s, s)
    w_fc = jax.random.uniform(ks[4], (n_classes, hidden_size), jnp.float32, -s, s)
    b_fc = jax.random.uniform(ks[5], (n_classes,), jnp.float32, -s, s)
    return (w_ih, w_hh, b_ih, b_hh, w_fc, b_fc)


if __name__ == "__main__":
    # Small shapes that still exercise the (batch-parallel x time-arbitrary) grid:
    # grid = (16//8, 16//8) = (2, 2) with the hidden state carried across time chunks.
    B, T, D, H, C = 16, 16, 16, 32, 8

    key = jax.random.PRNGKey(0)
    k_x, k_p = jax.random.split(key)
    x = jax.random.normal(k_x, (B, T, D), jnp.float32)
    params = init_params(k_p, D, H, C)

    out = net_forward(x, params)
    out = jax.block_until_ready(out)

    ref = net_forward_ref(x, params)
    np.testing.assert_allclose(np.asarray(out), np.asarray(ref), rtol=5e-5, atol=5e-5)
    assert out.shape == (B, 1, C)

    print("KERNEL_OK")
</pallas_src>

<mosaic_0001>
module attributes {stable_mosaic.version = 11 : i64} {
  func.func @gru_fc_logsoftmax_kernel(%arg0: i32, %arg1: i32, %arg2: memref<8x8x16xf32, #tpu.memory_space<vmem>>, %arg3: memref<3x16x32xf32, #tpu.memory_space<vmem>>, %arg4: memref<3x32x32xf32, #tpu.memory_space<vmem>>, %arg5: memref<3x1x32xf32, #tpu.memory_space<vmem>>, %arg6: memref<1x32xf32, #tpu.memory_space<vmem>>, %arg7: memref<32x128xf32, #tpu.memory_space<vmem>>, %arg8: memref<1x128xf32, #tpu.memory_space<vmem>>, %arg9: memref<8x128xf32, #tpu.memory_space<vmem>>, %arg10: memref<8x32xf32, #tpu.memory_space<vmem>>) attributes {dimension_semantics = [#tpu.dimension_semantics<parallel>, #tpu.dimension_semantics<arbitrary>], iteration_bounds = array<i64: 2, 2>, scalar_prefetch = 0 : i64, scratch_operands = 1 : i64, tpu.core_type = #tpu.core_type<tc>, window_params = [{transform_indices = @transform_0, window_bounds = array<i64: 8, 8, 16>}, {pipeline_mode = #tpu.pipeline_mode<synchronous>, transform_indices = @transform_1, window_bounds = array<i64: 3, 16, 32>}, {pipeline_mode = #tpu.pipeline_mode<synchronous>, transform_indices = @transform_2, window_bounds = array<i64: 3, 32, 32>}, {pipeline_mode = #tpu.pipeline_mode<synchronous>, transform_indices = @transform_3, window_bounds = array<i64: 3, 1, 32>}, {pipeline_mode = #tpu.pipeline_mode<synchronous>, transform_indices = @transform_4, window_bounds = array<i64: 1, 32>}, {pipeline_mode = #tpu.pipeline_mode<synchronous>, transform_indices = @transform_5, window_bounds = array<i64: 32, 128>}, {pipeline_mode = #tpu.pipeline_mode<synchronous>, transform_indices = @transform_6, window_bounds = array<i64: 1, 128>}, {transform_indices = @transform_7, window_bounds = array<i64: 8, 128>}]} {
    %c0_i32 = arith.constant 0 : i32
    %0 = arith.cmpi eq, %arg1, %c0_i32 : i32
    %1 = arith.extui %0 : i1 to i32
    %c0_i32_0 = arith.constant 0 : i32
    %2 = arith.cmpi ne, %1, %c0_i32_0 : i32
    scf.if %2 {
      %cst_85 = arith.constant 0.000000e+00 : f32
      %283 = vector.broadcast %cst_85 : f32 to vector<8x32xf32>
      %c0_86 = arith.constant 0 : index
      %c0_87 = arith.constant 0 : index
      %284 = vector.load %arg10[%c0_86, %c0_87] : memref<8x32xf32, #tpu.memory_space<vmem>>, vector<8x32xf32>
      tpu.vector_store %arg10[%c0_86, %c0_87], %283 {strides = array<i32>} : memref<8x32xf32, #tpu.memory_space<vmem>>, vector<8x32xf32>,
    } else {
    }
    %c0 = arith.constant 0 : index
    %c0_1 = arith.constant 0 : index
    %c0_2 = arith.constant 0 : index
    %3 = vector.load %arg2[%c0, %c0_1, %c0_2] : memref<8x8x16xf32, #tpu.memory_space<vmem>>, vector<8x8x16xf32>
    %4 = vector.shape_cast %3 : vector<8x8x16xf32> to vector<64x16xf32>
    %c0_3 = arith.constant 0 : index
    %c0_4 = arith.constant 0 : index
    %c0_5 = arith.constant 0 : index
    %5 = vector.load %arg3[%c0_3, %c0_4, %c0_5] : memref<3x16x32xf32, #tpu.memory_space<vmem>>, vector<1x16x32xf32>
    %6 = vector.shape_cast %5 : vector<1x16x32xf32> to vector<16x32xf32>
    %cst = arith.constant dense<0.000000e+00> : vector<64x32xf32>
    %7 = tpu.matmul %4, %6, %cst {dimension_numbers = #tpu.dot_dimension_numbers<[1], [0], [0], [1], [0, 0, 1, 1], [], []>} : vector<64x16xf32>, vector<16x32xf32>, vector<64x32xf32> -> vector<64x32xf32>
    %c0_6 = arith.constant 0 : index
    %c0_7 = arith.constant 0 : index
    %c0_8 = arith.constant 0 : index
    %8 = vector.load %arg5[%c0_6, %c0_7, %c0_8] : memref<3x1x32xf32, #tpu.memory_space<vmem>>, vector<1x1x32xf32>
    %9 = vector.shape_cast %8 : vector<1x1x32xf32> to vector<1x32xf32>
    %10 = vector.broadcast %9 : vector<1x32xf32> to vector<64x32xf32>
    %11 = arith.addf %7, %10 : vector<64x32xf32>
    %12 = vector.shape_cast %11 : vector<64x32xf32> to vector<8x8x32xf32>
    %c1 = arith.constant 1 : index
    %c0_9 = arith.constant 0 : index
    %c0_10 = arith.constant 0 : index
    %13 = vector.load %arg3[%c1, %c0_9, %c0_10] : memref<3x16x32xf32, #tpu.memory_space<vmem>>, vector<1x16x32xf32>
    %14 = vector.shape_cast %13 : vector<1x16x32xf32> to vector<16x32xf32>
    %cst_11 = arith.constant dense<0.000000e+00> : vector<64x32xf32>
    %15 = tpu.matmul %4, %14, %cst_11 {dimension_numbers = #tpu.dot_dimension_numbers<[1], [0], [0], [1], [0, 0, 1, 1], [], []>} : vector<64x16xf32>, vector<16x32xf32>, vector<64x32xf32> -> vector<64x32xf32>
    %c1_12 = arith.constant 1 : index
    %c0_13 = arith.constant 0 : index
    %c0_14 = arith.constant 0 : index
    %16 = vector.load %arg5[%c1_12, %c0_13, %c0_14] : memref<3x1x32xf32, #tpu.memory_space<vmem>>, vector<1x1x32xf32>
    %17 = vector.shape_cast %16 : vector<1x1x32xf32> to vector<1x32xf32>
    %18 = vector.broadcast %17 : vector<1x32xf32> to vector<64x32xf32>
    %19 = arith.addf %15, %18 : vector<64x32xf32>
    %20 = vector.shape_cast %19 : vector<64x32xf32> to vector<8x8x32xf32>
    %c2 = arith.constant 2 : index
    %c0_15 = arith.constant 0 : index
    %c0_16 = arith.constant 0 : index
    %21 = vector.load %arg3[%c2, %c0_15, %c0_16] : memref<3x16x32xf32, #tpu.memory_space<vmem>>, vector<1x16x32xf32>
    %22 = vector.shape_cast %21 : vector<1x16x32xf32> to vector<16x32xf32>
    %cst_17 = arith.constant dense<0.000000e+00> : vector<64x32xf32>
    %23 = tpu.matmul %4, %22, %cst_17 {dimension_numbers = #tpu.dot_dimension_numbers<[1], [0], [0], [1], [0, 0, 1, 1], [], []>} : vector<64x16xf32>, vector<16x32xf32>, vector<64x32xf32> -> vector<64x32xf32>
    %c2_18 = arith.constant 2 : index
    %c0_19 = arith.constant 0 : index
    %c0_20 = arith.constant 0 : index
    %24 = vector.load %arg5[%c2_18, %c0_19, %c0_20] : memref<3x1x32xf32, #tpu.memory_space<vmem>>, vector<1x1x32xf32>
    %25 = vector.shape_cast %24 : vector<1x1x32xf32> to vector<1x32xf32>
    %26 = vector.broadcast %25 : vector<1x32xf32> to vector<64x32xf32>
    %27 = arith.addf %23, %26 : vector<64x32xf32>
    %28 = vector.shape_cast %27 : vector<64x32xf32> to vector<8x8x32xf32>
    %c0_21 = arith.constant 0 : index
    %c0_22 = arith.constant 0 : index
    %c0_23 = arith.constant 0 : index
    %29 = vector.load %arg4[%c0_21, %c0_22, %c0_23] : memref<3x32x32xf32, #tpu.memory_space<vmem>>, vector<1x32x32xf32>
    %30 = vector.shape_cast %29 : vector<1x32x32xf32> to vector<32x32xf32>
    %c1_24 = arith.constant 1 : index
    %c0_25 = arith.constant 0 : index
    %c0_26 = arith.constant 0 : index
    %31 = vector.load %arg4[%c1_24, %c0_25, %c0_26] : memref<3x32x32xf32, #tpu.memory_space<vmem>>, vector<1x32x32xf32>
    %32 = vector.shape_cast %31 : vector<1x32x32xf32> to vector<32x32xf32>
    %c2_27 = arith.constant 2 : index
    %c0_28 = arith.constant 0 : index
    %c0_29 = arith.constant 0 : index
    %33 = vector.load %arg4[%c2_27, %c0_28, %c0_29] : memref<3x32x32xf32, #tpu.memory_space<vmem>>, vector<1x32x32xf32>
    %34 = vector.shape_cast %33 : vector<1x32x32xf32> to vector<32x32xf32>
    %c0_30 = arith.constant 0 : index
    %c0_31 = arith.constant 0 : index
    %35 = vector.load %arg6[%c0_30, %c0_31] : memref<1x32xf32, #tpu.memory_space<vmem>>, vector<1x32xf32>
    %36 = vector.shape_cast %35 : vector<1x32xf32> to vector<1x32xf32>
    %37 = vector.broadcast %36 : vector<1x32xf32> to vector<8x32xf32>
    %c0_32 = arith.constant 0 : index
    %c0_33 = arith.constant 0 : index
    %38 = vector.load %arg10[%c0_32, %c0_33] : memref<8x32xf32, #tpu.memory_space<vmem>>, vector<8x32xf32>
    %cst_34 = arith.constant dense<0.000000e+00> : vector<8x32xf32>
    %39 = tpu.matmul %38, %30, %cst_34 {dimension_numbers = #tpu.dot_dimension_numbers<[1], [0], [0], [1], [0, 0, 1, 1], [], []>} : vector<8x32xf32>, vector<32x32xf32>, vector<8x32xf32> -> vector<8x32xf32>
    %cst_35 = arith.constant dense<0.000000e+00> : vector<8x32xf32>
    %40 = tpu.matmul %38, %32, %cst_35 {dimension_numbers = #tpu.dot_dimension_numbers<[1], [0], [0], [1], [0, 0, 1, 1], [], []>} : vector<8x32xf32>, vector<32x32xf32>, vector<8x32xf32> -> vector<8x32xf32>
    %cst_36 = arith.constant dense<0.000000e+00> : vector<8x32xf32>
    %41 = tpu.matmul %38, %34, %cst_36 {dimension_numbers = #tpu.dot_dimension_numbers<[1], [0], [0], [1], [0, 0, 1, 1], [], []>} : vector<8x32xf32>, vector<32x32xf32>, vector<8x32xf32> -> vector<8x32xf32>
    %42 = vector.extract_strided_slice %12 {offsets = [0, 0, 0], sizes = [8, 1, 32], strides = [1, 1, 1]} : vector<8x8x32xf32> to vector<8x1x32xf32>
    %43 = vector.shape_cast %42 : vector<8x1x32xf32> to vector<8x32xf32>
    %44 = arith.addf %43, %39 : vector<8x32xf32>
    %45 = arith.negf %44 : vector<8x32xf32>
    %46 = math.exp %45 : vector<8x32xf32>
    %cst_37 = arith.constant 1.000000e+00 : f32
    %47 = vector.broadcast %cst_37 : f32 to vector<8x32xf32>
    %48 = arith.addf %47, %46 : vector<8x32xf32>
    %49 = arith.divf %47, %48 : vector<8x32xf32>
    %50 = vector.extract_strided_slice %20 {offsets = [0, 0, 0], sizes = [8, 1, 32], strides = [1, 1, 1]} : vector<8x8x32xf32> to vector<8x1x32xf32>
    %51 = vector.shape_cast %50 : vector<8x1x32xf32> to vector<8x32xf32>
    %52 = arith.addf %51, %40 : vector<8x32xf32>
    %53 = arith.negf %52 : vector<8x32xf32>
    %54 = math.exp %53 : vector<8x32xf32>
    %cst_38 = arith.constant 1.000000e+00 : f32
    %55 = vector.broadcast %cst_38 : f32 to vector<8x32xf32>
    %56 = arith.addf %55, %54 : vector<8x32xf32>
    %57 = arith.divf %55, %56 : vector<8x32xf32>
    %58 = vector.extract_strided_slice %28 {offsets = [0, 0, 0], sizes = [8, 1, 32], strides = [1, 1, 1]} : vector<8x8x32xf32> to vector<8x1x32xf32>
    %59 = vector.shape_cast %58 : vector<8x1x32xf32> to vector<8x32xf32>
    %60 = arith.addf %41, %37 : vector<8x32xf32>
    %61 = arith.mulf %49, %60 : vector<8x32xf32>
    %62 = arith.addf %59, %61 : vector<8x32xf32>
    %63 = math.tanh %62 : vector<8x32xf32>
    %cst_39 = arith.constant 1.000000e+00 : f32
    %64 = vector.broadcast %cst_39 : f32 to vector<8x32xf32>
    %65 = arith.subf %64, %57 : vector<8x32xf32>
    %66 = arith.mulf %65, %63 : vector<8x32xf32>
    %67 = arith.mulf %57, %38 : vector<8x32xf32>
    %68 = arith.addf %66, %67 : vector<8x32xf32>
    %cst_40 = arith.constant dense<0.000000e+00> : vector<8x32xf32>
    %69 = tpu.matmul %68, %30, %cst_40 {dimension_numbers = #tpu.dot_dimension_numbers<[1], [0], [0], [1], [0, 0, 1, 1], [], []>} : vector<8x32xf32>, vector<32x32xf32>, vector<8x32xf32> -> vector<8x32xf32>
    %cst_41 = arith.constant dense<0.000000e+00> : vector<8x32xf32>
    %70 = tpu.matmul %68, %32, %cst_41 {dimension_numbers = #tpu.dot_dimension_numbers<[1], [0], [0], [1], [0, 0, 1, 1], [], []>} : vector<8x32xf32>, vector<32x32xf32>, vector<8x32xf32> -> vector<8x32xf32>
    %cst_42 = arith.constant dense<0.000000e+00> : vector<8x32xf32>
    %71 = tpu.matmul %68, %34, %cst_42 {dimension_numbers = #tpu.dot_dimension_numbers<[1], [0], [0], [1], [0, 0, 1, 1], [], []>} : vector<8x32xf32>, vector<32x32xf32>, vector<8x32xf32> -> vector<8x32xf32>
    %72 = vector.extract_strided_slice %12 {offsets = [0, 1, 0], sizes = [8, 1, 32], strides = [1, 1, 1]} : vector<8x8x32xf32> to vector<8x1x32xf32>
    %73 = vector.shape_cast %72 : vector<8x1x32xf32> to vector<8x32xf32>
    %74 = arith.addf %73, %69 : vector<8x32xf32>
    %75 = arith.negf %74 : vector<8x32xf32>
    %76 = math.exp %75 : vector<8x32xf32>
    %cst_43 = arith.constant 1.000000e+00 : f32
    %77 = vector.broadcast %cst_43 : f32 to vector<8x32xf32>
    %78 = arith.addf %77, %76 : vector<8x32xf32>
    %79 = arith.divf %77, %78 : vector<8x32xf32>
    %80 = vector.extract_strided_slice %20 {offsets = [0, 1, 0], sizes = [8, 1, 32], strides = [1, 1, 1]} : vector<8x8x32xf32> to vector<8x1x32xf32>
    %81 = vector.shape_cast %80 : vector<8x1x32xf32> to vector<8x32xf32>
    %82 = arith.addf %81, %70 : vector<8x32xf32>
    %83 = arith.negf %82 : vector<8x32xf32>
    %84 = math.exp %83 : vector<8x32xf32>
    %cst_44 = arith.constant 1.000000e+00 : f32
    %85 = vector.broadcast %cst_44 : f32 to vector<8x32xf32>
    %86 = arith.addf %85, %84 : vector<8x32xf32>
    %87 = arith.divf %85, %86 : vector<8x32xf32>
    %88 = vector.extract_strided_slice %28 {offsets = [0, 1, 0], sizes = [8, 1, 32], strides = [1, 1, 1]} : vector<8x8x32xf32> to vector<8x1x32xf32>
    %89 = vector.shape_cast %88 : vector<8x1x32xf32> to vector<8x32xf32>
    %90 = arith.addf %71, %37 : vector<8x32xf32>
    %91 = arith.mulf %79, %90 : vector<8x32xf32>
    %92 = arith.addf %89, %91 : vector<8x32xf32>
    %93 = math.tanh %92 : vector<8x32xf32>
    %cst_45 = arith.constant 1.000000e+00 : f32
    %94 = vector.broadcast %cst_45 : f32 to vector<8x32xf32>
    %95 = arith.subf %94, %87 : vector<8x32xf32>
    %96 = arith.mulf %95, %93 : vector<8x32xf32>
    %97 = arith.mulf %87, %68 : vector<8x32xf32>
    %98 = arith.addf %96, %97 : vector<8x32xf32>
    %cst_46 = arith.constant dense<0.000000e+00> : vector<8x32xf32>
    %99 = tpu.matmul %98, %30, %cst_46 {dimension_numbers = #tpu.dot_dimension_numbers<[1], [0], [0], [1], [0, 0, 1, 1], [], []>} : vector<8x32xf32>, vector<32x32xf32>, vector<8x32xf32> -> vector<8x32xf32>
    %cst_47 = arith.constant dense<0.000000e+00> : vector<8x32xf32>
    %100 = tpu.matmul %98, %32, %cst_47 {dimension_numbers = #tpu.dot_dimension_numbers<[1], [0], [0], [1], [0, 0, 1, 1], [], []>} : vector<8x32xf32>, vector<32x32xf32>, vector<8x32xf32> -> vector<8x32xf32>
    %cst_48 = arith.constant dense<0.000000e+00> : vector<8x32xf32>
    %101 = tpu.matmul %98, %34, %cst_48 {dimension_numbers = #tpu.dot_dimension_numbers<[1], [0], [0], [1], [0, 0, 1, 1], [], []>} : vector<8x32xf32>, vector<32x32xf32>, vector<8x32xf32> -> vector<8x32xf32>
    %102 = vector.extract_strided_slice %12 {offsets = [0, 2, 0], sizes = [8, 1, 32], strides = [1, 1, 1]} : vector<8x8x32xf32> to vector<8x1x32xf32>
    %103 = vector.shape_cast %102 : vector<8x1x32xf32> to vector<8x32xf32>
    %104 = arith.addf %103, %99 : vector<8x32xf32>
    %105 = arith.negf %104 : vector<8x32xf32>
    %106 = math.exp %105 : vector<8x32xf32>
    %cst_49 = arith.constant 1.000000e+00 : f32
    %107 = vector.broadcast %cst_49 : f32 to vector<8x32xf32>
    %108 = arith.addf %107, %106 : vector<8x32xf32>
    %109 = arith.divf %107, %108 : vector<8x32xf32>
    %110 = vector.extract_strided_slice %20 {offsets = [0, 2, 0], sizes = [8, 1, 32], strides = [1, 1, 1]} : vector<8x8x32xf32> to vector<8x1x32xf32>
    %111 = vector.shape_cast %110 : vector<8x1x32xf32> to vector<8x32xf32>
    %112 = arith.addf %111, %100 : vector<8x32xf32>
    %113 = arith.negf %112 : vector<8x32xf32>
    %114 = math.exp %113 : vector<8x32xf32>
    %cst_50 = arith.constant 1.000000e+00 : f32
    %115 = vector.broadcast %cst_50 : f32 to vector<8x32xf32>
    %116 = arith.addf %115, %114 : vector<8x32xf32>
    %117 = arith.divf %115, %116 : vector<8x32xf32>
    %118 = vector.extract_strided_slice %28 {offsets = [0, 2, 0], sizes = [8, 1, 32], strides = [1, 1, 1]} : vector<8x8x32xf32> to vector<8x1x32xf32>
    %119 = vector.shape_cast %118 : vector<8x1x32xf32> to vector<8x32xf32>
    %120 = arith.addf %101, %37 : vector<8x32xf32>
    %121 = arith.mulf %109, %120 : vector<8x32xf32>
    %122 = arith.addf %119, %121 : vector<8x32xf32>
    %123 = math.tanh %122 : vector<8x32xf32>
    %cst_51 = arith.constant 1.000000e+00 : f32
    %124 = vector.broadcast %cst_51 : f32 to vector<8x32xf32>
    %125 = arith.subf %124, %117 : vector<8x32xf32>
    %126 = arith.mulf %125, %123 : vector<8x32xf32>
    %127 = arith.mulf %117, %98 : vector<8x32xf32>
    %128 = arith.addf %126, %127 : vector<8x32xf32>
    %cst_52 = arith.constant dense<0.000000e+00> : vector<8x32xf32>
    %129 = tpu.matmul %128, %30, %cst_52 {dimension_numbers = #tpu.dot_dimension_numbers<[1], [0], [0], [1], [0, 0, 1, 1], [], []>} : vector<8x32xf32>, vector<32x32xf32>, vector<8x32xf32> -> vector<8x32xf32>
    %cst_53 = arith.constant dense<0.000000e+00> : vector<8x32xf32>
    %130 = tpu.matmul %128, %32, %cst_53 {dimension_numbers = #tpu.dot_dimension_numbers<[1], [0], [0], [1], [0, 0, 1, 1], [], []>} : vector<8x32xf32>, vector<32x32xf32>, vector<8x32xf32> -> vector<8x32xf32>
    %cst_54 = arith.constant dense<0.000000e+00> : vector<8x32xf32>
    %131 = tpu.matmul %128, %34, %cst_54 {dimension_numbers = #tpu.dot_dimension_numbers<[1], [0], [0], [1], [0, 0, 1, 1], [], []>} : vector<8x32xf32>, vector<32x32xf32>, vector<8x32xf32> -> vector<8x32xf32>
    %132 = vector.extract_strided_slice %12 {offsets = [0, 3, 0], sizes = [8, 1, 32], strides = [1, 1, 1]} : vector<8x8x32xf32> to vector<8x1x32xf32>
    %133 = vector.shape_cast %132 : vector<8x1x32xf32> to vector<8x32xf32>
    %134 = arith.addf %133, %129 : vector<8x32xf32>
    %135 = arith.negf %134 : vector<8x32xf32>
    %136 = math.exp %135 : vector<8x32xf32>
    %cst_55 = arith.constant 1.000000e+00 : f32
    %137 = vector.broadcast %cst_55 : f32 to vector<8x32xf32>
    %138 = arith.addf %137, %136 : vector<8x32xf32>
    %139 = arith.divf %137, %138 : vector<8x32xf32>
    %140 = vector.extract_strided_slice %20 {offsets = [0, 3, 0], sizes = [8, 1, 32], strides = [1, 1, 1]} : vector<8x8x32xf32> to vector<8x1x32xf32>
    %141 = vector.shape_cast %140 : vector<8x1x32xf32> to vector<8x32xf32>
    %142 = arith.addf %141, %130 : vector<8x32xf32>
    %143 = arith.negf %142 : vector<8x32xf32>
    %144 = math.exp %143 : vector<8x32xf32>
    %cst_56 = arith.constant 1.000000e+00 : f32
    %145 = vector.broadcast %cst_56 : f32 to vector<8x32xf32>
    %146 = arith.addf %145, %144 : vector<8x32xf32>
    %147 = arith.divf %145, %146 : vector<8x32xf32>
    %148 = vector.extract_strided_slice %28 {offsets = [0, 3, 0], sizes = [8, 1, 32], strides = [1, 1, 1]} : vector<8x8x32xf32> to vector<8x1x32xf32>
    %149 = vector.shape_cast %148 : vector<8x1x32xf32> to vector<8x32xf32>
    %150 = arith.addf %131, %37 : vector<8x32xf32>
    %151 = arith.mulf %139, %150 : vector<8x32xf32>
    %152 = arith.addf %149, %151 : vector<8x32xf32>
    %153 = math.tanh %152 : vector<8x32xf32>
    %cst_57 = arith.constant 1.000000e+00 : f32
    %154 = vector.broadcast %cst_57 : f32 to vector<8x32xf32>
    %155 = arith.subf %154, %147 : vector<8x32xf32>
    %156 = arith.mulf %155, %153 : vector<8x32xf32>
    %157 = arith.mulf %147, %128 : vector<8x32xf32>
    %158 = arith.addf %156, %157 : vector<8x32xf32>
    %cst_58 = arith.constant dense<0.000000e+00> : vector<8x32xf32>
    %159 = tpu.matmul %158, %30, %cst_58 {dimension_numbers = #tpu.dot_dimension_numbers<[1], [0], [0], [1], [0, 0, 1, 1], [], []>} : vector<8x32xf32>, vector<32x32xf32>, vector<8x32xf32> -> vector<8x32xf32>
    %cst_59 = arith.constant dense<0.000000e+00> : vector<8x32xf32>
    %160 = tpu.matmul %158, %32, %cst_59 {dimension_numbers = #tpu.dot_dimension_numbers<[1], [0], [0], [1], [0, 0, 1, 1], [], []>} : vector<8x32xf32>, vector<32x32xf32>, vector<8x32xf32> -> vector<8x32xf32>
    %cst_60 = arith.constant dense<0.000000e+00> : vector<8x32xf32>
    %161 = tpu.matmul %158, %34, %cst_60 {dimension_numbers = #tpu.dot_dimension_numbers<[1], [0], [0], [1], [0, 0, 1, 1], [], []>} : vector<8x32xf32>, vector<32x32xf32>, vector<8x32xf32> -> vector<8x32xf32>
    %162 = vector.extract_strided_slice %12 {offsets = [0, 4, 0], sizes = [8, 1, 32], strides = [1, 1, 1]} : vector<8x8x32xf32> to vector<8x1x32xf32>
    %163 = vector.shape_cast %162 : vector<8x1x32xf32> to vector<8x32xf32>
    %164 = arith.addf %163, %159 : vector<8x32xf32>
    %165 = arith.negf %164 : vector<8x32xf32>
    %166 = math.exp %165 : vector<8x32xf32>
    %cst_61 = arith.constant 1.000000e+00 : f32
    %167 = vector.broadcast %cst_61 : f32 to vector<8x32xf32>
    %168 = arith.addf %167, %166 : vector<8x32xf32>
    %169 = arith.divf %167, %168 : vector<8x32xf32>
    %170 = vector.extract_strided_slice %20 {offsets = [0, 4, 0], sizes = [8, 1, 32], strides = [1, 1, 1]} : vector<8x8x32xf32> to vector<8x1x32xf32>
    %171 = vector.shape_cast %170 : vector<8x1x32xf32> to vector<8x32xf32>
    %172 = arith.addf %171, %160 : vector<8x32xf32>
    %173 = arith.negf %172 : vector<8x32xf32>
    %174 = math.exp %173 : vector<8x32xf32>
    %cst_62 = arith.constant 1.000000e+00 : f32
    %175 = vector.broadcast %cst_62 : f32 to vector<8x32xf32>
    %176 = arith.addf %175, %174 : vector<8x32xf32>
    %177 = arith.divf %175, %176 : vector<8x32xf32>
    %178 = vector.extract_strided_slice %28 {offsets = [0, 4, 0], sizes = [8, 1, 32], strides = [1, 1, 1]} : vector<8x8x32xf32> to vector<8x1x32xf32>
    %179 = vector.shape_cast %178 : vector<8x1x32xf32> to vector<8x32xf32>
    %180 = arith.addf %161, %37 : vector<8x32xf32>
    %181 = arith.mulf %169, %180 : vector<8x32xf32>
    %182 = arith.addf %179, %181 : vector<8x32xf32>
    %183 = math.tanh %182 : vector<8x32xf32>
    %cst_63 = arith.constant 1.000000e+00 : f32
    %184 = vector.broadcast %cst_63 : f32 to vector<8x32xf32>
    %185 = arith.subf %184, %177 : vector<8x32xf32>
    %186 = arith.mulf %185, %183 : vector<8x32xf32>
    %187 = arith.mulf %177, %158 : vector<8x32xf32>
    %188 = arith.addf %186, %187 : vector<8x32xf32>
    %cst_64 = arith.constant dense<0.000000e+00> : vector<8x32xf32>
    %189 = tpu.matmul %188, %30, %cst_64 {dimension_numbers = #tpu.dot_dimension_numbers<[1], [0], [0], [1], [0, 0, 1, 1], [], []>} : vector<8x32xf32>, vector<32x32xf32>, vector<8x32xf32> -> vector<8x32xf32>
    %cst_65 = arith.constant dense<0.000000e+00> : vector<8x32xf32>
    %190 = tpu.matmul %188, %32, %cst_65 {dimension_numbers = #tpu.dot_dimension_numbers<[1], [0], [0], [1], [0, 0, 1, 1], [], []>} : vector<8x32xf32>, vector<32x32xf32>, vector<8x32xf32> -> vector<8x32xf32>
    %cst_66 = arith.constant dense<0.000000e+00> : vector<8x32xf32>
    %191 = tpu.matmul %188, %34, %cst_66 {dimension_numbers = #tpu.dot_dimension_numbers<[1], [0], [0], [1], [0, 0, 1, 1], [], []>} : vector<8x32xf32>, vector<32x32xf32>, vector<8x32xf32> -> vector<8x32xf32>
    %192 = vector.extract_strided_slice %12 {offsets = [0, 5, 0], sizes = [8, 1, 32], strides = [1, 1, 1]} : vector<8x8x32xf32> to vector<8x1x32xf32>
    %193 = vector.shape_cast %192 : vector<8x1x32xf32> to vector<8x32xf32>
    %194 = arith.addf %193, %189 : vector<8x32xf32>
    %195 = arith.negf %194 : vector<8x32xf32>
    %196 = math.exp %195 : vector<8x32xf32>
    %cst_67 = arith.constant 1.000000e+00 : f32
    %197 = vector.broadcast %cst_67 : f32 to vector<8x32xf32>
    %198 = arith.addf %197, %196 : vector<8x32xf32>
    %199 = arith.divf %197, %198 : vector<8x32xf32>
    %200 = vector.extract_strided_slice %20 {offsets = [0, 5, 0], sizes = [8, 1, 32], strides = [1, 1, 1]} : vector<8x8x32xf32> to vector<8x1x32xf32>
    %201 = vector.shape_cast %200 : vector<8x1x32xf32> to vector<8x32xf32>
    %202 = arith.addf %201, %190 : vector<8x32xf32>
    %203 = arith.negf %202 : vector<8x32xf32>
    %204 = math.exp %203 : vector<8x32xf32>
    %cst_68 = arith.constant 1.000000e+00 : f32
    %205 = vector.broadcast %cst_68 : f32 to vector<8x32xf32>
    %206 = arith.addf %205, %204 : vector<8x32xf32>
    %207 = arith.divf %205, %206 : vector<8x32xf32>
    %208 = vector.extract_strided_slice %28 {offsets = [0, 5, 0], sizes = [8, 1, 32], strides = [1, 1, 1]} : vector<8x8x32xf32> to vector<8x1x32xf32>
    %209 = vector.shape_cast %208 : vector<8x1x32xf32> to vector<8x32xf32>
    %210 = arith.addf %191, %37 : vector<8x32xf32>
    %211 = arith.mulf %199, %210 : vector<8x32xf32>
    %212 = arith.addf %209, %211 : vector<8x32xf32>
    %213 = math.tanh %212 : vector<8x32xf32>
    %cst_69 = arith.constant 1.000000e+00 : f32
    %214 = vector.broadcast %cst_69 : f32 to vector<8x32xf32>
    %215 = arith.subf %214, %207 : vector<8x32xf32>
    %216 = arith.mulf %215, %213 : vector<8x32xf32>
    %217 = arith.mulf %207, %188 : vector<8x32xf32>
    %218 = arith.addf %216, %217 : vector<8x32xf32>
    %cst_70 = arith.constant dense<0.000000e+00> : vector<8x32xf32>
    %219 = tpu.matmul %218, %30, %cst_70 {dimension_numbers = #tpu.dot_dimension_numbers<[1], [0], [0], [1], [0, 0, 1, 1], [], []>} : vector<8x32xf32>, vector<32x32xf32>, vector<8x32xf32> -> vector<8x32xf32>
    %cst_71 = arith.constant dense<0.000000e+00> : vector<8x32xf32>
    %220 = tpu.matmul %218, %32, %cst_71 {dimension_numbers = #tpu.dot_dimension_numbers<[1], [0], [0], [1], [0, 0, 1, 1], [], []>} : vector<8x32xf32>, vector<32x32xf32>, vector<8x32xf32> -> vector<8x32xf32>
    %cst_72 = arith.constant dense<0.000000e+00> : vector<8x32xf32>
    %221 = tpu.matmul %218, %34, %cst_72 {dimension_numbers = #tpu.dot_dimension_numbers<[1], [0], [0], [1], [0, 0, 1, 1], [], []>} : vector<8x32xf32>, vector<32x32xf32>, vector<8x32xf32> -> vector<8x32xf32>
    %222 = vector.extract_strided_slice %12 {offsets = [0, 6, 0], sizes = [8, 1, 32], strides = [1, 1, 1]} : vector<8x8x32xf32> to vector<8x1x32xf32>
    %223 = vector.shape_cast %222 : vector<8x1x32xf32> to vector<8x32xf32>
    %224 = arith.addf %223, %219 : vector<8x32xf32>
    %225 = arith.negf %224 : vector<8x32xf32>
    %226 = math.exp %225 : vector<8x32xf32>
    %cst_73 = arith.constant 1.000000e+00 : f32
    %227 = vector.broadcast %cst_73 : f32 to vector<8x32xf32>
    %228 = arith.addf %227, %226 : vector<8x32xf32>
    %229 = arith.divf %227, %228 : vector<8x32xf32>
    %230 = vector.extract_strided_slice %20 {offsets = [0, 6, 0], sizes = [8, 1, 32], strides = [1, 1, 1]} : vector<8x8x32xf32> to vector<8x1x32xf32>
    %231 = vector.shape_cast %230 : vector<8x1x32xf32> to vector<8x32xf32>
    %232 = arith.addf %231, %220 : vector<8x32xf32>
    %233 = arith.negf %232 : vector<8x32xf32>
    %234 = math.exp %233 : vector<8x32xf32>
    %cst_74 = arith.constant 1.000000e+00 : f32
    %235 = vector.broadcast %cst_74 : f32 to vector<8x32xf32>
    %236 = arith.addf %235, %234 : vector<8x32xf32>
    %237 = arith.divf %235, %236 : vector<8x32xf32>
    %238 = vector.extract_strided_slice %28 {offsets = [0, 6, 0], sizes = [8, 1, 32], strides = [1, 1, 1]} : vector<8x8x32xf32> to vector<8x1x32xf32>
    %239 = vector.shape_cast %238 : vector<8x1x32xf32> to vector<8x32xf32>
    %240 = arith.addf %221, %37 : vector<8x32xf32>
    %241 = arith.mulf %229, %240 : vector<8x32xf32>
    %242 = arith.addf %239, %241 : vector<8x32xf32>
    %243 = math.tanh %242 : vector<8x32xf32>
    %cst_75 = arith.constant 1.000000e+00 : f32
    %244 = vector.broadcast %cst_75 : f32 to vector<8x32xf32>
    %245 = arith.subf %244, %237 : vector<8x32xf32>
    %246 = arith.mulf %245, %243 : vector<8x32xf32>
    %247 = arith.mulf %237, %218 : vector<8x32xf32>
    %248 = arith.addf %246, %247 : vector<8x32xf32>
    %cst_76 = arith.constant dense<0.000000e+00> : vector<8x32xf32>
    %249 = tpu.matmul %248, %30, %cst_76 {dimension_numbers = #tpu.dot_dimension_numbers<[1], [0], [0], [1], [0, 0, 1, 1], [], []>} : vector<8x32xf32>, vector<32x32xf32>, vector<8x32xf32> -> vector<8x32xf32>
    %cst_77 = arith.constant dense<0.000000e+00> : vector<8x32xf32>
    %250 = tpu.matmul %248, %32, %cst_77 {dimension_numbers = #tpu.dot_dimension_numbers<[1], [0], [0], [1], [0, 0, 1, 1], [], []>} : vector<8x32xf32>, vector<32x32xf32>, vector<8x32xf32> -> vector<8x32xf32>
    %cst_78 = arith.constant dense<0.000000e+00> : vector<8x32xf32>
    %251 = tpu.matmul %248, %34, %cst_78 {dimension_numbers = #tpu.dot_dimension_numbers<[1], [0], [0], [1], [0, 0, 1, 1], [], []>} : vector<8x32xf32>, vector<32x32xf32>, vector<8x32xf32> -> vector<8x32xf32>
    %252 = vector.extract_strided_slice %12 {offsets = [0, 7, 0], sizes = [8, 1, 32], strides = [1, 1, 1]} : vector<8x8x32xf32> to vector<8x1x32xf32>
    %253 = vector.shape_cast %252 : vector<8x1x32xf32> to vector<8x32xf32>
    %254 = arith.addf %253, %249 : vector<8x32xf32>
    %255 = arith.negf %254 : vector<8x32xf32>
    %256 = math.exp %255 : vector<8x32xf32>
    %cst_79 = arith.constant 1.000000e+00 : f32
    %257 = vector.broadcast %cst_79 : f32 to vector<8x32xf32>
    %258 = arith.addf %257, %256 : vector<8x32xf32>
    %259 = arith.divf %257, %258 : vector<8x32xf32>
    %260 = vector.extract_strided_slice %20 {offsets = [0, 7, 0], sizes = [8, 1, 32], strides = [1, 1, 1]} : vector<8x8x32xf32> to vector<8x1x32xf32>
    %261 = vector.shape_cast %260 : vector<8x1x32xf32> to vector<8x32xf32>
    %262 = arith.addf %261, %250 : vector<8x32xf32>
    %263 = arith.negf %262 : vector<8x32xf32>
    %264 = math.exp %263 : vector<8x32xf32>
    %cst_80 = arith.constant 1.000000e+00 : f32
    %265 = vector.broadcast %cst_80 : f32 to vector<8x32xf32>
    %266 = arith.addf %265, %264 : vector<8x32xf32>
    %267 = arith.divf %265, %266 : vector<8x32xf32>
    %268 = vector.extract_strided_slice %28 {offsets = [0, 7, 0], sizes = [8, 1, 32], strides = [1, 1, 1]} : vector<8x8x32xf32> to vector<8x1x32xf32>
    %269 = vector.shape_cast %268 : vector<8x1x32xf32> to vector<8x32xf32>
    %270 = arith.addf %251, %37 : vector<8x32xf32>
    %271 = arith.mulf %259, %270 : vector<8x32xf32>
    %272 = arith.addf %269, %271 : vector<8x32xf32>
    %273 = math.tanh %272 : vector<8x32xf32>
    %cst_81 = arith.constant 1.000000e+00 : f32
    %274 = vector.broadcast %cst_81 : f32 to vector<8x32xf32>
    %275 = arith.subf %274, %267 : vector<8x32xf32>
    %276 = arith.mulf %275, %273 : vector<8x32xf32>
    %277 = arith.mulf %267, %248 : vector<8x32xf32>
    %278 = arith.addf %276, %277 : vector<8x32xf32>
    %c0_82 = arith.constant 0 : index
    %c0_83 = arith.constant 0 : index
    %279 = vector.load %arg10[%c0_82, %c0_83] : memref<8x32xf32, #tpu.memory_space<vmem>>, vector<8x32xf32>
    tpu.vector_store %arg10[%c0_82, %c0_83], %278 {strides = array<i32>} : memref<8x32xf32, #tpu.memory_space<vmem>>, vector<8x32xf32>,
    %c1_i32 = arith.constant 1 : i32
    %280 = arith.cmpi eq, %arg1, %c1_i32 : i32
    %281 = arith.extui %280 : i1 to i32
    %c0_i32_84 = arith.constant 0 : i32
    %282 = arith.cmpi ne, %281, %c0_i32_84 : i32
    scf.if %282 {
      %c0_85 = arith.constant 0 : index
      %c0_86 = arith.constant 0 : index
      %283 = vector.load %arg7[%c0_85, %c0_86] : memref<32x128xf32, #tpu.memory_space<vmem>>, vector<32x128xf32>
      %cst_87 = arith.constant dense<0.000000e+00> : vector<8x128xf32>
      %284 = tpu.matmul %278, %283, %cst_87 {dimension_numbers = #tpu.dot_dimension_numbers<[1], [0], [0], [1], [0, 0, 1, 1], [], []>} : vector<8x32xf32>, vector<32x128xf32>, vector<8x128xf32> -> vector<8x128xf32>
      %c0_88 = arith.constant 0 : index
      %c0_89 = arith.constant 0 : index
      %285 = vector.load %arg8[%c0_88, %c0_89] : memref<1x128xf32, #tpu.memory_space<vmem>>, vector<1x128xf32>
      %286 = vector.broadcast %285 : vector<1x128xf32> to vector<8x128xf32>
      %287 = arith.addf %284, %286 : vector<8x128xf32>
      %cst_90 = arith.constant dense<0xFF800000> : vector<8xf32>
      %288 = vector.multi_reduction <maximumf>, %287, %cst_90 [1] : vector<8x128xf32> to vector<8xf32>
      %289 = vector.shape_cast %288 : vector<8xf32> to vector<8x1xf32>
      %290 = vector.broadcast %289 : vector<8x1xf32> to vector<8x128xf32>
      %291 = arith.subf %287, %290 : vector<8x128xf32>
      %292 = math.exp %291 : vector<8x128xf32>
      %cst_91 = arith.constant dense<0.000000e+00> : vector<8xf32>
      %293 = vector.multi_reduction <add>, %292, %cst_91 [1] : vector<8x128xf32> to vector<8xf32>
      %294 = vector.shape_cast %293 : vector<8xf32> to vector<8x1xf32>
      %295 = math.log %294 : vector<8x1xf32>
      %296 = arith.addf %295, %289 : vector<8x1xf32>
      %297 = vector.broadcast %296 : vector<8x1xf32> to vector<8x128xf32>
      %298 = arith.subf %287, %297 : vector<8x128xf32>
      %c0_92 = arith.constant 0 : index
      %c0_93 = arith.constant 0 : index
      %299 = vector.load %arg9[%c0_92, %c0_93] : memref<8x128xf32, #tpu.memory_space<vmem>>, vector<8x128xf32>
      tpu.vector_store %arg9[%c0_92, %c0_93], %298 {strides = array<i32>} : memref<8x128xf32, #tpu.memory_space<vmem>>, vector<8x128xf32>,
    } else {
    }
    return
  }
  func.func @transform_0(%arg0: i32, %arg1: i32) -> (i32, i32, i32) {
    %c0_i32 = arith.constant 0 : i32
    %c0_i32_0 = arith.constant 0 : i32
    return %arg0, %arg1, %c0_i32 : i32, i32, i32
  }
  func.func @transform_1(%arg0: i32, %arg1: i32) -> (i32, i32, i32) {
    %c0_i32 = arith.constant 0 : i32
    %c0_i32_0 = arith.constant 0 : i32
    %c0_i32_1 = arith.constant 0 : i32
    %c0_i32_2 = arith.constant 0 : i32
    return %c0_i32, %c0_i32_0, %c0_i32_1 : i32, i32, i32
  }
  func.func @transform_2(%arg0: i32, %arg1: i32) -> (i32, i32, i32) {
    %c0_i32 = arith.constant 0 : i32
    %c0_i32_0 = arith.constant 0 : i32
    %c0_i32_1 = arith.constant 0 : i32
    %c0_i32_2 = arith.constant 0 : i32
    return %c0_i32, %c0_i32_0, %c0_i32_1 : i32, i32, i32
  }
  func.func @transform_3(%arg0: i32, %arg1: i32) -> (i32, i32, i32) {
    %c0_i32 = arith.constant 0 : i32
    %c0_i32_0 = arith.constant 0 : i32
    %c0_i32_1 = arith.constant 0 : i32
    %c0_i32_2 = arith.constant 0 : i32
    return %c0_i32, %c0_i32_0, %c0_i32_1 : i32, i32, i32
  }
  func.func @transform_4(%arg0: i32, %arg1: i32) -> (i32, i32) {
    %c0_i32 = arith.constant 0 : i32
    %c0_i32_0 = arith.constant 0 : i32
    %c0_i32_1 = arith.constant 0 : i32
    return %c0_i32, %c0_i32_0 : i32, i32
  }
  func.func @transform_5(%arg0: i32, %arg1: i32) -> (i32, i32) {
    %c0_i32 = arith.constant 0 : i32
    %c0_i32_0 = arith.constant 0 : i32
    %c0_i32_1 = arith.constant 0 : i32
    return %c0_i32, %c0_i32_0 : i32, i32
  }
  func.func @transform_6(%arg0: i32, %arg1: i32) -> (i32, i32) {
    %c0_i32 = arith.constant 0 : i32
    %c0_i32_0 = arith.constant 0 : i32
    %c0_i32_1 = arith.constant 0 : i32
    return %c0_i32, %c0_i32_0 : i32, i32
  }
  func.func @transform_7(%arg0: i32, %arg1: i32) -> (i32, i32) {
    %c0_i32 = arith.constant 0 : i32
    %c0_i32_0 = arith.constant 0 : i32
    return %arg0, %c0_i32 : i32, i32
  }
}

</mosaic_0001>

<llo_original>
// kernel: tpu_custom_call.1
$region0: #{tpu_custom_call.1}
  #allocation0 [shape = 'u32[]', space=smem, size = 0x4, offset = 0x4, fixed_abs, tag = 'smem constant byte address 0x4 - core index']
  #allocation1 [shape = 'u32[144,128]{1,0:T(1,128)}', space=vmem, size = 0x12000, scoped, tag = 'internal scratch']
  #allocation2 [shape = 'f32[8,32]{1,0:T(8,128)}', space=vmem, size = 0x1000, scoped, tag = 'scratch operand']
  %s0 = inlined_call_operand.hbm [shape: f32[16,16,16], index: 0, kind: input, shape index: {}]
  %s1 = inlined_call_operand.hbm [shape: f32[3,16,32], index: 1, kind: input, shape index: {}]
  %s2 = inlined_call_operand.hbm [shape: f32[3,32,32], index: 2, kind: input, shape index: {}]
  %s3 = inlined_call_operand.vmem [shape: f32[3,1,32], index: 3, kind: input, shape index: {}]
  %s4 = inlined_call_operand.vmem [shape: f32[1,32], index: 4, kind: input, shape index: {}]
  %s5 = inlined_call_operand.hbm [shape: f32[32,128], index: 5, kind: input, shape index: {}]
  %s6 = inlined_call_operand.vmem [shape: f32[1,128], index: 6, kind: input, shape index: {}]
  %s7 = inlined_call_operand.hbm [shape: f32[16,128], index: 7, kind: output, shape index: {}]
  %s8 = sld [smem:[#allocation0]]
  $region85: #{tpu_custom_call.1} parent=0
    _
  %s10 = ssub.s32 1, %s8
  %s11 = scalar_select 0, %s10, %s8
  $region1: #{tpu_custom_call.1} parent=0
    #allocation3 [shape = 'u8[65536]{0}', space=vmem, size = 0x10000, scoped, tag = 'input window, operand 0']
    #allocation4 [shape = 's32[2]{0}', space=sflag, size = 0x8, scoped, tag = 'scoped memory for tpu_custom_call.1']
    #allocation5 [shape = 's32[2]{0}', space=sflag, size = 0x8, scoped, tag = 'scoped memory for tpu_custom_call.1']
    #allocation6 [shape = 'u8[24576]{0}', space=vmem, size = 0x6000, scoped, tag = 'input window, operand 1, single buffered']
    #allocation7 [shape = 's32[1]{0}', space=sflag, size = 0x4, scoped, tag = 'scoped memory for tpu_custom_call.1']
    #allocation8 [shape = 'u8[49152]{0}', space=vmem, size = 0xc000, scoped, tag = 'input window, operand 2, single buffered']
    #allocation9 [shape = 'u8[16384]{0}', space=vmem, size = 0x4000, scoped, tag = 'input window, operand 5, single buffered']
    #allocation10 [shape = 's32[1]{0}', space=sflag, size = 0x4, scoped, tag = 'scoped memory for tpu_custom_call.1']
    #allocation11 [shape = 'u8[8192]{0}', space=vmem, size = 0x2000, scoped, tag = 'output window, operand 0']
    %12 = vsyncpa [#allocation4], 0
    %s13 = scalar_lea.sflag [#allocation4], 1
    %14 = vsyncpa %s13, 0
    %15 = vsyncpa [#allocation7], 0
    %16 = vsyncpa [#allocation10], 0
    %17 = vsyncpa [#allocation5], 0
    %s18 = scalar_lea.sflag [#allocation5], 1
    %19 = vsyncpa %s18, 0
    loop: start=0, step=1, limit=6
    $region2: #{tpu_custom_call.1} parent=1 // loop_pre_header
      _
    $region3: #{tpu_custom_call.1} parent=1 // loop_header
      %s21 = sphi 0, %s25
      %p22 = scmp.ge.s32.totalorder %s21, 6
      %s28 = sphi 0, %s40
      %s29 = sphi 0, %s36
      %s30 = sphi 0, %s28
      %s31 = sphi 0, %s29
      %s32 = sphi 0, %s30
      %s33 = sphi 0, %s31
      %s45 = sphi 0, %s47
      %s48 = sphi 0, %s45
      %s49 = sphi 0, %s48
      %s65 = sphi 0, %s49
      %s69 = sphi 0, %s69
      %s71 = sphi 0, %s69
      %s72 = sphi 0, %s71
      %s86 = sphi 0, %s72
      %s90 = sphi 0, %s90
      %s92 = sphi 0, %s90
      %s93 = sphi 0, %s92
      %s107 = sphi 0, %s93
      %s111 = sphi 0, %s111
      %s113 = sphi 0, %s111
      %s114 = sphi 0, %s113
      %s128 = sphi 0, %s114
      %s132 = sphi 0, %s132
      %s134 = sphi 0, %s132
      %s135 = sphi 0, %s134
      %s149 = sphi 0, %s135
      %s153 = sphi 0, %s153
      %s155 = sphi 0, %s153
      %s156 = sphi 0, %s155
      %s170 = sphi 0, %s156
      %s174 = sphi 0, %s174
      %s176 = sphi 0, %s174
      %s177 = sphi 0, %s176
      %s191 = sphi 0, %s177
      %s197 = sphi 0, %s199
      %s200 = sphi 0, %s197
      %s201 = sphi 0, %s200
      %s217 = sphi 0, %s201
    $region4: #{tpu_custom_call.1} parent=1 // loop_header_branch
      %24 = sbr.rel (%p22) target = $region8
    $region5: #{tpu_custom_call.1} parent=1 // loop_body
      %s26 = ssub.s32 %s21, 1
      %s27 = ssub.s32 %s21, 2
      %s34 = sadd.s32 1, %s29
      %p35 = scmp.ge.s32.totalorder %s34, 2
      %s36 = scalar_select %p35, 0, %s34
      %s37 = sadd.s32 1, %s28
      %s38 = scalar_select %p35, %s37, %s28
      %p39 = scmp.ge.s32.totalorder %s38, 2
      %s40 = scalar_select %p39, 0, %s38
      %s41 = ssub.s32 %s28, %s40
      %s42 = ssub.s32 %s29, %s36
      %s43 = sor.u32 %s41, %s42
      %p44 = scmp.eq.s32.totalorder %s43, 0
      %s46 = sadd.s32 %s45, 1
      %s47 = scalar_select %p44, %s45, %s46
      %p50 = pneg %p44
      %p51 = scmp.eq.s32.totalorder %s21, 3
      %p52 = por %p50, %p51
      %p53 = scmp.ne.s32.totalorder %s45, %s48
      %p54 = scmp.eq.s32.totalorder %s21, 0
      %p55 = por %p53, %p54
      %p56 = scmp.ne.s32.totalorder %s45, %s48
      %p57 = scmp.eq.s32.totalorder %s26, 3
      %p58 = por %p56, %p57
      %p59 = scmp.ne.s32.totalorder %s48, %s49
      %p60 = scmp.eq.s32.totalorder %s26, 0
      %p61 = por %p59, %p60
      %p62 = scmp.ne.s32.totalorder %s48, %s49
      %p63 = scmp.eq.s32.totalorder %s27, 3
      %p64 = por %p62, %p63
      %p66 = scmp.ne.s32.totalorder %s49, %s65
      %p67 = scmp.eq.s32.totalorder %s27, 0
      %p68 = por %p66, %p67
      %s70 = sadd.s32 %s69, 1
      %p73 = scmp.eq.s32.totalorder %s21, 3
      %p74 = scmp.ne.s32.totalorder %s69, %s71
      %p75 = scmp.eq.s32.totalorder %s21, 0
      %p76 = por %p74, %p75
      %p77 = scmp.ne.s32.totalorder %s69, %s71
      %p78 = scmp.eq.s32.totalorder %s26, 3
      %p79 = por %p77, %p78
      %p80 = scmp.ne.s32.totalorder %s71, %s72
      %p81 = scmp.eq.s32.totalorder %s26, 0
      %p82 = por %p80, %p81
      %p83 = scmp.ne.s32.totalorder %s71, %s72
      %p84 = scmp.eq.s32.totalorder %s27, 3
      %p85 = por %p83, %p84
      %p87 = scmp.ne.s32.totalorder %s72, %s86
      %p88 = scmp.eq.s32.totalorder %s27, 0
      %p89 = por %p87, %p88
      %s91 = sadd.s32 %s90, 1
      %p94 = scmp.eq.s32.totalorder %s21, 3
      %p95 = scmp.ne.s32.totalorder %s90, %s92
      %p96 = scmp.eq.s32.totalorder %s21, 0
      %p97 = por %p95, %p96
      %p98 = scmp.ne.s32.totalorder %s90, %s92
      %p99 = scmp.eq.s32.totalorder %s26, 3
      %p100 = por %p98, %p99
      %p101 = scmp.ne.s32.totalorder %s92, %s93
      %p102 = scmp.eq.s32.totalorder %s26, 0
      %p103 = por %p101, %p102
      %p104 = scmp.ne.s32.totalorder %s92, %s93
      %p105 = scmp.eq.s32.totalorder %s27, 3
      %p106 = por %p104, %p105
      %p108 = scmp.ne.s32.totalorder %s93, %s107
      %p109 = scmp.eq.s32.totalorder %s27, 0
      %p110 = por %p108, %p109
      %s112 = sadd.s32 %s111, 1
      %p115 = scmp.eq.s32.totalorder %s21, 3
      %p116 = scmp.ne.s32.totalorder %s111, %s113
      %p117 = scmp.eq.s32.totalorder %s21, 0
      %p118 = por %p116, %p117
      %p119 = scmp.ne.s32.totalorder %s111, %s113
      %p120 = scmp.eq.s32.totalorder %s26, 3
      %p121 = por %p119, %p120
      %p122 = scmp.ne.s32.totalorder %s113, %s114
      %p123 = scmp.eq.s32.totalorder %s26, 0
      %p124 = por %p122, %p123
      %p125 = scmp.ne.s32.totalorder %s113, %s114
      %p126 = scmp.eq.s32.totalorder %s27, 3
      %p127 = por %p125, %p126
      %p129 = scmp.ne.s32.totalorder %s114, %s128
      %p130 = scmp.eq.s32.totalorder %s27, 0
      %p131 = por %p129, %p130
      %s133 = sadd.s32 %s132, 1
      %p136 = scmp.eq.s32.totalorder %s21, 3
      %p137 = scmp.ne.s32.totalorder %s132, %s134
      %p138 = scmp.eq.s32.totalorder %s21, 0
      %p139 = por %p137, %p138
      %p140 = scmp.ne.s32.totalorder %s132, %s134
      %p141 = scmp.eq.s32.totalorder %s26, 3
      %p142 = por %p140, %p141
      %p143 = scmp.ne.s32.totalorder %s134, %s135
      %p144 = scmp.eq.s32.totalorder %s26, 0
      %p145 = por %p143, %p144
      %p146 = scmp.ne.s32.totalorder %s134, %s135
      %p147 = scmp.eq.s32.totalorder %s27, 3
      %p148 = por %p146, %p147
      %p150 = scmp.ne.s32.totalorder %s135, %s149
      %p151 = scmp.eq.s32.totalorder %s27, 0
      %p152 = por %p150, %p151
      %s154 = sadd.s32 %s153, 1
      %p157 = scmp.eq.s32.totalorder %s21, 3
      %p158 = scmp.ne.s32.totalorder %s153, %s155
      %p159 = scmp.eq.s32.totalorder %s21, 0
      %p160 = por %p158, %p159
      %p161 = scmp.ne.s32.totalorder %s153, %s155
      %p162 = scmp.eq.s32.totalorder %s26, 3
      %p163 = por %p161, %p162
      %p164 = scmp.ne.s32.totalorder %s155, %s156
      %p165 = scmp.eq.s32.totalorder %s26, 0
      %p166 = por %p164, %p165
      %p167 = scmp.ne.s32.totalorder %s155, %s156
      %p168 = scmp.eq.s32.totalorder %s27, 3
      %p169 = por %p167, %p168
      %p171 = scmp.ne.s32.totalorder %s156, %s170
      %p172 = scmp.eq.s32.totalorder %s27, 0
      %p173 = por %p171, %p172
      %s175 = sadd.s32 %s174, 1
      %p178 = scmp.eq.s32.totalorder %s21, 3
      %p179 = scmp.ne.s32.totalorder %s174, %s176
      %p180 = scmp.eq.s32.totalorder %s21, 0
      %p181 = por %p179, %p180
      %p182 = scmp.ne.s32.totalorder %s174, %s176
      %p183 = scmp.eq.s32.totalorder %s26, 3
      %p184 = por %p182, %p183
      %p185 = scmp.ne.s32.totalorder %s176, %s177
      %p186 = scmp.eq.s32.totalorder %s26, 0
      %p187 = por %p185, %p186
      %p188 = scmp.ne.s32.totalorder %s176, %s177
      %p189 = scmp.eq.s32.totalorder %s27, 3
      %p190 = por %p188, %p189
      %p192 = scmp.ne.s32.totalorder %s177, %s191
      %p193 = scmp.eq.s32.totalorder %s27, 0
      %p194 = por %p192, %p193
      %s195 = ssub.s32 %s28, %s40
      %p196 = scmp.eq.s32.totalorder %s195, 0
      %s198 = sadd.s32 %s197, 1
      %s199 = scalar_select %p196, %s197, %s198
      %p202 = pneg %p196
      %p203 = scmp.eq.s32.totalorder %s21, 3
      %p204 = por %p202, %p203
      %p205 = scmp.ne.s32.totalorder %s197, %s200
      %p206 = scmp.eq.s32.totalorder %s21, 0
      %p207 = por %p205, %p206
      %p208 = scmp.ne.s32.totalorder %s197, %s200
      %p209 = scmp.eq.s32.totalorder %s26, 3
      %p210 = por %p208, %p209
      %p211 = scmp.ne.s32.totalorder %s200, %s201
      %p212 = scmp.eq.s32.totalorder %s26, 0
      %p213 = por %p211, %p212
      %p214 = scmp.ne.s32.totalorder %s200, %s201
      %p215 = scmp.eq.s32.totalorder %s27, 3
      %p216 = por %p214, %p215
      %p218 = scmp.ne.s32.totalorder %s201, %s217
      %p219 = scmp.eq.s32.totalorder %s27, 0
      %p220 = por %p218, %p219
      %p221 = scmp.le.s32.totalorder 1, %s21
      %p222 = scmp.lt.s32.totalorder %s21, 5
      %p223 = pnand %p221, %p222
      %p224 = pneg %p223
      // Predicated region
      $region9: #{tpu_custom_call.1} parent=5 // pred_check
        _
      $region10: #{tpu_custom_call.1} parent=5 // pred_check_branch
        %226 = sbr.rel (%p223) target = $region12
      $region11: #{tpu_custom_call.1} parent=5 // pred_region
        %s227 = ssub.s32 %s21, 1
        // Predicated region
        $region13: #{tpu_custom_call.1} parent=11 // pred_check
          %p228 = pneg %p82
        $region14: #{tpu_custom_call.1} parent=11 // pred_check_branch
          %230 = sbr.rel (%p228) target = $region16
        $region15: #{tpu_custom_call.1} parent=11 // pred_region
          %s232 = ssub.s32 768, 768
          %233 = vsyncadd [#allocation7], %s232
          %s234 = sshll.u32 [#allocation6], 4
          %s235 = int_to_ptr.vmem [resolvable:$true] %s234
          %240 = dma.hbm_to_vmem [thread:$0]  %s1, 768, %s235, [#allocation7], 128, 128, 8
        $region16: #{tpu_custom_call.1} parent=11 // pred_fallthru
          _
        // Predicated region
        $region17: #{tpu_custom_call.1} parent=11 // pred_check
          %p241 = pneg %p103
        $region18: #{tpu_custom_call.1} parent=11 // pred_check_branch
          %243 = sbr.rel (%p241) target = $region20
        $region19: #{tpu_custom_call.1} parent=11 // pred_region
          %s245 = ssub.s32 1536, 1536
          %246 = vsyncadd [#allocation7], %s245
          %s247 = sshll.u32 [#allocation8], 4
          %s248 = int_to_ptr.vmem [resolvable:$true] %s247
          %253 = dma.hbm_to_vmem [thread:$0]  %s2, 1536, %s248, [#allocation7], 128, 128, 8
        $region20: #{tpu_custom_call.1} parent=11 // pred_fallthru
          _
        // Predicated region
        $region21: #{tpu_custom_call.1} parent=11 // pred_check
          %p254 = pneg %p124
        $region22: #{tpu_custom_call.1} parent=11 // pred_check_branch
          %256 = sbr.rel (%p254) target = $region24
        $region23: #{tpu_custom_call.1} parent=11 // pred_region
          _
        $region24: #{tpu_custom_call.1} parent=11 // pred_fallthru
          _
        // Predicated region
        $region25: #{tpu_custom_call.1} parent=11 // pred_check
          %p257 = pneg %p145
        $region26: #{tpu_custom_call.1} parent=11 // pred_check_branch
          %259 = sbr.rel (%p257) target = $region28
        $region27: #{tpu_custom_call.1} parent=11 // pred_region
          _
        $region28: #{tpu_custom_call.1} parent=11 // pred_fallthru
          _
        // Predicated region
        $region29: #{tpu_custom_call.1} parent=11 // pred_check
          %p260 = pneg %p166
        $region30: #{tpu_custom_call.1} parent=11 // pred_check_branch
          %262 = sbr.rel (%p260) target = $region32
        $region31: #{tpu_custom_call.1} parent=11 // pred_region
          %s264 = ssub.s32 512, 512
          %265 = vsyncadd [#allocation10], %s264
          %s266 = sshll.u32 [#allocation9], 4
          %s267 = int_to_ptr.vmem [resolvable:$true] %s266
          %272 = dma.hbm_to_vmem [thread:$0]  %s5, 512, %s267, [#allocation10], 128, 128, 8
        $region32: #{tpu_custom_call.1} parent=11 // pred_fallthru
          _
        // Predicated region
        $region33: #{tpu_custom_call.1} parent=11 // pred_check
          %p273 = pneg %p187
        $region34: #{tpu_custom_call.1} parent=11 // pred_check_branch
          %275 = sbr.rel (%p273) target = $region36
        $region35: #{tpu_custom_call.1} parent=11 // pred_region
          _
        $region36: #{tpu_custom_call.1} parent=11 // pred_fallthru
          _
      $region12: #{tpu_custom_call.1} parent=5 // pred_fallthru
        _
      %p276 = scmp.lt.s32.totalorder %s21, 4
      // Predicated region
      $region37: #{tpu_custom_call.1} parent=5 // pred_check
        %p277 = pneg %p276
      $region38: #{tpu_custom_call.1} parent=5 // pred_check_branch
        %279 = sbr.rel (%p277) target = $region40
      $region39: #{tpu_custom_call.1} parent=5 // pred_region
        // Predicated region
        $region41: #{tpu_custom_call.1} parent=39 // pred_check
          %p280 = pneg %p55
        $region42: #{tpu_custom_call.1} parent=39 // pred_check_branch
          %282 = sbr.rel (%p280) target = $region44
        $region43: #{tpu_custom_call.1} parent=39 // pred_region
          %s283 = sand.u32 %s45, 1
          %s284 = scalar_lea.sflag [#allocation4], %s283
          %s285 = sand.u32 %s45, 1
          %s286 = smul.addr %s285, 64
          %s287 = scalar_lea.vmem [#allocation3], %s286
          %s288 = smul.u32 8, %s28
          %s290 = ssub.s32 1024, 1024
          %291 = vsyncadd %s284, %s290
          %s292 = smul.addr %s288, 2
          %s293 = sadd.s32 %s29, %s292
          %s294 = smul.addr %s293, 128
          %s295 = scalar_lea.hbm %s0, %s294
          %s296 = sshll.u32 %s287, 4
          %s297 = int_to_ptr.vmem [resolvable:$true] %s296
          %302 = dma.hbm_to_vmem [thread:$0]  %s295, 1024, %s297, %s284, 256, 128, 8
        $region44: #{tpu_custom_call.1} parent=39 // pred_fallthru
          _
      $region40: #{tpu_custom_call.1} parent=5 // pred_fallthru
        _
      %p303 = scmp.le.s32.totalorder 1, %s21
      %p304 = scmp.lt.s32.totalorder %s21, 5
      %p305 = pnand %p303, %p304
      %p306 = pneg %p305
      // Predicated region
      $region45: #{tpu_custom_call.1} parent=5 // pred_check
        _
      $region46: #{tpu_custom_call.1} parent=5 // pred_check_branch
        %308 = sbr.rel (%p305) target = $region48
      $region47: #{tpu_custom_call.1} parent=5 // pred_region
        %s309 = ssub.s32 %s21, 1
        %s310 = sand.u32 %s48, 1
        %s311 = scalar_lea.sflag [#allocation4], %s310
        %s312 = sand.u32 %s48, 1
        %s313 = smul.addr %s312, 64
        %s314 = scalar_lea.vmem [#allocation3], %s313
        // Predicated region
        $region49: #{tpu_custom_call.1} parent=47 // pred_check
          %p315 = pneg %p61
        $region50: #{tpu_custom_call.1} parent=47 // pred_check_branch
          %317 = sbr.rel (%p315) target = $region52
        $region51: #{tpu_custom_call.1} parent=47 // pred_region
          %318 = dma.done %s311, 1024
        $region52: #{tpu_custom_call.1} parent=47 // pred_fallthru
          _
        // Predicated region
        $region53: #{tpu_custom_call.1} parent=47 // pred_check
          %p319 = pneg %p82
        $region54: #{tpu_custom_call.1} parent=47 // pred_check_branch
          %321 = sbr.rel (%p319) target = $region56
        $region55: #{tpu_custom_call.1} parent=47 // pred_region
          %322 = dma.done [#allocation7], 768
        $region56: #{tpu_custom_call.1} parent=47 // pred_fallthru
          _
        // Predicated region
        $region57: #{tpu_custom_call.1} parent=47 // pred_check
          %p323 = pneg %p103
        $region58: #{tpu_custom_call.1} parent=47 // pred_check_branch
          %325 = sbr.rel (%p323) target = $region60
        $region59: #{tpu_custom_call.1} parent=47 // pred_region
          %326 = dma.done [#allocation7], 1536
        $region60: #{tpu_custom_call.1} parent=47 // pred_fallthru
          _
        // Predicated region
        $region61: #{tpu_custom_call.1} parent=47 // pred_check
          %p327 = pneg %p166
        $region62: #{tpu_custom_call.1} parent=47 // pred_check_branch
          %329 = sbr.rel (%p327) target = $region64
        $region63: #{tpu_custom_call.1} parent=47 // pred_region
          %330 = dma.done [#allocation10], 512
        $region64: #{tpu_custom_call.1} parent=47 // pred_fallthru
          _
        %s331 = sand.u32 %s48, 1
        %s332 = scalar_lea.sflag [#allocation4], %s331
        %s333 = sand.u32 %s48, 1
        %s334 = smul.addr %s333, 64
        %s335 = scalar_lea.vmem [#allocation3], %s334
        %p336 = pneg %p61
        %p337 = pneg %p58
        %p338 = pneg %p82
        %p339 = pneg %p79
        %p340 = pneg %p103
        %p341 = pneg %p100
        %p342 = pneg %p124
        %p343 = pneg %p121
        %p344 = pneg %p145
        %p345 = pneg %p142
        %p346 = pneg %p166
        %p347 = pneg %p163
        %p348 = pneg %p187
        %p349 = pneg %p184
        %p350 = pneg %p213
        %p351 = pneg %p210
        %s352 = sand.u32 %s200, 1
        %s353 = scalar_lea.sflag [#allocation5], %s352
        %s354 = sand.u32 %s200, 1
        %s355 = smul.addr %s354, 8
        %s356 = scalar_lea.vmem [#allocation11], %s355
        %s357 = smul.u32 8, %s30
        %p358 = scmp.eq.s32.totalorder %s31, 0
        // Predicated region
        $region65: #{tpu_custom_call.1} parent=47 // pred_check
          %p359 = pneg %p358
        $region66: #{tpu_custom_call.1} parent=47 // pred_check_branch
          %361 = sbr.rel (%p359) target = $region68
        $region67: #{tpu_custom_call.1} parent=47 // pred_region
          %vm362 = vcmask 261120
          %363 = vst.msk [vmem:[#allocation2] sm:$0xff] %vm362, 0.0
        $region68: #{tpu_custom_call.1} parent=47 // pred_fallthru
          _
        %v364 = vld [vmem:[%s314] sm:$0xff]
        %v365 = vld [vmem:[%s314 + $0x8] sm:$0xff]
        %v366 = vld [vmem:[%s314 + $0x10] sm:$0xff]
        %v367 = vld [vmem:[%s314 + $0x18] sm:$0xff]
        %v368 = vld [vmem:[%s314 + $0x20] sm:$0xff]
        %v369 = vld [vmem:[%s314 + $0x28] sm:$0xff]
        %v370 = vld [vmem:[%s314 + $0x30] sm:$0xff]
        %v371 = vld [vmem:[%s314 + $0x38] sm:$0xff]
        %v372 = vld [vmem:[#allocation6] sm:$0xff]
        %v373 = vld [vmem:[#allocation6 + $0x8] sm:$0xff]
        %v374 = vld [vmem:[%s3] sm:$0x1]
        %v376 = vlaneseq
        %v377 = vshrl.u32 %v376, 7
        %v378 = vsub.s32 0, %v377
        %v379 = vrot.slane %v374, %v378
        %vm381 = vcmask 130048
        %v383 = vsel %vm381, %v364, 0
        %v386 = vsel %vm381, %v365, 0
        %v389 = vsel %vm381, %v366, 0
        %v392 = vsel %vm381, %v367, 0
        %v395 = vsel %vm381, %v368, 0
        %v398 = vsel %vm381, %v369, 0
        %v401 = vsel %vm381, %v370, 0
        %v404 = vsel %vm381, %v371, 0
        %406 = vmatprep.subr.mxu0 0.0
        %407 = vmatpush1.msra.mxu0 %v372
        %408 = vmatprep.subr.mxu0 0.0
        %409 = vmatpush1.msra.mxu0 %v373
        %410 = vmatprep.subr.mxu0 0.0
        %411 = vmatpush1.msra.mxu0 0.0
        %412 = vmatprep.subr.mxu0 0.0
        %413 = vmatpush1.msra.mxu0 0.0
        %414 = vmatprep.subr.mxu0 0.0
        %415 = vmatpush1.msra.mxu0 0.0
        %416 = vmatprep.subr.mxu0 0.0
        %417 = vmatpush1.msra.mxu0 0.0
        %418 = vmatprep.subr.mxu0 0.0
        %419 = vmatpush1.msra.mxu0 0.0
        %420 = vmatprep.subr.mxu0 0.0
        %421 = vmatpush1.msra.mxu0 0.0
        %422 = vmatprep.subr.mxu0 0.0
        %423 = vmatpush1.msra.mxu0 0.0
        %424 = vmatprep.subr.mxu0 0.0
        %425 = vmatpush1.msra.mxu0 0.0
        %426 = vmatprep.subr.mxu0 0.0
        %427 = vmatpush1.msra.mxu0 0.0
        %428 = vmatprep.subr.mxu0 0.0
        %429 = vmatpush1.msra.mxu0 0.0
        %430 = vmatprep.subr.mxu0 0.0
        %431 = vmatpush1.msra.mxu0 0.0
        %432 = vmatprep.subr.mxu0 0.0
        %433 = vmatpush1.msra.mxu0 0.0
        %434 = vmatprep.subr.mxu0 0.0
        %435 = vmatpush1.msra.mxu0 0.0
        %436 = vmatprep.subr.mxu0 0.0
        %437 = vmatpush1.msra.mxu0 0.0
        %438 = vmatprep.subr.mxu0 0.0
        %439 = vmatpush1.msra.mxu0 0.0
        %440 = vmatprep.subr.mxu0 0.0
        %441 = vmatpush1.msra.mxu0 0.0
        %442 = vmatprep.subr.mxu0 0.0
        %443 = vmatpush1.msra.mxu0 0.0
        %444 = vmatprep.subr.mxu0 0.0
        %445 = vmatpush1.msra.mxu0 0.0
        %446 = vmatprep.subr.mxu0 0.0
        %447 = vmatpush1.msra.mxu0 0.0
        %448 = vmatprep.subr.mxu0 0.0
        %449 = vmatpush1.msra.mxu0 0.0
        %450 = vmatprep.subr.mxu0 0.0
        %451 = vmatpush1.msra.mxu0 0.0
        %452 = vmatprep.subr.mxu0 0.0
        %453 = vmatpush1.msra.mxu0 0.0
        %454 = vmatprep.subr.mxu0 0.0
        %455 = vmatpush1.msra.mxu0 0.0
        %456 = vmatprep.subr.mxu0 0.0
        %457 = vmatpush1.msra.mxu0 0.0
        %458 = vmatprep.subr.mxu0 0.0
        %459 = vmatpush1.msra.mxu0 0.0
        %460 = vmatprep.subr.mxu0 0.0
        %461 = vmatpush1.msra.mxu0 0.0
        %462 = vmatprep.subr.mxu0 0.0
        %463 = vmatpush1.msra.mxu0 0.0
        %464 = vmatprep.subr.mxu0 0.0
        %465 = vmatpush1.msra.mxu0 0.0
        %466 = vmatprep.subr.mxu0 0.0
        %467 = vmatpush1.msra.mxu0 0.0
        %468 = vmatprep.subr.mxu0 0.0
        %469 = vmatpush1.msra.mxu0 0.0
        %470 = vmatprep.mubr.f32.mxu0 0.0
        %471 = vmatmul.mubr.f32.gmra.mrb[0].mxu0 %v383
        %v472 = vpop.f32.mrb[0].mxu0
        %v473 = vadd.f32 %v379, %v472
        %v474 = vpop.f32.mrb[0].mxu0
        %475 = vmatprep.mubr.f32.mxu0 0.0
        %476 = vmatmul.mubr.f32.gmra.mrb[0].mxu0 %v386
        %v477 = vpop.f32.mrb[0].mxu0
        %v478 = vadd.f32 %v379, %v477
        %v479 = vpop.f32.mrb[0].mxu0
        %480 = vmatprep.mubr.f32.mxu0 0.0
        %481 = vmatmul.mubr.f32.gmra.mrb[0].mxu0 %v389
        %v482 = vpop.f32.mrb[0].mxu0
        %v483 = vadd.f32 %v379, %v482
        %v484 = vpop.f32.mrb[0].mxu0
        %485 = vmatprep.mubr.f32.mxu0 0.0
        %486 = vmatmul.mubr.f32.gmra.mrb[0].mxu0 %v392
        %v487 = vpop.f32.mrb[0].mxu0
        %v488 = vadd.f32 %v379, %v487
        %v489 = vpop.f32.mrb[0].mxu0
        %490 = vmatprep.mubr.f32.mxu0 0.0
        %491 = vmatmul.mubr.f32.gmra.mrb[0].mxu0 %v395
        %v492 = vpop.f32.mrb[0].mxu0
        %v493 = vadd.f32 %v379, %v492
        %v494 = vpop.f32.mrb[0].mxu0
        %495 = vmatprep.mubr.f32.mxu0 0.0
        %496 = vmatmul.mubr.f32.gmra.mrb[0].mxu0 %v398
        %v497 = vpop.f32.mrb[0].mxu0
        %v498 = vadd.f32 %v379, %v497
        %v499 = vpop.f32.mrb[0].mxu0
        %500 = vmatprep.mubr.f32.mxu0 0.0
        %501 = vmatmul.mubr.f32.gmra.mrb[0].mxu0 %v401
        %v502 = vpop.f32.mrb[0].mxu0
        %v503 = vadd.f32 %v379, %v502
        %v504 = vpop.f32.mrb[0].mxu0
        %505 = vmatprep.mubr.f32.mxu0 0.0
        %506 = vmatmul.mubr.f32.gmra.mrb[0].mxu0 %v404
        %v507 = vpop.f32.mrb[0].mxu0
        %v508 = vadd.f32 %v379, %v507
        %v509 = vpop.f32.mrb[0].mxu0
        %510 = vdwg.mxu0
        %s511 = scalar_lea.vmem [#allocation6], 16
        %v512 = vld [vmem:[%s511] sm:$0xff]
        %v513 = vld [vmem:[%s511 + $0x8] sm:$0xff]
        %s514 = scalar_lea.vmem %s3, 1
        %v515 = vld [vmem:[%s514] sm:$0x1]
        %v517 = vlaneseq
        %v518 = vshrl.u32 %v517, 7
        %v519 = vsub.s32 0, %v518
        %v520 = vrot.slane %v515, %v519
        %522 = vmatprep.subr.mxu0 0.0
        %523 = vmatpush1.msra.mxu0 %v512
        %524 = vmatprep.subr.mxu0 0.0
        %525 = vmatpush1.msra.mxu0 %v513
        %526 = vmatprep.subr.mxu0 0.0
        %527 = vmatpush1.msra.mxu0 0.0
        %528 = vmatprep.subr.mxu0 0.0
        %529 = vmatpush1.msra.mxu0 0.0
        %530 = vmatprep.subr.mxu0 0.0
        %531 = vmatpush1.msra.mxu0 0.0
        %532 = vmatprep.subr.mxu0 0.0
        %533 = vmatpush1.msra.mxu0 0.0
        %534 = vmatprep.subr.mxu0 0.0
        %535 = vmatpush1.msra.mxu0 0.0
        %536 = vmatprep.subr.mxu0 0.0
        %537 = vmatpush1.msra.mxu0 0.0
        %538 = vmatprep.subr.mxu0 0.0
        %539 = vmatpush1.msra.mxu0 0.0
        %540 = vmatprep.subr.mxu0 0.0
        %541 = vmatpush1.msra.mxu0 0.0
        %542 = vmatprep.subr.mxu0 0.0
        %543 = vmatpush1.msra.mxu0 0.0
        %544 = vmatprep.subr.mxu0 0.0
        %545 = vmatpush1.msra.mxu0 0.0
        %546 = vmatprep.subr.mxu0 0.0
        %547 = vmatpush1.msra.mxu0 0.0
        %548 = vmatprep.subr.mxu0 0.0
        %549 = vmatpush1.msra.mxu0 0.0
        %550 = vmatprep.subr.mxu0 0.0
        %551 = vmatpush1.msra.mxu0 0.0
        %552 = vmatprep.subr.mxu0 0.0
        %553 = vmatpush1.msra.mxu0 0.0
        %554 = vmatprep.subr.mxu0 0.0
        %555 = vmatpush1.msra.mxu0 0.0
        %556 = vmatprep.subr.mxu0 0.0
        %557 = vmatpush1.msra.mxu0 0.0
        %558 = vmatprep.subr.mxu0 0.0
        %559 = vmatpush1.msra.mxu0 0.0
        %560 = vmatprep.subr.mxu0 0.0
        %561 = vmatpush1.msra.mxu0 0.0
        %562 = vmatprep.subr.mxu0 0.0
        %563 = vmatpush1.msra.mxu0 0.0
        %564 = vmatprep.subr.mxu0 0.0
        %565 = vmatpush1.msra.mxu0 0.0
        %566 = vmatprep.subr.mxu0 0.0
        %567 = vmatpush1.msra.mxu0 0.0
        %568 = vmatprep.subr.mxu0 0.0
        %569 = vmatpush1.msra.mxu0 0.0
        %570 = vmatprep.subr.mxu0 0.0
        %571 = vmatpush1.msra.mxu0 0.0
        %572 = vmatprep.subr.mxu0 0.0
        %573 = vmatpush1.msra.mxu0 0.0
        %574 = vmatprep.subr.mxu0 0.0
        %575 = vmatpush1.msra.mxu0 0.0
        %576 = vmatprep.subr.mxu0 0.0
        %577 = vmatpush1.msra.mxu0 0.0
        %578 = vmatprep.subr.mxu0 0.0
        %579 = vmatpush1.msra.mxu0 0.0
        %580 = vmatprep.subr.mxu0 0.0
        %581 = vmatpush1.msra.mxu0 0.0
        %582 = vmatprep.subr.mxu0 0.0
        %583 = vmatpush1.msra.mxu0 0.0
        %584 = vmatprep.subr.mxu0 0.0
        %585 = vmatpush1.msra.mxu0 0.0
        %586 = vmatprep.mubr.f32.mxu0 0.0
        %587 = vmatmul.mubr.f32.gmra.mrb[0].mxu0 %v383
        %v588 = vpop.f32.mrb[0].mxu0
        %v589 = vadd.f32 %v520, %v588
        %v590 = vpop.f32.mrb[0].mxu0
        %591 = vmatprep.mubr.f32.mxu0 0.0
        %592 = vmatmul.mubr.f32.gmra.mrb[0].mxu0 %v386
        %v593 = vpop.f32.mrb[0].mxu0
        %v594 = vadd.f32 %v520, %v593
        %v595 = vpop.f32.mrb[0].mxu0
        %596 = vmatprep.mubr.f32.mxu0 0.0
        %597 = vmatmul.mubr.f32.gmra.mrb[0].mxu0 %v389
        %v598 = vpop.f32.mrb[0].mxu0
        %v599 = vadd.f32 %v520, %v598
        %v600 = vpop.f32.mrb[0].mxu0
        %601 = vmatprep.mubr.f32.mxu0 0.0
        %602 = vmatmul.mubr.f32.gmra.mrb[0].mxu0 %v392
        %v603 = vpop.f32.mrb[0].mxu0
        %v604 = vadd.f32 %v520, %v603
        %v605 = vpop.f32.mrb[0].mxu0
        %606 = vmatprep.mubr.f32.mxu0 0.0
        %607 = vmatmul.mubr.f32.gmra.mrb[0].mxu0 %v395
        %v608 = vpop.f32.mrb[0].mxu0
        %v609 = vadd.f32 %v520, %v608
        %v610 = vpop.f32.mrb[0].mxu0
        %611 = vmatprep.mubr.f32.mxu0 0.0
        %612 = vmatmul.mubr.f32.gmra.mrb[0].mxu0 %v398
        %v613 = vpop.f32.mrb[0].mxu0
        %v614 = vadd.f32 %v520, %v613
        %v615 = vpop.f32.mrb[0].mxu0
        %616 = vmatprep.mubr.f32.mxu0 0.0
        %617 = vmatmul.mubr.f32.gmra.mrb[0].mxu0 %v401
        %v618 = vpop.f32.mrb[0].mxu0
        %v619 = vadd.f32 %v520, %v618
        %v620 = vpop.f32.mrb[0].mxu0
        %621 = vmatprep.mubr.f32.mxu0 0.0
        %622 = vmatmul.mubr.f32.gmra.mrb[0].mxu0 %v404
        %v623 = vpop.f32.mrb[0].mxu0
        %v624 = vadd.f32 %v520, %v623
        %v625 = vpop.f32.mrb[0].mxu0
        %626 = vdwg.mxu0
        %s627 = scalar_lea.vmem [#allocation6], 32
        %v628 = vld [vmem:[%s627] sm:$0xff]
        %v629 = vld [vmem:[%s627 + $0x8] sm:$0xff]
        %s630 = scalar_lea.vmem %s3, 2
        %v631 = vld [vmem:[%s630] sm:$0x1]
        %v633 = vlaneseq
        %v634 = vshrl.u32 %v633, 7
        %v635 = vsub.s32 0, %v634
        %v636 = vrot.slane %v631, %v635
        %638 = vmatprep.subr.mxu0 0.0
        %639 = vmatpush1.msra.mxu0 %v628
        %640 = vmatprep.subr.mxu0 0.0
        %641 = vmatpush1.msra.mxu0 %v629
        %642 = vmatprep.subr.mxu0 0.0
        %643 = vmatpush1.msra.mxu0 0.0
        %644 = vmatprep.subr.mxu0 0.0
        %645 = vmatpush1.msra.mxu0 0.0
        %646 = vmatprep.subr.mxu0 0.0
        %647 = vmatpush1.msra.mxu0 0.0
        %648 = vmatprep.subr.mxu0 0.0
        %649 = vmatpush1.msra.mxu0 0.0
        %650 = vmatprep.subr.mxu0 0.0
        %651 = vmatpush1.msra.mxu0 0.0
        %652 = vmatprep.subr.mxu0 0.0
        %653 = vmatpush1.msra.mxu0 0.0
        %654 = vmatprep.subr.mxu0 0.0
        %655 = vmatpush1.msra.mxu0 0.0
        %656 = vmatprep.subr.mxu0 0.0
        %657 = vmatpush1.msra.mxu0 0.0
        %658 = vmatprep.subr.mxu0 0.0
        %659 = vmatpush1.msra.mxu0 0.0
        %660 = vmatprep.subr.mxu0 0.0
        %661 = vmatpush1.msra.mxu0 0.0
        %662 = vmatprep.subr.mxu0 0.0
        %663 = vmatpush1.msra.mxu0 0.0
        %664 = vmatprep.subr.mxu0 0.0
        %665 = vmatpush1.msra.mxu0 0.0
        %666 = vmatprep.subr.mxu0 0.0
        %667 = vmatpush1.msra.mxu0 0.0
        %668 = vmatprep.subr.mxu0 0.0
        %669 = vmatpush1.msra.mxu0 0.0
        %670 = vmatprep.subr.mxu0 0.0
        %671 = vmatpush1.msra.mxu0 0.0
        %672 = vmatprep.subr.mxu0 0.0
        %673 = vmatpush1.msra.mxu0 0.0
        %674 = vmatprep.subr.mxu0 0.0
        %675 = vmatpush1.msra.mxu0 0.0
        %676 = vmatprep.subr.mxu0 0.0
        %677 = vmatpush1.msra.mxu0 0.0
        %678 = vmatprep.subr.mxu0 0.0
        %679 = vmatpush1.msra.mxu0 0.0
        %680 = vmatprep.subr.mxu0 0.0
        %681 = vmatpush1.msra.mxu0 0.0
        %682 = vmatprep.subr.mxu0 0.0
        %683 = vmatpush1.msra.mxu0 0.0
        %684 = vmatprep.subr.mxu0 0.0
        %685 = vmatpush1.msra.mxu0 0.0
        %686 = vmatprep.subr.mxu0 0.0
        %687 = vmatpush1.msra.mxu0 0.0
        %688 = vmatprep.subr.mxu0 0.0
        %689 = vmatpush1.msra.mxu0 0.0
        %690 = vmatprep.subr.mxu0 0.0
        %691 = vmatpush1.msra.mxu0 0.0
        %692 = vmatprep.subr.mxu0 0.0
        %693 = vmatpush1.msra.mxu0 0.0
        %694 = vmatprep.subr.mxu0 0.0
        %695 = vmatpush1.msra.mxu0 0.0
        %696 = vmatprep.subr.mxu0 0.0
        %697 = vmatpush1.msra.mxu0 0.0
        %698 = vmatprep.subr.mxu0 0.0
        %699 = vmatpush1.msra.mxu0 0.0
        %700 = vmatprep.subr.mxu0 0.0
        %701 = vmatpush1.msra.mxu0 0.0
        %702 = vmatprep.mubr.f32.mxu0 0.0
        %703 = vmatmul.mubr.f32.gmra.mrb[0].mxu0 %v383
        %v704 = vpop.f32.mrb[0].mxu0
        %v705 = vadd.f32 %v636, %v704
        %v706 = vpop.f32.mrb[0].mxu0
        %707 = vmatprep.mubr.f32.mxu0 0.0
        %708 = vmatmul.mubr.f32.gmra.mrb[0].mxu0 %v386
        %v709 = vpop.f32.mrb[0].mxu0
        %v710 = vadd.f32 %v636, %v709
        %v711 = vpop.f32.mrb[0].mxu0
        %712 = vmatprep.mubr.f32.mxu0 0.0
        %713 = vmatmul.mubr.f32.gmra.mrb[0].mxu0 %v389
        %v714 = vpop.f32.mrb[0].mxu0
        %v715 = vadd.f32 %v636, %v714
        %v716 = vpop.f32.mrb[0].mxu0
        %717 = vmatprep.mubr.f32.mxu0 0.0
        %718 = vmatmul.mubr.f32.gmra.mrb[0].mxu0 %v392
        %v719 = vpop.f32.mrb[0].mxu0
        %v720 = vadd.f32 %v636, %v719
        %v721 = vpop.f32.mrb[0].mxu0
        %722 = vmatprep.mubr.f32.mxu0 0.0
        %723 = vmatmul.mubr.f32.gmra.mrb[0].mxu0 %v395
        %v724 = vpop.f32.mrb[0].mxu0
        %v725 = vadd.f32 %v636, %v724
        %v726 = vpop.f32.mrb[0].mxu0
        %727 = vmatprep.mubr.f32.mxu0 0.0
        %728 = vmatmul.mubr.f32.gmra.mrb[0].mxu0 %v398
        %v729 = vpop.f32.mrb[0].mxu0
        %v730 = vadd.f32 %v636, %v729
        %v731 = vpop.f32.mrb[0].mxu0
        %732 = vmatprep.mubr.f32.mxu0 0.0
        %733 = vmatmul.mubr.f32.gmra.mrb[0].mxu0 %v401
        %v734 = vpop.f32.mrb[0].mxu0
        %v735 = vadd.f32 %v636, %v734
        %v736 = vpop.f32.mrb[0].mxu0
        %737 = vmatprep.mubr.f32.mxu0 0.0
        %738 = vmatmul.mubr.f32.gmra.mrb[0].mxu0 %v404
        %v739 = vpop.f32.mrb[0].mxu0
        %v740 = vadd.f32 %v636, %v739
        %v741 = vpop.f32.mrb[0].mxu0
        %742 = vdwg.mxu0
        %v743 = vld [vmem:[#allocation8] sm:$0xff]
        %v744 = vld [vmem:[#allocation8 + $0x8] sm:$0xff]
        %v745 = vld [vmem:[#allocation8 + $0x10] sm:$0xff]
        %v746 = vld [vmem:[#allocation8 + $0x18] sm:$0xff]
        %s747 = scalar_lea.vmem [#allocation8], 32
        %v748 = vld [vmem:[%s747] sm:$0xff]
        %v749 = vld [vmem:[%s747 + $0x8] sm:$0xff]
        %v750 = vld [vmem:[%s747 + $0x10] sm:$0xff]
        %v751 = vld [vmem:[%s747 + $0x18] sm:$0xff]
        %s752 = scalar_lea.vmem [#allocation8], 64
        %v753 = vld [vmem:[%s752] sm:$0xff]
        %v754 = vld [vmem:[%s752 + $0x8] sm:$0xff]
        %v755 = vld [vmem:[%s752 + $0x10] sm:$0xff]
        %v756 = vld [vmem:[%s752 + $0x18] sm:$0xff]
        %v757 = vld [vmem:[%s4] sm:$0x1]
        %v759 = vlaneseq
        %v760 = vshrl.u32 %v759, 7
        %v761 = vsub.s32 0, %v760
        %v762 = vrot.slane %v757, %v761
        %v764 = vld [vmem:[#allocation2] sm:$0xff]
        %vm765 = vcmask 261120
        %v767 = vsel %vm765, %v764, 0
        %769 = vmatprep.subr.mxu0 0.0
        %770 = vmatpush1.msra.mxu0 %v743
        %771 = vmatprep.subr.mxu0 0.0
        %772 = vmatpush1.msra.mxu0 %v744
        %773 = vmatprep.subr.mxu0 0.0
        %774 = vmatpush1.msra.mxu0 %v745
        %775 = vmatprep.subr.mxu0 0.0
        %776 = vmatpush1.msra.mxu0 %v746
        %777 = vmatprep.subr.mxu0 0.0
        %778 = vmatpush1.msra.mxu0 0.0
        %779 = vmatprep.subr.mxu0 0.0
        %780 = vmatpush1.msra.mxu0 0.0
        %781 = vmatprep.subr.mxu0 0.0
        %782 = vmatpush1.msra.mxu0 0.0
        %783 = vmatprep.subr.mxu0 0.0
        %784 = vmatpush1.msra.mxu0 0.0
        %785 = vmatprep.subr.mxu0 0.0
        %786 = vmatpush1.msra.mxu0 0.0
        %787 = vmatprep.subr.mxu0 0.0
        %788 = vmatpush1.msra.mxu0 0.0
        %789 = vmatprep.subr.mxu0 0.0
        %790 = vmatpush1.msra.mxu0 0.0
        %791 = vmatprep.subr.mxu0 0.0
        %792 = vmatpush1.msra.mxu0 0.0
        %793 = vmatprep.subr.mxu0 0.0
        %794 = vmatpush1.msra.mxu0 0.0
        %795 = vmatprep.subr.mxu0 0.0
        %796 = vmatpush1.msra.mxu0 0.0
        %797 = vmatprep.subr.mxu0 0.0
        %798 = vmatpush1.msra.mxu0 0.0
        %799 = vmatprep.subr.mxu0 0.0
        %800 = vmatpush1.msra.mxu0 0.0
        %801 = vmatprep.subr.mxu0 0.0
        %802 = vmatpush1.msra.mxu0 0.0
        %803 = vmatprep.subr.mxu0 0.0
        %804 = vmatpush1.msra.mxu0 0.0
        %805 = vmatprep.subr.mxu0 0.0
        %806 = vmatpush1.msra.mxu0 0.0
        %807 = vmatprep.subr.mxu0 0.0
        %808 = vmatpush1.msra.mxu0 0.0
        %809 = vmatprep.subr.mxu0 0.0
        %810 = vmatpush1.msra.mxu0 0.0
        %811 = vmatprep.subr.mxu0 0.0
        %812 = vmatpush1.msra.mxu0 0.0
        %813 = vmatprep.subr.mxu0 0.0
        %814 = vmatpush1.msra.mxu0 0.0
        %815 = vmatprep.subr.mxu0 0.0
        %816 = vmatpush1.msra.mxu0 0.0
        %817 = vmatprep.subr.mxu0 0.0
        %818 = vmatpush1.msra.mxu0 0.0
        %819 = vmatprep.subr.mxu0 0.0
        %820 = vmatpush1.msra.mxu0 0.0
        %821 = vmatprep.subr.mxu0 0.0
        %822 = vmatpush1.msra.mxu0 0.0
        %823 = vmatprep.subr.mxu0 0.0
        %824 = vmatpush1.msra.mxu0 0.0
        %825 = vmatprep.subr.mxu0 0.0
        %826 = vmatpush1.msra.mxu0 0.0
        %827 = vmatprep.subr.mxu0 0.0
        %828 = vmatpush1.msra.mxu0 0.0
        %829 = vmatprep.subr.mxu0 0.0
        %830 = vmatpush1.msra.mxu0 0.0
        %831 = vmatprep.subr.mxu0 0.0
        %832 = vmatpush1.msra.mxu0 0.0
        %833 = vmatprep.mubr.f32.mxu0 0.0
        %834 = vmatmul.mubr.f32.gmra.mrb[0].mxu0 %v767
        %v835 = vpop.f32.mrb[0].mxu0
        %v836 = vadd.f32 0.0, %v835
        %v837 = vpop.f32.mrb[0].mxu0
        %838 = vdwg.mxu0
        %839 = vmatprep.subr.mxu0 0.0
        %840 = vmatpush1.msra.mxu0 %v748
        %841 = vmatprep.subr.mxu0 0.0
        %842 = vmatpush1.msra.mxu0 %v749
        %843 = vmatprep.subr.mxu0 0.0
        %844 = vmatpush1.msra.mxu0 %v750
        %845 = vmatprep.subr.mxu0 0.0
        %846 = vmatpush1.msra.mxu0 %v751
        %847 = vmatprep.subr.mxu0 0.0
        %848 = vmatpush1.msra.mxu0 0.0
        %849 = vmatprep.subr.mxu0 0.0
        %850 = vmatpush1.msra.mxu0 0.0
        %851 = vmatprep.subr.mxu0 0.0
        %852 = vmatpush1.msra.mxu0 0.0
        %853 = vmatprep.subr.mxu0 0.0
        %854 = vmatpush1.msra.mxu0 0.0
        %855 = vmatprep.subr.mxu0 0.0
        %856 = vmatpush1.msra.mxu0 0.0
        %857 = vmatprep.subr.mxu0 0.0
        %858 = vmatpush1.msra.mxu0 0.0
        %859 = vmatprep.subr.mxu0 0.0
        %860 = vmatpush1.msra.mxu0 0.0
        %861 = vmatprep.subr.mxu0 0.0
        %862 = vmatpush1.msra.mxu0 0.0
        %863 = vmatprep.subr.mxu0 0.0
        %864 = vmatpush1.msra.mxu0 0.0
        %865 = vmatprep.subr.mxu0 0.0
        %866 = vmatpush1.msra.mxu0 0.0
        %867 = vmatprep.subr.mxu0 0.0
        %868 = vmatpush1.msra.mxu0 0.0
        %869 = vmatprep.subr.mxu0 0.0
        %870 = vmatpush1.msra.mxu0 0.0
        %871 = vmatprep.subr.mxu0 0.0
        %872 = vmatpush1.msra.mxu0 0.0
        %873 = vmatprep.subr.mxu0 0.0
        %874 = vmatpush1.msra.mxu0 0.0
        %875 = vmatprep.subr.mxu0 0.0
        %876 = vmatpush1.msra.mxu0 0.0
        %877 = vmatprep.subr.mxu0 0.0
        %878 = vmatpush1.msra.mxu0 0.0
        %879 = vmatprep.subr.mxu0 0.0
        %880 = vmatpush1.msra.mxu0 0.0
        %881 = vmatprep.subr.mxu0 0.0
        %882 = vmatpush1.msra.mxu0 0.0
        %883 = vmatprep.subr.mxu0 0.0
        %884 = vmatpush1.msra.mxu0 0.0
        %885 = vmatprep.subr.mxu0 0.0
        %886 = vmatpush1.msra.mxu0 0.0
        %887 = vmatprep.subr.mxu0 0.0
        %888 = vmatpush1.msra.mxu0 0.0
        %889 = vmatprep.subr.mxu0 0.0
        %890 = vmatpush1.msra.mxu0 0.0
        %891 = vmatprep.subr.mxu0 0.0
        %892 = vmatpush1.msra.mxu0 0.0
        %893 = vmatprep.subr.mxu0 0.0
        %894 = vmatpush1.msra.mxu0 0.0
        %895 = vmatprep.subr.mxu0 0.0
        %896 = vmatpush1.msra.mxu0 0.0
        %897 = vmatprep.subr.mxu0 0.0
        %898 = vmatpush1.msra.mxu0 0.0
        %899 = vmatprep.subr.mxu0 0.0
        %900 = vmatpush1.msra.mxu0 0.0
        %901 = vmatprep.subr.mxu0 0.0
        %902 = vmatpush1.msra.mxu0 0.0
        %903 = vmatprep.mubr.f32.mxu0 0.0
        %904 = vmatmul.mubr.f32.gmra.mrb[0].mxu0 %v767
        %v905 = vpop.f32.mrb[0].mxu0
        %v906 = vadd.f32 0.0, %v905
        %v907 = vpop.f32.mrb[0].mxu0
        %908 = vdwg.mxu0
        %v910 = vrot.slane %v836, 1
        %v911 = vrot.slane %v836, 2
        %v912 = vrot.slane %v836, 3
        %v913 = vrot.slane %v836, 4
        %v914 = vrot.slane %v836, 5
        %v915 = vrot.slane %v836, 6
        %v916 = vrot.slane %v836, 7
        %v925 = vadd.f32 %v473, %v836
        %v926 = vadd.f32 %v478, %v910
        %v927 = vadd.f32 %v483, %v911
        %v928 = vadd.f32 %v488, %v912
        %v929 = vadd.f32 %v493, %v913
        %v930 = vadd.f32 %v498, %v914
        %v931 = vadd.f32 %v503, %v915
        %v932 = vadd.f32 %v508, %v916
        %v933 = vxor.u32 %v925, 2147483648
        %v934 = vxor.u32 %v926, 2147483648
        %v935 = vxor.u32 %v927, 2147483648
        %v936 = vxor.u32 %v928, 2147483648
        %v937 = vxor.u32 %v929, 2147483648
        %v938 = vxor.u32 %v930, 2147483648
        %v939 = vxor.u32 %v931, 2147483648
        %v940 = vxor.u32 %v932, 2147483648
        %v941 = vmul.f32 %v933, 1.442695
        %v942 = vpow.pop %v941
        %v943 = vmul.f32 %v934, 1.442695
        %v944 = vpow.pop %v943
        %v945 = vmul.f32 %v935, 1.442695
        %v946 = vpow.pop %v945
        %v947 = vmul.f32 %v936, 1.442695
        %v948 = vpow.pop %v947
        %v949 = vmul.f32 %v937, 1.442695
        %v950 = vpow.pop %v949
        %v951 = vmul.f32 %v938, 1.442695
        %v952 = vpow.pop %v951
        %v953 = vmul.f32 %v939, 1.442695
        %v954 = vpow.pop %v953
        %v955 = vmul.f32 %v940, 1.442695
        %v956 = vpow.pop %v955
        %v957 = vadd.f32 %v942, 1.0
        %v958 = vadd.f32 %v944, 1.0
        %v959 = vadd.f32 %v946, 1.0
        %v960 = vadd.f32 %v948, 1.0
        %v961 = vadd.f32 %v950, 1.0
        %v962 = vadd.f32 %v952, 1.0
        %v963 = vadd.f32 %v954, 1.0
        %v964 = vadd.f32 %v956, 1.0
        %v965 = vrcp.pop %v957
        %v966 = vmul.f32 1.0, %v965
        %v967 = vrcp.pop %v958
        %v968 = vmul.f32 1.0, %v967
        %v969 = vrcp.pop %v959
        %v970 = vmul.f32 1.0, %v969
        %v971 = vrcp.pop %v960
        %v972 = vmul.f32 1.0, %v971
        %v973 = vrcp.pop %v961
        %v974 = vmul.f32 1.0, %v973
        %v975 = vrcp.pop %v962
        %v976 = vmul.f32 1.0, %v975
        %v977 = vrcp.pop %v963
        %v978 = vmul.f32 1.0, %v977
        %v979 = vrcp.pop %v964
        %v980 = vmul.f32 1.0, %v979
        %v982 = vrot.slane %v906, 1
        %v983 = vrot.slane %v906, 2
        %v984 = vrot.slane %v906, 3
        %v985 = vrot.slane %v906, 4
        %v986 = vrot.slane %v906, 5
        %v987 = vrot.slane %v906, 6
        %v988 = vrot.slane %v906, 7
        %v997 = vadd.f32 %v589, %v906
        %v998 = vadd.f32 %v594, %v982
        %v999 = vadd.f32 %v599, %v983
        %v1000 = vadd.f32 %v604, %v984
        %v1001 = vadd.f32 %v609, %v985
        %v1002 = vadd.f32 %v614, %v986
        %v1003 = vadd.f32 %v619, %v987
        %v1004 = vadd.f32 %v624, %v988
        %v1005 = vxor.u32 %v997, 2147483648
        %v1006 = vxor.u32 %v998, 2147483648
        %v1007 = vxor.u32 %v999, 2147483648
        %v1008 = vxor.u32 %v1000, 2147483648
        %v1009 = vxor.u32 %v1001, 2147483648
        %v1010 = vxor.u32 %v1002, 2147483648
        %v1011 = vxor.u32 %v1003, 2147483648
        %v1012 = vxor.u32 %v1004, 2147483648
        %v1013 = vmul.f32 %v1005, 1.442695
        %v1014 = vpow.pop %v1013
        %v1015 = vmul.f32 %v1006, 1.442695
        %v1016 = vpow.pop %v1015
        %v1017 = vmul.f32 %v1007, 1.442695
        %v1018 = vpow.pop %v1017
        %v1019 = vmul.f32 %v1008, 1.442695
        %v1020 = vpow.pop %v1019
        %v1021 = vmul.f32 %v1009, 1.442695
        %v1022 = vpow.pop %v1021
        %v1023 = vmul.f32 %v1010, 1.442695
        %v1024 = vpow.pop %v1023
        %v1025 = vmul.f32 %v1011, 1.442695
        %v1026 = vpow.pop %v1025
        %v1027 = vmul.f32 %v1012, 1.442695
        %v1028 = vpow.pop %v1027
        %v1029 = vadd.f32 %v1014, 1.0
        %v1030 = vadd.f32 %v1016, 1.0
        %v1031 = vadd.f32 %v1018, 1.0
        %v1032 = vadd.f32 %v1020, 1.0
        %v1033 = vadd.f32 %v1022, 1.0
        %v1034 = vadd.f32 %v1024, 1.0
        %v1035 = vadd.f32 %v1026, 1.0
        %v1036 = vadd.f32 %v1028, 1.0
        %v1037 = vrcp.pop %v1029
        %v1038 = vmul.f32 1.0, %v1037
        %v1039 = vrcp.pop %v1030
        %v1040 = vmul.f32 1.0, %v1039
        %v1041 = vrcp.pop %v1031
        %v1042 = vmul.f32 1.0, %v1041
        %v1043 = vrcp.pop %v1032
        %v1044 = vmul.f32 1.0, %v1043
        %v1045 = vrcp.pop %v1033
        %v1046 = vmul.f32 1.0, %v1045
        %v1047 = vrcp.pop %v1034
        %v1048 = vmul.f32 1.0, %v1047
        %v1049 = vrcp.pop %v1035
        %v1050 = vmul.f32 1.0, %v1049
        %v1051 = vrcp.pop %v1036
        %v1052 = vmul.f32 1.0, %v1051
        %1053 = vmatprep.subr.mxu0 0.0
        %1054 = vmatpush1.msra.mxu0 %v753
        %1055 = vmatprep.subr.mxu0 0.0
        %1056 = vmatpush1.msra.mxu0 %v754
        %1057 = vmatprep.subr.mxu0 0.0
        %1058 = vmatpush1.msra.mxu0 %v755
        %1059 = vmatprep.subr.mxu0 0.0
        %1060 = vmatpush1.msra.mxu0 %v756
        %1061 = vmatprep.subr.mxu0 0.0
        %1062 = vmatpush1.msra.mxu0 0.0
        %1063 = vmatprep.subr.mxu0 0.0
        %1064 = vmatpush1.msra.mxu0 0.0
        %1065 = vmatprep.subr.mxu0 0.0
        %1066 = vmatpush1.msra.mxu0 0.0
        %1067 = vmatprep.subr.mxu0 0.0
        %1068 = vmatpush1.msra.mxu0 0.0
        %1069 = vmatprep.subr.mxu0 0.0
        %1070 = vmatpush1.msra.mxu0 0.0
        %1071 = vmatprep.subr.mxu0 0.0
        %1072 = vmatpush1.msra.mxu0 0.0
        %1073 = vmatprep.subr.mxu0 0.0
        %1074 = vmatpush1.msra.mxu0 0.0
        %1075 = vmatprep.subr.mxu0 0.0
        %1076 = vmatpush1.msra.mxu0 0.0
        %1077 = vmatprep.subr.mxu0 0.0
        %1078 = vmatpush1.msra.mxu0 0.0
        %1079 = vmatprep.subr.mxu0 0.0
        %1080 = vmatpush1.msra.mxu0 0.0
        %1081 = vmatprep.subr.mxu0 0.0
        %1082 = vmatpush1.msra.mxu0 0.0
        %1083 = vmatprep.subr.mxu0 0.0
        %1084 = vmatpush1.msra.mxu0 0.0
        %1085 = vmatprep.subr.mxu0 0.0
        %1086 = vmatpush1.msra.mxu0 0.0
        %1087 = vmatprep.subr.mxu0 0.0
        %1088 = vmatpush1.msra.mxu0 0.0
        %1089 = vmatprep.subr.mxu0 0.0
        %1090 = vmatpush1.msra.mxu0 0.0
        %1091 = vmatprep.subr.mxu0 0.0
        %1092 = vmatpush1.msra.mxu0 0.0
        %1093 = vmatprep.subr.mxu0 0.0
        %1094 = vmatpush1.msra.mxu0 0.0
        %1095 = vmatprep.subr.mxu0 0.0
        %1096 = vmatpush1.msra.mxu0 0.0
        %1097 = vmatprep.subr.mxu0 0.0
        %1098 = vmatpush1.msra.mxu0 0.0
        %1099 = vmatprep.subr.mxu0 0.0
        %1100 = vmatpush1.msra.mxu0 0.0
        %1101 = vmatprep.subr.mxu0 0.0
        %1102 = vmatpush1.msra.mxu0 0.0
        %1103 = vmatprep.subr.mxu0 0.0
        %1104 = vmatpush1.msra.mxu0 0.0
        %1105 = vmatprep.subr.mxu0 0.0
        %1106 = vmatpush1.msra.mxu0 0.0
        %1107 = vmatprep.subr.mxu0 0.0
        %1108 = vmatpush1.msra.mxu0 0.0
        %1109 = vmatprep.subr.mxu0 0.0
        %1110 = vmatpush1.msra.mxu0 0.0
        %1111 = vmatprep.subr.mxu0 0.0
        %1112 = vmatpush1.msra.mxu0 0.0
        %1113 = vmatprep.subr.mxu0 0.0
        %1114 = vmatpush1.msra.mxu0 0.0
        %1115 = vmatprep.subr.mxu0 0.0
        %1116 = vmatpush1.msra.mxu0 0.0
        %1117 = vmatprep.mubr.f32.mxu0 0.0
        %1118 = vmatmul.mubr.f32.gmra.mrb[0].mxu0 %v767
        %v1119 = vpop.f32.mrb[0].mxu0
        %v1120 = vadd.f32 %v762, %v1119
        %v1121 = vpop.f32.mrb[0].mxu0
        %1122 = vdwg.mxu0
        %v1124 = vrot.slane %v1120, 1
        %v1125 = vrot.slane %v1120, 2
        %v1126 = vrot.slane %v1120, 3
        %v1127 = vrot.slane %v1120, 4
        %v1128 = vrot.slane %v1120, 5
        %v1129 = vrot.slane %v1120, 6
        %v1130 = vrot.slane %v1120, 7
        %v1139 = vmul.f32 %v966, %v1120
        %v1140 = vmul.f32 %v968, %v1124
        %v1141 = vmul.f32 %v970, %v1125
        %v1142 = vmul.f32 %v972, %v1126
        %v1143 = vmul.f32 %v974, %v1127
        %v1144 = vmul.f32 %v976, %v1128
        %v1145 = vmul.f32 %v978, %v1129
        %v1146 = vmul.f32 %v980, %v1130
        %v1147 = vadd.f32 %v705, %v1139
        %v1148 = vadd.f32 %v710, %v1140
        %v1149 = vadd.f32 %v715, %v1141
        %v1150 = vadd.f32 %v720, %v1142
        %v1151 = vadd.f32 %v725, %v1143
        %v1152 = vadd.f32 %v730, %v1144
        %v1153 = vadd.f32 %v735, %v1145
        %v1154 = vadd.f32 %v740, %v1146
        %v1155 = vtanh.pop %v1147
        %v1156 = vtanh.pop %v1148
        %v1157 = vtanh.pop %v1149
        %v1158 = vtanh.pop %v1150
        %v1159 = vtanh.pop %v1151
        %v1160 = vtanh.pop %v1152
        %v1161 = vtanh.pop %v1153
        %v1162 = vtanh.pop %v1154
        %v1163 = vsub.f32 1.0, %v1038
        %v1164 = vsub.f32 1.0, %v1040
        %v1165 = vsub.f32 1.0, %v1042
        %v1166 = vsub.f32 1.0, %v1044
        %v1167 = vsub.f32 1.0, %v1046
        %v1168 = vsub.f32 1.0, %v1048
        %v1169 = vsub.f32 1.0, %v1050
        %v1170 = vsub.f32 1.0, %v1052
        %v1171 = vmul.f32 %v1163, %v1155
        %v1172 = vmul.f32 %v1164, %v1156
        %v1173 = vmul.f32 %v1165, %v1157
        %v1174 = vmul.f32 %v1166, %v1158
        %v1175 = vmul.f32 %v1167, %v1159
        %v1176 = vmul.f32 %v1168, %v1160
        %v1177 = vmul.f32 %v1169, %v1161
        %v1178 = vmul.f32 %v1170, %v1162
        %v1179 = vrot.slane %v764, 1
        %v1180 = vrot.slane %v764, 2
        %v1181 = vrot.slane %v764, 3
        %v1182 = vrot.slane %v764, 4
        %v1183 = vrot.slane %v764, 5
        %v1184 = vrot.slane %v764, 6
        %v1185 = vrot.slane %v764, 7
        %v1194 = vmul.f32 %v1038, %v764
        %v1195 = vmul.f32 %v1040, %v1179
        %v1196 = vmul.f32 %v1042, %v1180
        %v1197 = vmul.f32 %v1044, %v1181
        %v1198 = vmul.f32 %v1046, %v1182
        %v1199 = vmul.f32 %v1048, %v1183
        %v1200 = vmul.f32 %v1050, %v1184
        %v1201 = vmul.f32 %v1052, %v1185
        %v1202 = vadd.f32 %v1171, %v1194
        %v1203 = vadd.f32 %v1172, %v1195
        %v1204 = vadd.f32 %v1173, %v1196
        %v1205 = vadd.f32 %v1174, %v1197
        %v1206 = vadd.f32 %v1175, %v1198
        %v1207 = vadd.f32 %v1176, %v1199
        %v1208 = vadd.f32 %v1177, %v1200
        %v1209 = vadd.f32 %v1178, %v1201
        %v1218 = vrot.slane %v1203, 7
        %vm1219 = vcmask 1041409
        %v1220 = vsel %vm1219, %v1218, %v1202
        %v1221 = vrot.slane %v1204, 6
        %vm1222 = vcmask 1042434
        %v1223 = vsel %vm1222, %v1221, %v1220
        %v1224 = vrot.slane %v1205, 5
        %vm1225 = vcmask 1043459
        %v1226 = vsel %vm1225, %v1224, %v1223
        %v1227 = vrot.slane %v1206, 4
        %vm1228 = vcmask 1044484
        %v1229 = vsel %vm1228, %v1227, %v1226
        %v1230 = vrot.slane %v1207, 3
        %vm1231 = vcmask 1045509
        %v1232 = vsel %vm1231, %v1230, %v1229
        %v1233 = vrot.slane %v1208, 2
        %vm1234 = vcmask 1046534
        %v1235 = vsel %vm1234, %v1233, %v1232
        %v1236 = vrot.slane %v1209, 1
        %vm1237 = vcmask 1047559
        %v1238 = vsel %vm1237, %v1236, %v1235
        %v1239 = vsel %vm765, %v1238, 0
        %1241 = vmatprep.subr.mxu0 0.0
        %1242 = vmatpush1.msra.mxu0 %v743
        %1243 = vmatprep.subr.mxu0 0.0
        %1244 = vmatpush1.msra.mxu0 %v744
        %1245 = vmatprep.subr.mxu0 0.0
        %1246 = vmatpush1.msra.mxu0 %v745
        %1247 = vmatprep.subr.mxu0 0.0
        %1248 = vmatpush1.msra.mxu0 %v746
        %1249 = vmatprep.subr.mxu0 0.0
        %1250 = vmatpush1.msra.mxu0 0.0
        %1251 = vmatprep.subr.mxu0 0.0
        %1252 = vmatpush1.msra.mxu0 0.0
        %1253 = vmatprep.subr.mxu0 0.0
        %1254 = vmatpush1.msra.mxu0 0.0
        %1255 = vmatprep.subr.mxu0 0.0
        %1256 = vmatpush1.msra.mxu0 0.0
        %1257 = vmatprep.subr.mxu0 0.0
        %1258 = vmatpush1.msra.mxu0 0.0
        %1259 = vmatprep.subr.mxu0 0.0
        %1260 = vmatpush1.msra.mxu0 0.0
        %1261 = vmatprep.subr.mxu0 0.0
        %1262 = vmatpush1.msra.mxu0 0.0
        %1263 = vmatprep.subr.mxu0 0.0
        %1264 = vmatpush1.msra.mxu0 0.0
        %1265 = vmatprep.subr.mxu0 0.0
        %1266 = vmatpush1.msra.mxu0 0.0
        %1267 = vmatprep.subr.mxu0 0.0
        %1268 = vmatpush1.msra.mxu0 0.0
        %1269 = vmatprep.subr.mxu0 0.0
        %1270 = vmatpush1.msra.mxu0 0.0
        %1271 = vmatprep.subr.mxu0 0.0
        %1272 = vmatpush1.msra.mxu0 0.0
        %1273 = vmatprep.subr.mxu0 0.0
        %1274 = vmatpush1.msra.mxu0 0.0
        %1275 = vmatprep.subr.mxu0 0.0
        %1276 = vmatpush1.msra.mxu0 0.0
        %1277 = vmatprep.subr.mxu0 0.0
        %1278 = vmatpush1.msra.mxu0 0.0
        %1279 = vmatprep.subr.mxu0 0.0
        %1280 = vmatpush1.msra.mxu0 0.0
        %1281 = vmatprep.subr.mxu0 0.0
        %1282 = vmatpush1.msra.mxu0 0.0
        %1283 = vmatprep.subr.mxu0 0.0
        %1284 = vmatpush1.msra.mxu0 0.0
        %1285 = vmatprep.subr.mxu0 0.0
        %1286 = vmatpush1.msra.mxu0 0.0
        %1287 = vmatprep.subr.mxu0 0.0
        %1288 = vmatpush1.msra.mxu0 0.0
        %1289 = vmatprep.subr.mxu0 0.0
        %1290 = vmatpush1.msra.mxu0 0.0
        %1291 = vmatprep.subr.mxu0 0.0
        %1292 = vmatpush1.msra.mxu0 0.0
        %1293 = vmatprep.subr.mxu0 0.0
        %1294 = vmatpush1.msra.mxu0 0.0
        %1295 = vmatprep.subr.mxu0 0.0
        %1296 = vmatpush1.msra.mxu0 0.0
        %1297 = vmatprep.subr.mxu0 0.0
        %1298 = vmatpush1.msra.mxu0 0.0
        %1299 = vmatprep.subr.mxu0 0.0
        %1300 = vmatpush1.msra.mxu0 0.0
        %1301 = vmatprep.subr.mxu0 0.0
        %1302 = vmatpush1.msra.mxu0 0.0
        %1303 = vmatprep.subr.mxu0 0.0
        %1304 = vmatpush1.msra.mxu0 0.0
        %1305 = vmatprep.mubr.f32.mxu0 0.0
        %1306 = vmatmul.mubr.f32.gmra.mrb[0].mxu0 %v1239
        %v1307 = vpop.f32.mrb[0].mxu0
        %v1308 = vadd.f32 0.0, %v1307
        %v1309 = vpop.f32.mrb[0].mxu0
        %1310 = vdwg.mxu0
        %1311 = vmatprep.subr.mxu0 0.0
        %1312 = vmatpush1.msra.mxu0 %v748
        %1313 = vmatprep.subr.mxu0 0.0
        %1314 = vmatpush1.msra.mxu0 %v749
        %1315 = vmatprep.subr.mxu0 0.0
        %1316 = vmatpush1.msra.mxu0 %v750
        %1317 = vmatprep.subr.mxu0 0.0
        %1318 = vmatpush1.msra.mxu0 %v751
        %1319 = vmatprep.subr.mxu0 0.0
        %1320 = vmatpush1.msra.mxu0 0.0
        %1321 = vmatprep.subr.mxu0 0.0
        %1322 = vmatpush1.msra.mxu0 0.0
        %1323 = vmatprep.subr.mxu0 0.0
        %1324 = vmatpush1.msra.mxu0 0.0
        %1325 = vmatprep.subr.mxu0 0.0
        %1326 = vmatpush1.msra.mxu0 0.0
        %1327 = vmatprep.subr.mxu0 0.0
        %1328 = vmatpush1.msra.mxu0 0.0
        %1329 = vmatprep.subr.mxu0 0.0
        %1330 = vmatpush1.msra.mxu0 0.0
        %1331 = vmatprep.subr.mxu0 0.0
        %1332 = vmatpush1.msra.mxu0 0.0
        %1333 = vmatprep.subr.mxu0 0.0
        %1334 = vmatpush1.msra.mxu0 0.0
        %1335 = vmatprep.subr.mxu0 0.0
        %1336 = vmatpush1.msra.mxu0 0.0
        %1337 = vmatprep.subr.mxu0 0.0
        %1338 = vmatpush1.msra.mxu0 0.0
        %1339 = vmatprep.subr.mxu0 0.0
        %1340 = vmatpush1.msra.mxu0 0.0
        %1341 = vmatprep.subr.mxu0 0.0
        %1342 = vmatpush1.msra.mxu0 0.0
        %1343 = vmatprep.subr.mxu0 0.0
        %1344 = vmatpush1.msra.mxu0 0.0
        %1345 = vmatprep.subr.mxu0 0.0
        %1346 = vmatpush1.msra.mxu0 0.0
        %1347 = vmatprep.subr.mxu0 0.0
        %1348 = vmatpush1.msra.mxu0 0.0
        %1349 = vmatprep.subr.mxu0 0.0
        %1350 = vmatpush1.msra.mxu0 0.0
        %1351 = vmatprep.subr.mxu0 0.0
        %1352 = vmatpush1.msra.mxu0 0.0
        %1353 = vmatprep.subr.mxu0 0.0
        %1354 = vmatpush1.msra.mxu0 0.0
        %1355 = vmatprep.subr.mxu0 0.0
        %1356 = vmatpush1.msra.mxu0 0.0
        %1357 = vmatprep.subr.mxu0 0.0
        %1358 = vmatpush1.msra.mxu0 0.0
        %1359 = vmatprep.subr.mxu0 0.0
        %1360 = vmatpush1.msra.mxu0 0.0
        %1361 = vmatprep.subr.mxu0 0.0
        %1362 = vmatpush1.msra.mxu0 0.0
        %1363 = vmatprep.subr.mxu0 0.0
        %1364 = vmatpush1.msra.mxu0 0.0
        %1365 = vmatprep.subr.mxu0 0.0
        %1366 = vmatpush1.msra.mxu0 0.0
        %1367 = vmatprep.subr.mxu0 0.0
        %1368 = vmatpush1.msra.mxu0 0.0
        %1369 = vmatprep.subr.mxu0 0.0
        %1370 = vmatpush1.msra.mxu0 0.0
        %1371 = vmatprep.subr.mxu0 0.0
        %1372 = vmatpush1.msra.mxu0 0.0
        %1373 = vmatprep.subr.mxu0 0.0
        %1374 = vmatpush1.msra.mxu0 0.0
        %1375 = vmatprep.mubr.f32.mxu0 0.0
        %1376 = vmatmul.mubr.f32.gmra.mrb[0].mxu0 %v1239
        %v1377 = vpop.f32.mrb[0].mxu0
        %v1378 = vadd.f32 0.0, %v1377
        %v1379 = vpop.f32.mrb[0].mxu0
        %1380 = vdwg.mxu0
        %v1382 = vrot.slane %v1308, 7
        %v1383 = vrot.slane %v1308, 1
        %v1384 = vrot.slane %v1308, 2
        %v1385 = vrot.slane %v1308, 3
        %v1386 = vrot.slane %v1308, 4
        %v1387 = vrot.slane %v1308, 5
        %v1388 = vrot.slane %v1308, 6
        %v1397 = vadd.f32 %v473, %v1382
        %v1398 = vadd.f32 %v478, %v1308
        %v1399 = vadd.f32 %v483, %v1383
        %v1400 = vadd.f32 %v488, %v1384
        %v1401 = vadd.f32 %v493, %v1385
        %v1402 = vadd.f32 %v498, %v1386
        %v1403 = vadd.f32 %v503, %v1387
        %v1404 = vadd.f32 %v508, %v1388
        %v1405 = vxor.u32 %v1397, 2147483648
        %v1406 = vxor.u32 %v1398, 2147483648
        %v1407 = vxor.u32 %v1399, 2147483648
        %v1408 = vxor.u32 %v1400, 2147483648
        %v1409 = vxor.u32 %v1401, 2147483648
        %v1410 = vxor.u32 %v1402, 2147483648
        %v1411 = vxor.u32 %v1403, 2147483648
        %v1412 = vxor.u32 %v1404, 2147483648
        %v1413 = vmul.f32 %v1405, 1.442695
        %v1414 = vpow.pop %v1413
        %v1415 = vmul.f32 %v1406, 1.442695
        %v1416 = vpow.pop %v1415
        %v1417 = vmul.f32 %v1407, 1.442695
        %v1418 = vpow.pop %v1417
        %v1419 = vmul.f32 %v1408, 1.442695
        %v1420 = vpow.pop %v1419
        %v1421 = vmul.f32 %v1409, 1.442695
        %v1422 = vpow.pop %v1421
        %v1423 = vmul.f32 %v1410, 1.442695
        %v1424 = vpow.pop %v1423
        %v1425 = vmul.f32 %v1411, 1.442695
        %v1426 = vpow.pop %v1425
        %v1427 = vmul.f32 %v1412, 1.442695
        %v1428 = vpow.pop %v1427
        %v1429 = vadd.f32 %v1414, 1.0
        %v1430 = vadd.f32 %v1416, 1.0
        %v1431 = vadd.f32 %v1418, 1.0
        %v1432 = vadd.f32 %v1420, 1.0
        %v1433 = vadd.f32 %v1422, 1.0
        %v1434 = vadd.f32 %v1424, 1.0
        %v1435 = vadd.f32 %v1426, 1.0
        %v1436 = vadd.f32 %v1428, 1.0
        %v1437 = vrcp.pop %v1429
        %v1438 = vmul.f32 1.0, %v1437
        %v1439 = vrcp.pop %v1430
        %v1440 = vmul.f32 1.0, %v1439
        %v1441 = vrcp.pop %v1431
        %v1442 = vmul.f32 1.0, %v1441
        %v1443 = vrcp.pop %v1432
        %v1444 = vmul.f32 1.0, %v1443
        %v1445 = vrcp.pop %v1433
        %v1446 = vmul.f32 1.0, %v1445
        %v1447 = vrcp.pop %v1434
        %v1448 = vmul.f32 1.0, %v1447
        %v1449 = vrcp.pop %v1435
        %v1450 = vmul.f32 1.0, %v1449
        %v1451 = vrcp.pop %v1436
        %v1452 = vmul.f32 1.0, %v1451
        %v1454 = vrot.slane %v1378, 7
        %v1455 = vrot.slane %v1378, 1
        %v1456 = vrot.slane %v1378, 2
        %v1457 = vrot.slane %v1378, 3
        %v1458 = vrot.slane %v1378, 4
        %v1459 = vrot.slane %v1378, 5
        %v1460 = vrot.slane %v1378, 6
        %v1469 = vadd.f32 %v589, %v1454
        %v1470 = vadd.f32 %v594, %v1378
        %v1471 = vadd.f32 %v599, %v1455
        %v1472 = vadd.f32 %v604, %v1456
        %v1473 = vadd.f32 %v609, %v1457
        %v1474 = vadd.f32 %v614, %v1458
        %v1475 = vadd.f32 %v619, %v1459
        %v1476 = vadd.f32 %v624, %v1460
        %v1477 = vxor.u32 %v1469, 2147483648
        %v1478 = vxor.u32 %v1470, 2147483648
        %v1479 = vxor.u32 %v1471, 2147483648
        %v1480 = vxor.u32 %v1472, 2147483648
        %v1481 = vxor.u32 %v1473, 2147483648
        %v1482 = vxor.u32 %v1474, 2147483648
        %v1483 = vxor.u32 %v1475, 2147483648
        %v1484 = vxor.u32 %v1476, 2147483648
        %v1485 = vmul.f32 %v1477, 1.442695
        %v1486 = vpow.pop %v1485
        %v1487 = vmul.f32 %v1478, 1.442695
        %v1488 = vpow.pop %v1487
        %v1489 = vmul.f32 %v1479, 1.442695
        %v1490 = vpow.pop %v1489
        %v1491 = vmul.f32 %v1480, 1.442695
        %v1492 = vpow.pop %v1491
        %v1493 = vmul.f32 %v1481, 1.442695
        %v1494 = vpow.pop %v1493
        %v1495 = vmul.f32 %v1482, 1.442695
        %v1496 = vpow.pop %v1495
        %v1497 = vmul.f32 %v1483, 1.442695
        %v1498 = vpow.pop %v1497
        %v1499 = vmul.f32 %v1484, 1.442695
        %v1500 = vpow.pop %v1499
        %v1501 = vadd.f32 %v1486, 1.0
        %v1502 = vadd.f32 %v1488, 1.0
        %v1503 = vadd.f32 %v1490, 1.0
        %v1504 = vadd.f32 %v1492, 1.0
        %v1505 = vadd.f32 %v1494, 1.0
        %v1506 = vadd.f32 %v1496, 1.0
        %v1507 = vadd.f32 %v1498, 1.0
        %v1508 = vadd.f32 %v1500, 1.0
        %v1509 = vrcp.pop %v1501
        %v1510 = vmul.f32 1.0, %v1509
        %v1511 = vrcp.pop %v1502
        %v1512 = vmul.f32 1.0, %v1511
        %v1513 = vrcp.pop %v1503
        %v1514 = vmul.f32 1.0, %v1513
        %v1515 = vrcp.pop %v1504
        %v1516 = vmul.f32 1.0, %v1515
        %v1517 = vrcp.pop %v1505
        %v1518 = vmul.f32 1.0, %v1517
        %v1519 = vrcp.pop %v1506
        %v1520 = vmul.f32 1.0, %v1519
        %v1521 = vrcp.pop %v1507
        %v1522 = vmul.f32 1.0, %v1521
        %v1523 = vrcp.pop %v1508
        %v1524 = vmul.f32 1.0, %v1523
        %1525 = vmatprep.subr.mxu0 0.0
        %1526 = vmatpush1.msra.mxu0 %v753
        %1527 = vmatprep.subr.mxu0 0.0
        %1528 = vmatpush1.msra.mxu0 %v754
        %1529 = vmatprep.subr.mxu0 0.0
        %1530 = vmatpush1.msra.mxu0 %v755
        %1531 = vmatprep.subr.mxu0 0.0
        %1532 = vmatpush1.msra.mxu0 %v756
        %1533 = vmatprep.subr.mxu0 0.0
        %1534 = vmatpush1.msra.mxu0 0.0
        %1535 = vmatprep.subr.mxu0 0.0
        %1536 = vmatpush1.msra.mxu0 0.0
        %1537 = vmatprep.subr.mxu0 0.0
        %1538 = vmatpush1.msra.mxu0 0.0
        %1539 = vmatprep.subr.mxu0 0.0
        %1540 = vmatpush1.msra.mxu0 0.0
        %1541 = vmatprep.subr.mxu0 0.0
        %1542 = vmatpush1.msra.mxu0 0.0
        %1543 = vmatprep.subr.mxu0 0.0
        %1544 = vmatpush1.msra.mxu0 0.0
        %1545 = vmatprep.subr.mxu0 0.0
        %1546 = vmatpush1.msra.mxu0 0.0
        %1547 = vmatprep.subr.mxu0 0.0
        %1548 = vmatpush1.msra.mxu0 0.0
        %1549 = vmatprep.subr.mxu0 0.0
        %1550 = vmatpush1.msra.mxu0 0.0
        %1551 = vmatprep.subr.mxu0 0.0
        %1552 = vmatpush1.msra.mxu0 0.0
        %1553 = vmatprep.subr.mxu0 0.0
        %1554 = vmatpush1.msra.mxu0 0.0
        %1555 = vmatprep.subr.mxu0 0.0
        %1556 = vmatpush1.msra.mxu0 0.0
        %1557 = vmatprep.subr.mxu0 0.0
        %1558 = vmatpush1.msra.mxu0 0.0
        %1559 = vmatprep.subr.mxu0 0.0
        %1560 = vmatpush1.msra.mxu0 0.0
        %1561 = vmatprep.subr.mxu0 0.0
        %1562 = vmatpush1.msra.mxu0 0.0
        %1563 = vmatprep.subr.mxu0 0.0
        %1564 = vmatpush1.msra.mxu0 0.0
        %1565 = vmatprep.subr.mxu0 0.0
        %1566 = vmatpush1.msra.mxu0 0.0
        %1567 = vmatprep.subr.mxu0 0.0
        %1568 = vmatpush1.msra.mxu0 0.0
        %1569 = vmatprep.subr.mxu0 0.0
        %1570 = vmatpush1.msra.mxu0 0.0
        %1571 = vmatprep.subr.mxu0 0.0
        %1572 = vmatpush1.msra.mxu0 0.0
        %1573 = vmatprep.subr.mxu0 0.0
        %1574 = vmatpush1.msra.mxu0 0.0
        %1575 = vmatprep.subr.mxu0 0.0
        %1576 = vmatpush1.msra.mxu0 0.0
        %1577 = vmatprep.subr.mxu0 0.0
        %1578 = vmatpush1.msra.mxu0 0.0
        %1579 = vmatprep.subr.mxu0 0.0
        %1580 = vmatpush1.msra.mxu0 0.0
        %1581 = vmatprep.subr.mxu0 0.0
        %1582 = vmatpush1.msra.mxu0 0.0
        %1583 = vmatprep.subr.mxu0 0.0
        %1584 = vmatpush1.msra.mxu0 0.0
        %1585 = vmatprep.subr.mxu0 0.0
        %1586 = vmatpush1.msra.mxu0 0.0
        %1587 = vmatprep.subr.mxu0 0.0
        %1588 = vmatpush1.msra.mxu0 0.0
        %1589 = vmatprep.mubr.f32.mxu0 0.0
        %1590 = vmatmul.mubr.f32.gmra.mrb[0].mxu0 %v1239
        %v1591 = vpop.f32.mrb[0].mxu0
        %v1592 = vadd.f32 %v762, %v1591
        %v1593 = vpop.f32.mrb[0].mxu0
        %1594 = vdwg.mxu0
        %v1596 = vrot.slane %v1592, 7
        %v1597 = vrot.slane %v1592, 1
        %v1598 = vrot.slane %v1592, 2
        %v1599 = vrot.slane %v1592, 3
        %v1600 = vrot.slane %v1592, 4
        %v1601 = vrot.slane %v1592, 5
        %v1602 = vrot.slane %v1592, 6
        %v1611 = vmul.f32 %v1438, %v1596
        %v1612 = vmul.f32 %v1440, %v1592
        %v1613 = vmul.f32 %v1442, %v1597
        %v1614 = vmul.f32 %v1444, %v1598
        %v1615 = vmul.f32 %v1446, %v1599
        %v1616 = vmul.f32 %v1448, %v1600
        %v1617 = vmul.f32 %v1450, %v1601
        %v1618 = vmul.f32 %v1452, %v1602
        %v1619 = vadd.f32 %v705, %v1611
        %v1620 = vadd.f32 %v710, %v1612
        %v1621 = vadd.f32 %v715, %v1613
        %v1622 = vadd.f32 %v720, %v1614
        %v1623 = vadd.f32 %v725, %v1615
        %v1624 = vadd.f32 %v730, %v1616
        %v1625 = vadd.f32 %v735, %v1617
        %v1626 = vadd.f32 %v740, %v1618
        %v1627 = vtanh.pop %v1619
        %v1628 = vtanh.pop %v1620
        %v1629 = vtanh.pop %v1621
        %v1630 = vtanh.pop %v1622
        %v1631 = vtanh.pop %v1623
        %v1632 = vtanh.pop %v1624
        %v1633 = vtanh.pop %v1625
        %v1634 = vtanh.pop %v1626
        %v1635 = vsub.f32 1.0, %v1510
        %v1636 = vsub.f32 1.0, %v1512
        %v1637 = vsub.f32 1.0, %v1514
        %v1638 = vsub.f32 1.0, %v1516
        %v1639 = vsub.f32 1.0, %v1518
        %v1640 = vsub.f32 1.0, %v1520
        %v1641 = vsub.f32 1.0, %v1522
        %v1642 = vsub.f32 1.0, %v1524
        %v1643 = vmul.f32 %v1635, %v1627
        %v1644 = vmul.f32 %v1636, %v1628
        %v1645 = vmul.f32 %v1637, %v1629
        %v1646 = vmul.f32 %v1638, %v1630
        %v1647 = vmul.f32 %v1639, %v1631
        %v1648 = vmul.f32 %v1640, %v1632
        %v1649 = vmul.f32 %v1641, %v1633
        %v1650 = vmul.f32 %v1642, %v1634
        %v1651 = vrot.slane %v1202, 7
        %v1652 = vrot.slane %v1204, 7
        %v1653 = vrot.slane %v1205, 7
        %v1654 = vrot.slane %v1206, 7
        %v1655 = vrot.slane %v1207, 7
        %v1656 = vrot.slane %v1208, 7
        %v1657 = vrot.slane %v1209, 7
        %v1666 = vmul.f32 %v1510, %v1651
        %v1667 = vmul.f32 %v1512, %v1218
        %v1668 = vmul.f32 %v1514, %v1652
        %v1669 = vmul.f32 %v1516, %v1653
        %v1670 = vmul.f32 %v1518, %v1654
        %v1671 = vmul.f32 %v1520, %v1655
        %v1672 = vmul.f32 %v1522, %v1656
        %v1673 = vmul.f32 %v1524, %v1657
        %v1674 = vadd.f32 %v1643, %v1666
        %v1675 = vadd.f32 %v1644, %v1667
        %v1676 = vadd.f32 %v1645, %v1668
        %v1677 = vadd.f32 %v1646, %v1669
        %v1678 = vadd.f32 %v1647, %v1670
        %v1679 = vadd.f32 %v1648, %v1671
        %v1680 = vadd.f32 %v1649, %v1672
        %v1681 = vadd.f32 %v1650, %v1673
        %v1690 = vrot.slane %v1674, 1
        %v1691 = vsel %vm1219, %v1675, %v1690
        %v1692 = vrot.slane %v1676, 7
        %v1693 = vsel %vm1222, %v1692, %v1691
        %v1694 = vrot.slane %v1677, 6
        %v1695 = vsel %vm1225, %v1694, %v1693
        %v1696 = vrot.slane %v1678, 5
        %v1697 = vsel %vm1228, %v1696, %v1695
        %v1698 = vrot.slane %v1679, 4
        %v1699 = vsel %vm1231, %v1698, %v1697
        %v1700 = vrot.slane %v1680, 3
        %v1701 = vsel %vm1234, %v1700, %v1699
        %v1702 = vrot.slane %v1681, 2
        %v1703 = vsel %vm1237, %v1702, %v1701
        %v1704 = vsel %vm765, %v1703, 0
        %1706 = vmatprep.subr.mxu0 0.0
        %1707 = vmatpush1.msra.mxu0 %v743
        %1708 = vmatprep.subr.mxu0 0.0
        %1709 = vmatpush1.msra.mxu0 %v744
        %1710 = vmatprep.subr.mxu0 0.0
        %1711 = vmatpush1.msra.mxu0 %v745
        %1712 = vmatprep.subr.mxu0 0.0
        %1713 = vmatpush1.msra.mxu0 %v746
        %1714 = vmatprep.subr.mxu0 0.0
        %1715 = vmatpush1.msra.mxu0 0.0
        %1716 = vmatprep.subr.mxu0 0.0
        %1717 = vmatpush1.msra.mxu0 0.0
        %1718 = vmatprep.subr.mxu0 0.0
        %1719 = vmatpush1.msra.mxu0 0.0
        %1720 = vmatprep.subr.mxu0 0.0
        %1721 = vmatpush1.msra.mxu0 0.0
        %1722 = vmatprep.subr.mxu0 0.0
        %1723 = vmatpush1.msra.mxu0 0.0
        %1724 = vmatprep.subr.mxu0 0.0
        %1725 = vmatpush1.msra.mxu0 0.0
        %1726 = vmatprep.subr.mxu0 0.0
        %1727 = vmatpush1.msra.mxu0 0.0
        %1728 = vmatprep.subr.mxu0 0.0
        %1729 = vmatpush1.msra.mxu0 0.0
        %1730 = vmatprep.subr.mxu0 0.0
        %1731 = vmatpush1.msra.mxu0 0.0
        %1732 = vmatprep.subr.mxu0 0.0
        %1733 = vmatpush1.msra.mxu0 0.0
        %1734 = vmatprep.subr.mxu0 0.0
        %1735 = vmatpush1.msra.mxu0 0.0
        %1736 = vmatprep.subr.mxu0 0.0
        %1737 = vmatpush1.msra.mxu0 0.0
        %1738 = vmatprep.subr.mxu0 0.0
        %1739 = vmatpush1.msra.mxu0 0.0
        %1740 = vmatprep.subr.mxu0 0.0
        %1741 = vmatpush1.msra.mxu0 0.0
        %1742 = vmatprep.subr.mxu0 0.0
        %1743 = vmatpush1.msra.mxu0 0.0
        %1744 = vmatprep.subr.mxu0 0.0
        %1745 = vmatpush1.msra.mxu0 0.0
        %1746 = vmatprep.subr.mxu0 0.0
        %1747 = vmatpush1.msra.mxu0 0.0
        %1748 = vmatprep.subr.mxu0 0.0
        %1749 = vmatpush1.msra.mxu0 0.0
        %1750 = vmatprep.subr.mxu0 0.0
        %1751 = vmatpush1.msra.mxu0 0.0
        %1752 = vmatprep.subr.mxu0 0.0
        %1753 = vmatpush1.msra.mxu0 0.0
        %1754 = vmatprep.subr.mxu0 0.0
        %1755 = vmatpush1.msra.mxu0 0.0
        %1756 = vmatprep.subr.mxu0 0.0
        %1757 = vmatpush1.msra.mxu0 0.0
        %1758 = vmatprep.subr.mxu0 0.0
        %1759 = vmatpush1.msra.mxu0 0.0
        %1760 = vmatprep.subr.mxu0 0.0
        %1761 = vmatpush1.msra.mxu0 0.0
        %1762 = vmatprep.subr.mxu0 0.0
        %1763 = vmatpush1.msra.mxu0 0.0
        %1764 = vmatprep.subr.mxu0 0.0
        %1765 = vmatpush1.msra.mxu0 0.0
        %1766 = vmatprep.subr.mxu0 0.0
        %1767 = vmatpush1.msra.mxu0 0.0
        %1768 = vmatprep.subr.mxu0 0.0
        %1769 = vmatpush1.msra.mxu0 0.0
        %1770 = vmatprep.mubr.f32.mxu0 0.0
        %1771 = vmatmul.mubr.f32.gmra.mrb[0].mxu0 %v1704
        %v1772 = vpop.f32.mrb[0].mxu0
        %v1773 = vadd.f32 0.0, %v1772
        %v1774 = vpop.f32.mrb[0].mxu0
        %1775 = vdwg.mxu0
        %1776 = vmatprep.subr.mxu0 0.0
        %1777 = vmatpush1.msra.mxu0 %v748
        %1778 = vmatprep.subr.mxu0 0.0
        %1779 = vmatpush1.msra.mxu0 %v749
        %1780 = vmatprep.subr.mxu0 0.0
        %1781 = vmatpush1.msra.mxu0 %v750
        %1782 = vmatprep.subr.mxu0 0.0
        %1783 = vmatpush1.msra.mxu0 %v751
        %1784 = vmatprep.subr.mxu0 0.0
        %1785 = vmatpush1.msra.mxu0 0.0
        %1786 = vmatprep.subr.mxu0 0.0
        %1787 = vmatpush1.msra.mxu0 0.0
        %1788 = vmatprep.subr.mxu0 0.0
        %1789 = vmatpush1.msra.mxu0 0.0
        %1790 = vmatprep.subr.mxu0 0.0
        %1791 = vmatpush1.msra.mxu0 0.0
        %1792 = vmatprep.subr.mxu0 0.0
        %1793 = vmatpush1.msra.mxu0 0.0
        %1794 = vmatprep.subr.mxu0 0.0
        %1795 = vmatpush1.msra.mxu0 0.0
        %1796 = vmatprep.subr.mxu0 0.0
        %1797 = vmatpush1.msra.mxu0 0.0
        %1798 = vmatprep.subr.mxu0 0.0
        %1799 = vmatpush1.msra.mxu0 0.0
        %1800 = vmatprep.subr.mxu0 0.0
        %1801 = vmatpush1.msra.mxu0 0.0
        %1802 = vmatprep.subr.mxu0 0.0
        %1803 = vmatpush1.msra.mxu0 0.0
        %1804 = vmatprep.subr.mxu0 0.0
        %1805 = vmatpush1.msra.mxu0 0.0
        %1806 = vmatprep.subr.mxu0 0.0
        %1807 = vmatpush1.msra.mxu0 0.0
        %1808 = vmatprep.subr.mxu0 0.0
        %1809 = vmatpush1.msra.mxu0 0.0
        %1810 = vmatprep.subr.mxu0 0.0
        %1811 = vmatpush1.msra.mxu0 0.0
        %1812 = vmatprep.subr.mxu0 0.0
        %1813 = vmatpush1.msra.mxu0 0.0
        %1814 = vmatprep.subr.mxu0 0.0
        %1815 = vmatpush1.msra.mxu0 0.0
        %1816 = vmatprep.subr.mxu0 0.0
        %1817 = vmatpush1.msra.mxu0 0.0
        %1818 = vmatprep.subr.mxu0 0.0
        %1819 = vmatpush1.msra.mxu0 0.0
        %1820 = vmatprep.subr.mxu0 0.0
        %1821 = vmatpush1.msra.mxu0 0.0
        %1822 = vmatprep.subr.mxu0 0.0
        %1823 = vmatpush1.msra.mxu0 0.0
        %1824 = vmatprep.subr.mxu0 0.0
        %1825 = vmatpush1.msra.mxu0 0.0
        %1826 = vmatprep.subr.mxu0 0.0
        %1827 = vmatpush1.msra.mxu0 0.0
        %1828 = vmatprep.subr.mxu0 0.0
        %1829 = vmatpush1.msra.mxu0 0.0
        %1830 = vmatprep.subr.mxu0 0.0
        %1831 = vmatpush1.msra.mxu0 0.0
        %1832 = vmatprep.subr.mxu0 0.0
        %1833 = vmatpush1.msra.mxu0 0.0
        %1834 = vmatprep.subr.mxu0 0.0
        %1835 = vmatpush1.msra.mxu0 0.0
        %1836 = vmatprep.subr.mxu0 0.0
        %1837 = vmatpush1.msra.mxu0 0.0
        %1838 = vmatprep.subr.mxu0 0.0
        %1839 = vmatpush1.msra.mxu0 0.0
        %1840 = vmatprep.mubr.f32.mxu0 0.0
        %1841 = vmatmul.mubr.f32.gmra.mrb[0].mxu0 %v1704
        %v1842 = vpop.f32.mrb[0].mxu0
        %v1843 = vadd.f32 0.0, %v1842
        %v1844 = vpop.f32.mrb[0].mxu0
        %1845 = vdwg.mxu0
        %v1847 = vrot.slane %v1773, 6
        %v1848 = vrot.slane %v1773, 7
        %v1849 = vrot.slane %v1773, 1
        %v1850 = vrot.slane %v1773, 2
        %v1851 = vrot.slane %v1773, 3
        %v1852 = vrot.slane %v1773, 4
        %v1853 = vrot.slane %v1773, 5
        %v1862 = vadd.f32 %v473, %v1847
        %v1863 = vadd.f32 %v478, %v1848
        %v1864 = vadd.f32 %v483, %v1773
        %v1865 = vadd.f32 %v488, %v1849
        %v1866 = vadd.f32 %v493, %v1850
        %v1867 = vadd.f32 %v498, %v1851
        %v1868 = vadd.f32 %v503, %v1852
        %v1869 = vadd.f32 %v508, %v1853
        %v1870 = vxor.u32 %v1862, 2147483648
        %v1871 = vxor.u32 %v1863, 2147483648
        %v1872 = vxor.u32 %v1864, 2147483648
        %v1873 = vxor.u32 %v1865, 2147483648
        %v1874 = vxor.u32 %v1866, 2147483648
        %v1875 = vxor.u32 %v1867, 2147483648
        %v1876 = vxor.u32 %v1868, 2147483648
        %v1877 = vxor.u32 %v1869, 2147483648
        %v1878 = vmul.f32 %v1870, 1.442695
        %v1879 = vpow.pop %v1878
        %v1880 = vmul.f32 %v1871, 1.442695
        %v1881 = vpow.pop %v1880
        %v1882 = vmul.f32 %v1872, 1.442695
        %v1883 = vpow.pop %v1882
        %v1884 = vmul.f32 %v1873, 1.442695
        %v1885 = vpow.pop %v1884
        %v1886 = vmul.f32 %v1874, 1.442695
        %v1887 = vpow.pop %v1886
        %v1888 = vmul.f32 %v1875, 1.442695
        %v1889 = vpow.pop %v1888
        %v1890 = vmul.f32 %v1876, 1.442695
        %v1891 = vpow.pop %v1890
        %v1892 = vmul.f32 %v1877, 1.442695
        %v1893 = vpow.pop %v1892
        %v1894 = vadd.f32 %v1879, 1.0
        %v1895 = vadd.f32 %v1881, 1.0
        %v1896 = vadd.f32 %v1883, 1.0
        %v1897 = vadd.f32 %v1885, 1.0
        %v1898 = vadd.f32 %v1887, 1.0
        %v1899 = vadd.f32 %v1889, 1.0
        %v1900 = vadd.f32 %v1891, 1.0
        %v1901 = vadd.f32 %v1893, 1.0
        %v1902 = vrcp.pop %v1894
        %v1903 = vmul.f32 1.0, %v1902
        %v1904 = vrcp.pop %v1895
        %v1905 = vmul.f32 1.0, %v1904
        %v1906 = vrcp.pop %v1896
        %v1907 = vmul.f32 1.0, %v1906
        %v1908 = vrcp.pop %v1897
        %v1909 = vmul.f32 1.0, %v1908
        %v1910 = vrcp.pop %v1898
        %v1911 = vmul.f32 1.0, %v1910
        %v1912 = vrcp.pop %v1899
        %v1913 = vmul.f32 1.0, %v1912
        %v1914 = vrcp.pop %v1900
        %v1915 = vmul.f32 1.0, %v1914
        %v1916 = vrcp.pop %v1901
        %v1917 = vmul.f32 1.0, %v1916
        %v1919 = vrot.slane %v1843, 6
        %v1920 = vrot.slane %v1843, 7
        %v1921 = vrot.slane %v1843, 1
        %v1922 = vrot.slane %v1843, 2
        %v1923 = vrot.slane %v1843, 3
        %v1924 = vrot.slane %v1843, 4
        %v1925 = vrot.slane %v1843, 5
        %v1934 = vadd.f32 %v589, %v1919
        %v1935 = vadd.f32 %v594, %v1920
        %v1936 = vadd.f32 %v599, %v1843
        %v1937 = vadd.f32 %v604, %v1921
        %v1938 = vadd.f32 %v609, %v1922
        %v1939 = vadd.f32 %v614, %v1923
        %v1940 = vadd.f32 %v619, %v1924
        %v1941 = vadd.f32 %v624, %v1925
        %v1942 = vxor.u32 %v1934, 2147483648
        %v1943 = vxor.u32 %v1935, 2147483648
        %v1944 = vxor.u32 %v1936, 2147483648
        %v1945 = vxor.u32 %v1937, 2147483648
        %v1946 = vxor.u32 %v1938, 2147483648
        %v1947 = vxor.u32 %v1939, 2147483648
        %v1948 = vxor.u32 %v1940, 2147483648
        %v1949 = vxor.u32 %v1941, 2147483648
        %v1950 = vmul.f32 %v1942, 1.442695
        %v1951 = vpow.pop %v1950
        %v1952 = vmul.f32 %v1943, 1.442695
        %v1953 = vpow.pop %v1952
        %v1954 = vmul.f32 %v1944, 1.442695
        %v1955 = vpow.pop %v1954
        %v1956 = vmul.f32 %v1945, 1.442695
        %v1957 = vpow.pop %v1956
        %v1958 = vmul.f32 %v1946, 1.442695
        %v1959 = vpow.pop %v1958
        %v1960 = vmul.f32 %v1947, 1.442695
        %v1961 = vpow.pop %v1960
        %v1962 = vmul.f32 %v1948, 1.442695
        %v1963 = vpow.pop %v1962
        %v1964 = vmul.f32 %v1949, 1.442695
        %v1965 = vpow.pop %v1964
        %v1966 = vadd.f32 %v1951, 1.0
        %v1967 = vadd.f32 %v1953, 1.0
        %v1968 = vadd.f32 %v1955, 1.0
        %v1969 = vadd.f32 %v1957, 1.0
        %v1970 = vadd.f32 %v1959, 1.0
        %v1971 = vadd.f32 %v1961, 1.0
        %v1972 = vadd.f32 %v1963, 1.0
        %v1973 = vadd.f32 %v1965, 1.0
        %v1974 = vrcp.pop %v1966
        %v1975 = vmul.f32 1.0, %v1974
        %v1976 = vrcp.pop %v1967
        %v1977 = vmul.f32 1.0, %v1976
        %v1978 = vrcp.pop %v1968
        %v1979 = vmul.f32 1.0, %v1978
        %v1980 = vrcp.pop %v1969
        %v1981 = vmul.f32 1.0, %v1980
        %v1982 = vrcp.pop %v1970
        %v1983 = vmul.f32 1.0, %v1982
        %v1984 = vrcp.pop %v1971
        %v1985 = vmul.f32 1.0, %v1984
        %v1986 = vrcp.pop %v1972
        %v1987 = vmul.f32 1.0, %v1986
        %v1988 = vrcp.pop %v1973
        %v1989 = vmul.f32 1.0, %v1988
        %1990 = vmatprep.subr.mxu0 0.0
        %1991 = vmatpush1.msra.mxu0 %v753
        %1992 = vmatprep.subr.mxu0 0.0
        %1993 = vmatpush1.msra.mxu0 %v754
        %1994 = vmatprep.subr.mxu0 0.0
        %1995 = vmatpush1.msra.mxu0 %v755
        %1996 = vmatprep.subr.mxu0 0.0
        %1997 = vmatpush1.msra.mxu0 %v756
        %1998 = vmatprep.subr.mxu0 0.0
        %1999 = vmatpush1.msra.mxu0 0.0
        %2000 = vmatprep.subr.mxu0 0.0
        %2001 = vmatpush1.msra.mxu0 0.0
        %2002 = vmatprep.subr.mxu0 0.0
        %2003 = vmatpush1.msra.mxu0 0.0
        %2004 = vmatprep.subr.mxu0 0.0
        %2005 = vmatpush1.msra.mxu0 0.0
        %2006 = vmatprep.subr.mxu0 0.0
        %2007 = vmatpush1.msra.mxu0 0.0
        %2008 = vmatprep.subr.mxu0 0.0
        %2009 = vmatpush1.msra.mxu0 0.0
        %2010 = vmatprep.subr.mxu0 0.0
        %2011 = vmatpush1.msra.mxu0 0.0
        %2012 = vmatprep.subr.mxu0 0.0
        %2013 = vmatpush1.msra.mxu0 0.0
        %2014 = vmatprep.subr.mxu0 0.0
        %2015 = vmatpush1.msra.mxu0 0.0
        %2016 = vmatprep.subr.mxu0 0.0
        %2017 = vmatpush1.msra.mxu0 0.0
        %2018 = vmatprep.subr.mxu0 0.0
        %2019 = vmatpush1.msra.mxu0 0.0
        %2020 = vmatprep.subr.mxu0 0.0
        %2021 = vmatpush1.msra.mxu0 0.0
        %2022 = vmatprep.subr.mxu0 0.0
        %2023 = vmatpush1.msra.mxu0 0.0
        %2024 = vmatprep.subr.mxu0 0.0
        %2025 = vmatpush1.msra.mxu0 0.0
        %2026 = vmatprep.subr.mxu0 0.0
        %2027 = vmatpush1.msra.mxu0 0.0
        %2028 = vmatprep.subr.mxu0 0.0
        %2029 = vmatpush1.msra.mxu0 0.0
        %2030 = vmatprep.subr.mxu0 0.0
        %2031 = vmatpush1.msra.mxu0 0.0
        %2032 = vmatprep.subr.mxu0 0.0
        %2033 = vmatpush1.msra.mxu0 0.0
        %2034 = vmatprep.subr.mxu0 0.0
        %2035 = vmatpush1.msra.mxu0 0.0
        %2036 = vmatprep.subr.mxu0 0.0
        %2037 = vmatpush1.msra.mxu0 0.0
        %2038 = vmatprep.subr.mxu0 0.0
        %2039 = vmatpush1.msra.mxu0 0.0
        %2040 = vmatprep.subr.mxu0 0.0
        %2041 = vmatpush1.msra.mxu0 0.0
        %2042 = vmatprep.subr.mxu0 0.0
        %2043 = vmatpush1.msra.mxu0 0.0
        %2044 = vmatprep.subr.mxu0 0.0
        %2045 = vmatpush1.msra.mxu0 0.0
        %2046 = vmatprep.subr.mxu0 0.0
        %2047 = vmatpush1.msra.mxu0 0.0
        %2048 = vmatprep.subr.mxu0 0.0
        %2049 = vmatpush1.msra.mxu0 0.0
        %2050 = vmatprep.subr.mxu0 0.0
        %2051 = vmatpush1.msra.mxu0 0.0
        %2052 = vmatprep.subr.mxu0 0.0
        %2053 = vmatpush1.msra.mxu0 0.0
        %2054 = vmatprep.mubr.f32.mxu0 0.0
        %2055 = vmatmul.mubr.f32.gmra.mrb[0].mxu0 %v1704
        %v2056 = vpop.f32.mrb[0].mxu0
        %v2057 = vadd.f32 %v762, %v2056
        %v2058 = vpop.f32.mrb[0].mxu0
        %2059 = vdwg.mxu0
        %v2061 = vrot.slane %v2057, 6
        %v2062 = vrot.slane %v2057, 7
        %v2063 = vrot.slane %v2057, 1
        %v2064 = vrot.slane %v2057, 2
        %v2065 = vrot.slane %v2057, 3
        %v2066 = vrot.slane %v2057, 4
        %v2067 = vrot.slane %v2057, 5
        %v2076 = vmul.f32 %v1903, %v2061
        %v2077 = vmul.f32 %v1905, %v2062
        %v2078 = vmul.f32 %v1907, %v2057
        %v2079 = vmul.f32 %v1909, %v2063
        %v2080 = vmul.f32 %v1911, %v2064
        %v2081 = vmul.f32 %v1913, %v2065
        %v2082 = vmul.f32 %v1915, %v2066
        %v2083 = vmul.f32 %v1917, %v2067
        %v2084 = vadd.f32 %v705, %v2076
        %v2085 = vadd.f32 %v710, %v2077
        %v2086 = vadd.f32 %v715, %v2078
        %v2087 = vadd.f32 %v720, %v2079
        %v2088 = vadd.f32 %v725, %v2080
        %v2089 = vadd.f32 %v730, %v2081
        %v2090 = vadd.f32 %v735, %v2082
        %v2091 = vadd.f32 %v740, %v2083
        %v2092 = vtanh.pop %v2084
        %v2093 = vtanh.pop %v2085
        %v2094 = vtanh.pop %v2086
        %v2095 = vtanh.pop %v2087
        %v2096 = vtanh.pop %v2088
        %v2097 = vtanh.pop %v2089
        %v2098 = vtanh.pop %v2090
        %v2099 = vtanh.pop %v2091
        %v2100 = vsub.f32 1.0, %v1975
        %v2101 = vsub.f32 1.0, %v1977
        %v2102 = vsub.f32 1.0, %v1979
        %v2103 = vsub.f32 1.0, %v1981
        %v2104 = vsub.f32 1.0, %v1983
        %v2105 = vsub.f32 1.0, %v1985
        %v2106 = vsub.f32 1.0, %v1987
        %v2107 = vsub.f32 1.0, %v1989
        %v2108 = vmul.f32 %v2100, %v2092
        %v2109 = vmul.f32 %v2101, %v2093
        %v2110 = vmul.f32 %v2102, %v2094
        %v2111 = vmul.f32 %v2103, %v2095
        %v2112 = vmul.f32 %v2104, %v2096
        %v2113 = vmul.f32 %v2105, %v2097
        %v2114 = vmul.f32 %v2106, %v2098
        %v2115 = vmul.f32 %v2107, %v2099
        %v2116 = vrot.slane %v1674, 7
        %v2117 = vrot.slane %v1675, 7
        %v2118 = vrot.slane %v1677, 7
        %v2119 = vrot.slane %v1678, 7
        %v2120 = vrot.slane %v1679, 7
        %v2121 = vrot.slane %v1680, 7
        %v2122 = vrot.slane %v1681, 7
        %v2131 = vmul.f32 %v1975, %v2116
        %v2132 = vmul.f32 %v1977, %v2117
        %v2133 = vmul.f32 %v1979, %v1692
        %v2134 = vmul.f32 %v1981, %v2118
        %v2135 = vmul.f32 %v1983, %v2119
        %v2136 = vmul.f32 %v1985, %v2120
        %v2137 = vmul.f32 %v1987, %v2121
        %v2138 = vmul.f32 %v1989, %v2122
        %v2139 = vadd.f32 %v2108, %v2131
        %v2140 = vadd.f32 %v2109, %v2132
        %v2141 = vadd.f32 %v2110, %v2133
        %v2142 = vadd.f32 %v2111, %v2134
        %v2143 = vadd.f32 %v2112, %v2135
        %v2144 = vadd.f32 %v2113, %v2136
        %v2145 = vadd.f32 %v2114, %v2137
        %v2146 = vadd.f32 %v2115, %v2138
        %v2155 = vrot.slane %v2139, 2
        %v2156 = vrot.slane %v2140, 1
        %v2157 = vsel %vm1219, %v2156, %v2155
        %v2158 = vsel %vm1222, %v2141, %v2157
        %v2159 = vrot.slane %v2142, 7
        %v2160 = vsel %vm1225, %v2159, %v2158
        %v2161 = vrot.slane %v2143, 6
        %v2162 = vsel %vm1228, %v2161, %v2160
        %v2163 = vrot.slane %v2144, 5
        %v2164 = vsel %vm1231, %v2163, %v2162
        %v2165 = vrot.slane %v2145, 4
        %v2166 = vsel %vm1234, %v2165, %v2164
        %v2167 = vrot.slane %v2146, 3
        %v2168 = vsel %vm1237, %v2167, %v2166
        %v2169 = vsel %vm765, %v2168, 0
        %2171 = vmatprep.subr.mxu0 0.0
        %2172 = vmatpush1.msra.mxu0 %v743
        %2173 = vmatprep.subr.mxu0 0.0
        %2174 = vmatpush1.msra.mxu0 %v744
        %2175 = vmatprep.subr.mxu0 0.0
        %2176 = vmatpush1.msra.mxu0 %v745
        %2177 = vmatprep.subr.mxu0 0.0
        %2178 = vmatpush1.msra.mxu0 %v746
        %2179 = vmatprep.subr.mxu0 0.0
        %2180 = vmatpush1.msra.mxu0 0.0
        %2181 = vmatprep.subr.mxu0 0.0
        %2182 = vmatpush1.msra.mxu0 0.0
        %2183 = vmatprep.subr.mxu0 0.0
        %2184 = vmatpush1.msra.mxu0 0.0
        %2185 = vmatprep.subr.mxu0 0.0
        %2186 = vmatpush1.msra.mxu0 0.0
        %2187 = vmatprep.subr.mxu0 0.0
        %2188 = vmatpush1.msra.mxu0 0.0
        %2189 = vmatprep.subr.mxu0 0.0
        %2190 = vmatpush1.msra.mxu0 0.0
        %2191 = vmatprep.subr.mxu0 0.0
        %2192 = vmatpush1.msra.mxu0 0.0
        %2193 = vmatprep.subr.mxu0 0.0
        %2194 = vmatpush1.msra.mxu0 0.0
        %2195 = vmatprep.subr.mxu0 0.0
        %2196 = vmatpush1.msra.mxu0 0.0
        %2197 = vmatprep.subr.mxu0 0.0
        %2198 = vmatpush1.msra.mxu0 0.0
        %2199 = vmatprep.subr.mxu0 0.0
        %2200 = vmatpush1.msra.mxu0 0.0
        %2201 = vmatprep.subr.mxu0 0.0
        %2202 = vmatpush1.msra.mxu0 0.0
        %2203 = vmatprep.subr.mxu0 0.0
        %2204 = vmatpush1.msra.mxu0 0.0
        %2205 = vmatprep.subr.mxu0 0.0
        %2206 = vmatpush1.msra.mxu0 0.0
        %2207 = vmatprep.subr.mxu0 0.0
        %2208 = vmatpush1.msra.mxu0 0.0
        %2209 = vmatprep.subr.mxu0 0.0
        %2210 = vmatpush1.msra.mxu0 0.0
        %2211 = vmatprep.subr.mxu0 0.0
        %2212 = vmatpush1.msra.mxu0 0.0
        %2213 = vmatprep.subr.mxu0 0.0
        %2214 = vmatpush1.msra.mxu0 0.0
        %2215 = vmatprep.subr.mxu0 0.0
        %2216 = vmatpush1.msra.mxu0 0.0
        %2217 = vmatprep.subr.mxu0 0.0
        %2218 = vmatpush1.msra.mxu0 0.0
        %2219 = vmatprep.subr.mxu0 0.0
        %2220 = vmatpush1.msra.mxu0 0.0
        %2221 = vmatprep.subr.mxu0 0.0
        %2222 = vmatpush1.msra.mxu0 0.0
        %2223 = vmatprep.subr.mxu0 0.0
        %2224 = vmatpush1.msra.mxu0 0.0
        %2225 = vmatprep.subr.mxu0 0.0
        %2226 = vmatpush1.msra.mxu0 0.0
        %2227 = vmatprep.subr.mxu0 0.0
        %2228 = vmatpush1.msra.mxu0 0.0
        %2229 = vmatprep.subr.mxu0 0.0
        %2230 = vmatpush1.msra.mxu0 0.0
        %2231 = vmatprep.subr.mxu0 0.0
        %2232 = vmatpush1.msra.mxu0 0.0
        %2233 = vmatprep.subr.mxu0 0.0
        %2234 = vmatpush1.msra.mxu0 0.0
        %2235 = vmatprep.mubr.f32.mxu0 0.0
        %2236 = vmatmul.mubr.f32.gmra.mrb[0].mxu0 %v2169
        %v2237 = vpop.f32.mrb[0].mxu0
        %v2238 = vadd.f32 0.0, %v2237
        %v2239 = vpop.f32.mrb[0].mxu0
        %2240 = vdwg.mxu0
        %2241 = vmatprep.subr.mxu0 0.0
        %2242 = vmatpush1.msra.mxu0 %v748
        %2243 = vmatprep.subr.mxu0 0.0
        %2244 = vmatpush1.msra.mxu0 %v749
        %2245 = vmatprep.subr.mxu0 0.0
        %2246 = vmatpush1.msra.mxu0 %v750
        %2247 = vmatprep.subr.mxu0 0.0
        %2248 = vmatpush1.msra.mxu0 %v751
        %2249 = vmatprep.subr.mxu0 0.0
        %2250 = vmatpush1.msra.mxu0 0.0
        %2251 = vmatprep.subr.mxu0 0.0
        %2252 = vmatpush1.msra.mxu0 0.0
        %2253 = vmatprep.subr.mxu0 0.0
        %2254 = vmatpush1.msra.mxu0 0.0
        %2255 = vmatprep.subr.mxu0 0.0
        %2256 = vmatpush1.msra.mxu0 0.0
        %2257 = vmatprep.subr.mxu0 0.0
        %2258 = vmatpush1.msra.mxu0 0.0
        %2259 = vmatprep.subr.mxu0 0.0
        %2260 = vmatpush1.msra.mxu0 0.0
        %2261 = vmatprep.subr.mxu0 0.0
        %2262 = vmatpush1.msra.mxu0 0.0
        %2263 = vmatprep.subr.mxu0 0.0
        %2264 = vmatpush1.msra.mxu0 0.0
        %2265 = vmatprep.subr.mxu0 0.0
        %2266 = vmatpush1.msra.mxu0 0.0
        %2267 = vmatprep.subr.mxu0 0.0
        %2268 = vmatpush1.msra.mxu0 0.0
        %2269 = vmatprep.subr.mxu0 0.0
        %2270 = vmatpush1.msra.mxu0 0.0
        %2271 = vmatprep.subr.mxu0 0.0
        %2272 = vmatpush1.msra.mxu0 0.0
        %2273 = vmatprep.subr.mxu0 0.0
        %2274 = vmatpush1.msra.mxu0 0.0
        %2275 = vmatprep.subr.mxu0 0.0
        %2276 = vmatpush1.msra.mxu0 0.0
        %2277 = vmatprep.subr.mxu0 0.0
        %2278 = vmatpush1.msra.mxu0 0.0
        %2279 = vmatprep.subr.mxu0 0.0
        %2280 = vmatpush1.msra.mxu0 0.0
        %2281 = vmatprep.subr.mxu0 0.0
        %2282 = vmatpush1.msra.mxu0 0.0
        %2283 = vmatprep.subr.mxu0 0.0
        %2284 = vmatpush1.msra.mxu0 0.0
        %2285 = vmatprep.subr.mxu0 0.0
        %2286 = vmatpush1.msra.mxu0 0.0
        %2287 = vmatprep.subr.mxu0 0.0
        %2288 = vmatpush1.msra.mxu0 0.0
        %2289 = vmatprep.subr.mxu0 0.0
        %2290 = vmatpush1.msra.mxu0 0.0
        %2291 = vmatprep.subr.mxu0 0.0
        %2292 = vmatpush1.msra.mxu0 0.0
        %2293 = vmatprep.subr.mxu0 0.0
        %2294 = vmatpush1.msra.mxu0 0.0
        %2295 = vmatprep.subr.mxu0 0.0
        %2296 = vmatpush1.msra.mxu0 0.0
        %2297 = vmatprep.subr.mxu0 0.0
        %2298 = vmatpush1.msra.mxu0 0.0
        %2299 = vmatprep.subr.mxu0 0.0
        %2300 = vmatpush1.msra.mxu0 0.0
        %2301 = vmatprep.subr.mxu0 0.0
        %2302 = vmatpush1.msra.mxu0 0.0
        %2303 = vmatprep.subr.mxu0 0.0
        %2304 = vmatpush1.msra.mxu0 0.0
        %2305 = vmatprep.mubr.f32.mxu0 0.0
        %2306 = vmatmul.mubr.f32.gmra.mrb[0].mxu0 %v2169
        %v2307 = vpop.f32.mrb[0].mxu0
        %v2308 = vadd.f32 0.0, %v2307
        %v2309 = vpop.f32.mrb[0].mxu0
        %2310 = vdwg.mxu0
        %v2312 = vrot.slane %v2238, 5
        %v2313 = vrot.slane %v2238, 6
        %v2314 = vrot.slane %v2238, 7
        %v2315 = vrot.slane %v2238, 1
        %v2316 = vrot.slane %v2238, 2
        %v2317 = vrot.slane %v2238, 3
        %v2318 = vrot.slane %v2238, 4
        %v2327 = vadd.f32 %v473, %v2312
        %v2328 = vadd.f32 %v478, %v2313
        %v2329 = vadd.f32 %v483, %v2314
        %v2330 = vadd.f32 %v488, %v2238
        %v2331 = vadd.f32 %v493, %v2315
        %v2332 = vadd.f32 %v498, %v2316
        %v2333 = vadd.f32 %v503, %v2317
        %v2334 = vadd.f32 %v508, %v2318
        %v2335 = vxor.u32 %v2327, 2147483648
        %v2336 = vxor.u32 %v2328, 2147483648
        %v2337 = vxor.u32 %v2329, 2147483648
        %v2338 = vxor.u32 %v2330, 2147483648
        %v2339 = vxor.u32 %v2331, 2147483648
        %v2340 = vxor.u32 %v2332, 2147483648
        %v2341 = vxor.u32 %v2333, 2147483648
        %v2342 = vxor.u32 %v2334, 2147483648
        %v2343 = vmul.f32 %v2335, 1.442695
        %v2344 = vpow.pop %v2343
        %v2345 = vmul.f32 %v2336, 1.442695
        %v2346 = vpow.pop %v2345
        %v2347 = vmul.f32 %v2337, 1.442695
        %v2348 = vpow.pop %v2347
        %v2349 = vmul.f32 %v2338, 1.442695
        %v2350 = vpow.pop %v2349
        %v2351 = vmul.f32 %v2339, 1.442695
        %v2352 = vpow.pop %v2351
        %v2353 = vmul.f32 %v2340, 1.442695
        %v2354 = vpow.pop %v2353
        %v2355 = vmul.f32 %v2341, 1.442695
        %v2356 = vpow.pop %v2355
        %v2357 = vmul.f32 %v2342, 1.442695
        %v2358 = vpow.pop %v2357
        %v2359 = vadd.f32 %v2344, 1.0
        %v2360 = vadd.f32 %v2346, 1.0
        %v2361 = vadd.f32 %v2348, 1.0
        %v2362 = vadd.f32 %v2350, 1.0
        %v2363 = vadd.f32 %v2352, 1.0
        %v2364 = vadd.f32 %v2354, 1.0
        %v2365 = vadd.f32 %v2356, 1.0
        %v2366 = vadd.f32 %v2358, 1.0
        %v2367 = vrcp.pop %v2359
        %v2368 = vmul.f32 1.0, %v2367
        %v2369 = vrcp.pop %v2360
        %v2370 = vmul.f32 1.0, %v2369
        %v2371 = vrcp.pop %v2361
        %v2372 = vmul.f32 1.0, %v2371
        %v2373 = vrcp.pop %v2362
        %v2374 = vmul.f32 1.0, %v2373
        %v2375 = vrcp.pop %v2363
        %v2376 = vmul.f32 1.0, %v2375
        %v2377 = vrcp.pop %v2364
        %v2378 = vmul.f32 1.0, %v2377
        %v2379 = vrcp.pop %v2365
        %v2380 = vmul.f32 1.0, %v2379
        %v2381 = vrcp.pop %v2366
        %v2382 = vmul.f32 1.0, %v2381
        %v2384 = vrot.slane %v2308, 5
        %v2385 = vrot.slane %v2308, 6
        %v2386 = vrot.slane %v2308, 7
        %v2387 = vrot.slane %v2308, 1
        %v2388 = vrot.slane %v2308, 2
        %v2389 = vrot.slane %v2308, 3
        %v2390 = vrot.slane %v2308, 4
        %v2399 = vadd.f32 %v589, %v2384
        %v2400 = vadd.f32 %v594, %v2385
        %v2401 = vadd.f32 %v599, %v2386
        %v2402 = vadd.f32 %v604, %v2308
        %v2403 = vadd.f32 %v609, %v2387
        %v2404 = vadd.f32 %v614, %v2388
        %v2405 = vadd.f32 %v619, %v2389
        %v2406 = vadd.f32 %v624, %v2390
        %v2407 = vxor.u32 %v2399, 2147483648
        %v2408 = vxor.u32 %v2400, 2147483648
        %v2409 = vxor.u32 %v2401, 2147483648
        %v2410 = vxor.u32 %v2402, 2147483648
        %v2411 = vxor.u32 %v2403, 2147483648
        %v2412 = vxor.u32 %v2404, 2147483648
        %v2413 = vxor.u32 %v2405, 2147483648
        %v2414 = vxor.u32 %v2406, 2147483648
        %v2415 = vmul.f32 %v2407, 1.442695
        %v2416 = vpow.pop %v2415
        %v2417 = vmul.f32 %v2408, 1.442695
        %v2418 = vpow.pop %v2417
        %v2419 = vmul.f32 %v2409, 1.442695
        %v2420 = vpow.pop %v2419
        %v2421 = vmul.f32 %v2410, 1.442695
        %v2422 = vpow.pop %v2421
        %v2423 = vmul.f32 %v2411, 1.442695
        %v2424 = vpow.pop %v2423
        %v2425 = vmul.f32 %v2412, 1.442695
        %v2426 = vpow.pop %v2425
        %v2427 = vmul.f32 %v2413, 1.442695
        %v2428 = vpow.pop %v2427
        %v2429 = vmul.f32 %v2414, 1.442695
        %v2430 = vpow.pop %v2429
        %v2431 = vadd.f32 %v2416, 1.0
        %v2432 = vadd.f32 %v2418, 1.0
        %v2433 = vadd.f32 %v2420, 1.0
        %v2434 = vadd.f32 %v2422, 1.0
        %v2435 = vadd.f32 %v2424, 1.0
        %v2436 = vadd.f32 %v2426, 1.0
        %v2437 = vadd.f32 %v2428, 1.0
        %v2438 = vadd.f32 %v2430, 1.0
        %v2439 = vrcp.pop %v2431
        %v2440 = vmul.f32 1.0, %v2439
        %v2441 = vrcp.pop %v2432
        %v2442 = vmul.f32 1.0, %v2441
        %v2443 = vrcp.pop %v2433
        %v2444 = vmul.f32 1.0, %v2443
        %v2445 = vrcp.pop %v2434
        %v2446 = vmul.f32 1.0, %v2445
        %v2447 = vrcp.pop %v2435
        %v2448 = vmul.f32 1.0, %v2447
        %v2449 = vrcp.pop %v2436
        %v2450 = vmul.f32 1.0, %v2449
        %v2451 = vrcp.pop %v2437
        %v2452 = vmul.f32 1.0, %v2451
        %v2453 = vrcp.pop %v2438
        %v2454 = vmul.f32 1.0, %v2453
        %2455 = vmatprep.subr.mxu0 0.0
        %2456 = vmatpush1.msra.mxu0 %v753
        %2457 = vmatprep.subr.mxu0 0.0
        %2458 = vmatpush1.msra.mxu0 %v754
        %2459 = vmatprep.subr.mxu0 0.0
        %2460 = vmatpush1.msra.mxu0 %v755
        %2461 = vmatprep.subr.mxu0 0.0
        %2462 = vmatpush1.msra.mxu0 %v756
        %2463 = vmatprep.subr.mxu0 0.0
        %2464 = vmatpush1.msra.mxu0 0.0
        %2465 = vmatprep.subr.mxu0 0.0
        %2466 = vmatpush1.msra.mxu0 0.0
        %2467 = vmatprep.subr.mxu0 0.0
        %2468 = vmatpush1.msra.mxu0 0.0
        %2469 = vmatprep.subr.mxu0 0.0
        %2470 = vmatpush1.msra.mxu0 0.0
        %2471 = vmatprep.subr.mxu0 0.0
        %2472 = vmatpush1.msra.mxu0 0.0
        %2473 = vmatprep.subr.mxu0 0.0
        %2474 = vmatpush1.msra.mxu0 0.0
        %2475 = vmatprep.subr.mxu0 0.0
        %2476 = vmatpush1.msra.mxu0 0.0
        %2477 = vmatprep.subr.mxu0 0.0
        %2478 = vmatpush1.msra.mxu0 0.0
        %2479 = vmatprep.subr.mxu0 0.0
        %2480 = vmatpush1.msra.mxu0 0.0
        %2481 = vmatprep.subr.mxu0 0.0
        %2482 = vmatpush1.msra.mxu0 0.0
        %2483 = vmatprep.subr.mxu0 0.0
        %2484 = vmatpush1.msra.mxu0 0.0
        %2485 = vmatprep.subr.mxu0 0.0
        %2486 = vmatpush1.msra.mxu0 0.0
        %2487 = vmatprep.subr.mxu0 0.0
        %2488 = vmatpush1.msra.mxu0 0.0
        %2489 = vmatprep.subr.mxu0 0.0
        %2490 = vmatpush1.msra.mxu0 0.0
        %2491 = vmatprep.subr.mxu0 0.0
        %2492 = vmatpush1.msra.mxu0 0.0
        %2493 = vmatprep.subr.mxu0 0.0
        %2494 = vmatpush1.msra.mxu0 0.0
        %2495 = vmatprep.subr.mxu0 0.0
        %2496 = vmatpush1.msra.mxu0 0.0
        %2497 = vmatprep.subr.mxu0 0.0
        %2498 = vmatpush1.msra.mxu0 0.0
        %2499 = vmatprep.subr.mxu0 0.0
        %2500 = vmatpush1.msra.mxu0 0.0
        %2501 = vmatprep.subr.mxu0 0.0
        %2502 = vmatpush1.msra.mxu0 0.0
        %2503 = vmatprep.subr.mxu0 0.0
        %2504 = vmatpush1.msra.mxu0 0.0
        %2505 = vmatprep.subr.mxu0 0.0
        %2506 = vmatpush1.msra.mxu0 0.0
        %2507 = vmatprep.subr.mxu0 0.0
        %2508 = vmatpush1.msra.mxu0 0.0
        %2509 = vmatprep.subr.mxu0 0.0
        %2510 = vmatpush1.msra.mxu0 0.0
        %2511 = vmatprep.subr.mxu0 0.0
        %2512 = vmatpush1.msra.mxu0 0.0
        %2513 = vmatprep.subr.mxu0 0.0
        %2514 = vmatpush1.msra.mxu0 0.0
        %2515 = vmatprep.subr.mxu0 0.0
        %2516 = vmatpush1.msra.mxu0 0.0
        %2517 = vmatprep.subr.mxu0 0.0
        %2518 = vmatpush1.msra.mxu0 0.0
        %2519 = vmatprep.mubr.f32.mxu0 0.0
        %2520 = vmatmul.mubr.f32.gmra.mrb[0].mxu0 %v2169
        %v2521 = vpop.f32.mrb[0].mxu0
        %v2522 = vadd.f32 %v762, %v2521
        %v2523 = vpop.f32.mrb[0].mxu0
        %2524 = vdwg.mxu0
        %v2526 = vrot.slane %v2522, 5
        %v2527 = vrot.slane %v2522, 6
        %v2528 = vrot.slane %v2522, 7
        %v2529 = vrot.slane %v2522, 1
        %v2530 = vrot.slane %v2522, 2
        %v2531 = vrot.slane %v2522, 3
        %v2532 = vrot.slane %v2522, 4
        %v2541 = vmul.f32 %v2368, %v2526
        %v2542 = vmul.f32 %v2370, %v2527
        %v2543 = vmul.f32 %v2372, %v2528
        %v2544 = vmul.f32 %v2374, %v2522
        %v2545 = vmul.f32 %v2376, %v2529
        %v2546 = vmul.f32 %v2378, %v2530
        %v2547 = vmul.f32 %v2380, %v2531
        %v2548 = vmul.f32 %v2382, %v2532
        %v2549 = vadd.f32 %v705, %v2541
        %v2550 = vadd.f32 %v710, %v2542
        %v2551 = vadd.f32 %v715, %v2543
        %v2552 = vadd.f32 %v720, %v2544
        %v2553 = vadd.f32 %v725, %v2545
        %v2554 = vadd.f32 %v730, %v2546
        %v2555 = vadd.f32 %v735, %v2547
        %v2556 = vadd.f32 %v740, %v2548
        %v2557 = vtanh.pop %v2549
        %v2558 = vtanh.pop %v2550
        %v2559 = vtanh.pop %v2551
        %v2560 = vtanh.pop %v2552
        %v2561 = vtanh.pop %v2553
        %v2562 = vtanh.pop %v2554
        %v2563 = vtanh.pop %v2555
        %v2564 = vtanh.pop %v2556
        %v2565 = vsub.f32 1.0, %v2440
        %v2566 = vsub.f32 1.0, %v2442
        %v2567 = vsub.f32 1.0, %v2444
        %v2568 = vsub.f32 1.0, %v2446
        %v2569 = vsub.f32 1.0, %v2448
        %v2570 = vsub.f32 1.0, %v2450
        %v2571 = vsub.f32 1.0, %v2452
        %v2572 = vsub.f32 1.0, %v2454
        %v2573 = vmul.f32 %v2565, %v2557
        %v2574 = vmul.f32 %v2566, %v2558
        %v2575 = vmul.f32 %v2567, %v2559
        %v2576 = vmul.f32 %v2568, %v2560
        %v2577 = vmul.f32 %v2569, %v2561
        %v2578 = vmul.f32 %v2570, %v2562
        %v2579 = vmul.f32 %v2571, %v2563
        %v2580 = vmul.f32 %v2572, %v2564
        %v2581 = vrot.slane %v2139, 7
        %v2582 = vrot.slane %v2140, 7
        %v2583 = vrot.slane %v2141, 7
        %v2584 = vrot.slane %v2143, 7
        %v2585 = vrot.slane %v2144, 7
        %v2586 = vrot.slane %v2145, 7
        %v2587 = vrot.slane %v2146, 7
        %v2596 = vmul.f32 %v2440, %v2581
        %v2597 = vmul.f32 %v2442, %v2582
        %v2598 = vmul.f32 %v2444, %v2583
        %v2599 = vmul.f32 %v2446, %v2159
        %v2600 = vmul.f32 %v2448, %v2584
        %v2601 = vmul.f32 %v2450, %v2585
        %v2602 = vmul.f32 %v2452, %v2586
        %v2603 = vmul.f32 %v2454, %v2587
        %v2604 = vadd.f32 %v2573, %v2596
        %v2605 = vadd.f32 %v2574, %v2597
        %v2606 = vadd.f32 %v2575, %v2598
        %v2607 = vadd.f32 %v2576, %v2599
        %v2608 = vadd.f32 %v2577, %v2600
        %v2609 = vadd.f32 %v2578, %v2601
        %v2610 = vadd.f32 %v2579, %v2602
        %v2611 = vadd.f32 %v2580, %v2603
        %v2620 = vrot.slane %v2604, 3
        %v2621 = vrot.slane %v2605, 2
        %v2622 = vsel %vm1219, %v2621, %v2620
        %v2623 = vrot.slane %v2606, 1
        %v2624 = vsel %vm1222, %v2623, %v2622
        %v2625 = vsel %vm1225, %v2607, %v2624
        %v2626 = vrot.slane %v2608, 7
        %v2627 = vsel %vm1228, %v2626, %v2625
        %v2628 = vrot.slane %v2609, 6
        %v2629 = vsel %vm1231, %v2628, %v2627
        %v2630 = vrot.slane %v2610, 5
        %v2631 = vsel %vm1234, %v2630, %v2629
        %v2632 = vrot.slane %v2611, 4
        %v2633 = vsel %vm1237, %v2632, %v2631
        %v2634 = vsel %vm765, %v2633, 0
        %2636 = vmatprep.subr.mxu0 0.0
        %2637 = vmatpush1.msra.mxu0 %v743
        %2638 = vmatprep.subr.mxu0 0.0
        %2639 = vmatpush1.msra.mxu0 %v744
        %2640 = vmatprep.subr.mxu0 0.0
        %2641 = vmatpush1.msra.mxu0 %v745
        %2642 = vmatprep.subr.mxu0 0.0
        %2643 = vmatpush1.msra.mxu0 %v746
        %2644 = vmatprep.subr.mxu0 0.0
        %2645 = vmatpush1.msra.mxu0 0.0
        %2646 = vmatprep.subr.mxu0 0.0
        %2647 = vmatpush1.msra.mxu0 0.0
        %2648 = vmatprep.subr.mxu0 0.0
        %2649 = vmatpush1.msra.mxu0 0.0
        %2650 = vmatprep.subr.mxu0 0.0
        %2651 = vmatpush1.msra.mxu0 0.0
        %2652 = vmatprep.subr.mxu0 0.0
        %2653 = vmatpush1.msra.mxu0 0.0
        %2654 = vmatprep.subr.mxu0 0.0
        %2655 = vmatpush1.msra.mxu0 0.0
        %2656 = vmatprep.subr.mxu0 0.0
        %2657 = vmatpush1.msra.mxu0 0.0
        %2658 = vmatprep.subr.mxu0 0.0
        %2659 = vmatpush1.msra.mxu0 0.0
        %2660 = vmatprep.subr.mxu0 0.0
        %2661 = vmatpush1.msra.mxu0 0.0
        %2662 = vmatprep.subr.mxu0 0.0
        %2663 = vmatpush1.msra.mxu0 0.0
        %2664 = vmatprep.subr.mxu0 0.0
        %2665 = vmatpush1.msra.mxu0 0.0
        %2666 = vmatprep.subr.mxu0 0.0
        %2667 = vmatpush1.msra.mxu0 0.0
        %2668 = vmatprep.subr.mxu0 0.0
        %2669 = vmatpush1.msra.mxu0 0.0
        %2670 = vmatprep.subr.mxu0 0.0
        %2671 = vmatpush1.msra.mxu0 0.0
        %2672 = vmatprep.subr.mxu0 0.0
        %2673 = vmatpush1.msra.mxu0 0.0
        %2674 = vmatprep.subr.mxu0 0.0
        %2675 = vmatpush1.msra.mxu0 0.0
        %2676 = vmatprep.subr.mxu0 0.0
        %2677 = vmatpush1.msra.mxu0 0.0
        %2678 = vmatprep.subr.mxu0 0.0
        %2679 = vmatpush1.msra.mxu0 0.0
        %2680 = vmatprep.subr.mxu0 0.0
        %2681 = vmatpush1.msra.mxu0 0.0
        %2682 = vmatprep.subr.mxu0 0.0
        %2683 = vmatpush1.msra.mxu0 0.0
        %2684 = vmatprep.subr.mxu0 0.0
        %2685 = vmatpush1.msra.mxu0 0.0
        %2686 = vmatprep.subr.mxu0 0.0
        %2687 = vmatpush1.msra.mxu0 0.0
        %2688 = vmatprep.subr.mxu0 0.0
        %2689 = vmatpush1.msra.mxu0 0.0
        %2690 = vmatprep.subr.mxu0 0.0
        %2691 = vmatpush1.msra.mxu0 0.0
        %2692 = vmatprep.subr.mxu0 0.0
        %2693 = vmatpush1.msra.mxu0 0.0
        %2694 = vmatprep.subr.mxu0 0.0
        %2695 = vmatpush1.msra.mxu0 0.0
        %2696 = vmatprep.subr.mxu0 0.0
        %2697 = vmatpush1.msra.mxu0 0.0
        %2698 = vmatprep.subr.mxu0 0.0
        %2699 = vmatpush1.msra.mxu0 0.0
        %2700 = vmatprep.mubr.f32.mxu0 0.0
        %2701 = vmatmul.mubr.f32.gmra.mrb[0].mxu0 %v2634
        %v2702 = vpop.f32.mrb[0].mxu0
        %v2703 = vadd.f32 0.0, %v2702
        %v2704 = vpop.f32.mrb[0].mxu0
        %2705 = vdwg.mxu0
        %2706 = vmatprep.subr.mxu0 0.0
        %2707 = vmatpush1.msra.mxu0 %v748
        %2708 = vmatprep.subr.mxu0 0.0
        %2709 = vmatpush1.msra.mxu0 %v749
        %2710 = vmatprep.subr.mxu0 0.0
        %2711 = vmatpush1.msra.mxu0 %v750
        %2712 = vmatprep.subr.mxu0 0.0
        %2713 = vmatpush1.msra.mxu0 %v751
        %2714 = vmatprep.subr.mxu0 0.0
        %2715 = vmatpush1.msra.mxu0 0.0
        %2716 = vmatprep.subr.mxu0 0.0
        %2717 = vmatpush1.msra.mxu0 0.0
        %2718 = vmatprep.subr.mxu0 0.0
        %2719 = vmatpush1.msra.mxu0 0.0
        %2720 = vmatprep.subr.mxu0 0.0
        %2721 = vmatpush1.msra.mxu0 0.0
        %2722 = vmatprep.subr.mxu0 0.0
        %2723 = vmatpush1.msra.mxu0 0.0
        %2724 = vmatprep.subr.mxu0 0.0
        %2725 = vmatpush1.msra.mxu0 0.0
        %2726 = vmatprep.subr.mxu0 0.0
        %2727 = vmatpush1.msra.mxu0 0.0
        %2728 = vmatprep.subr.mxu0 0.0
        %2729 = vmatpush1.msra.mxu0 0.0
        %2730 = vmatprep.subr.mxu0 0.0
        %2731 = vmatpush1.msra.mxu0 0.0
        %2732 = vmatprep.subr.mxu0 0.0
        %2733 = vmatpush1.msra.mxu0 0.0
        %2734 = vmatprep.subr.mxu0 0.0
        %2735 = vmatpush1.msra.mxu0 0.0
        %2736 = vmatprep.subr.mxu0 0.0
        %2737 = vmatpush1.msra.mxu0 0.0
        %2738 = vmatprep.subr.mxu0 0.0
        %2739 = vmatpush1.msra.mxu0 0.0
        %2740 = vmatprep.subr.mxu0 0.0
        %2741 = vmatpush1.msra.mxu0 0.0
        %2742 = vmatprep.subr.mxu0 0.0
        %2743 = vmatpush1.msra.mxu0 0.0
        %2744 = vmatprep.subr.mxu0 0.0
        %2745 = vmatpush1.msra.mxu0 0.0
        %2746 = vmatprep.subr.mxu0 0.0
        %2747 = vmatpush1.msra.mxu0 0.0
        %2748 = vmatprep.subr.mxu0 0.0
        %2749 = vmatpush1.msra.mxu0 0.0
        %2750 = vmatprep.subr.mxu0 0.0
        %2751 = vmatpush1.msra.mxu0 0.0
        %2752 = vmatprep.subr.mxu0 0.0
        %2753 = vmatpush1.msra.mxu0 0.0
        %2754 = vmatprep.subr.mxu0 0.0
        %2755 = vmatpush1.msra.mxu0 0.0
        %2756 = vmatprep.subr.mxu0 0.0
        %2757 = vmatpush1.msra.mxu0 0.0
        %2758 = vmatprep.subr.mxu0 0.0
        %2759 = vmatpush1.msra.mxu0 0.0
        %2760 = vmatprep.subr.mxu0 0.0
        %2761 = vmatpush1.msra.mxu0 0.0
        %2762 = vmatprep.subr.mxu0 0.0
        %2763 = vmatpush1.msra.mxu0 0.0
        %2764 = vmatprep.subr.mxu0 0.0
        %2765 = vmatpush1.msra.mxu0 0.0
        %2766 = vmatprep.subr.mxu0 0.0
        %2767 = vmatpush1.msra.mxu0 0.0
        %2768 = vmatprep.subr.mxu0 0.0
        %2769 = vmatpush1.msra.mxu0 0.0
        %2770 = vmatprep.mubr.f32.mxu0 0.0
        %2771 = vmatmul.mubr.f32.gmra.mrb[0].mxu0 %v2634
        %v2772 = vpop.f32.mrb[0].mxu0
        %v2773 = vadd.f32 0.0, %v2772
        %v2774 = vpop.f32.mrb[0].mxu0
        %2775 = vdwg.mxu0
        %v2777 = vrot.slane %v2703, 4
        %v2778 = vrot.slane %v2703, 5
        %v2779 = vrot.slane %v2703, 6
        %v2780 = vrot.slane %v2703, 7
        %v2781 = vrot.slane %v2703, 1
        %v2782 = vrot.slane %v2703, 2
        %v2783 = vrot.slane %v2703, 3
        %v2792 = vadd.f32 %v473, %v2777
        %v2793 = vadd.f32 %v478, %v2778
        %v2794 = vadd.f32 %v483, %v2779
        %v2795 = vadd.f32 %v488, %v2780
        %v2796 = vadd.f32 %v493, %v2703
        %v2797 = vadd.f32 %v498, %v2781
        %v2798 = vadd.f32 %v503, %v2782
        %v2799 = vadd.f32 %v508, %v2783
        %v2800 = vxor.u32 %v2792, 2147483648
        %v2801 = vxor.u32 %v2793, 2147483648
        %v2802 = vxor.u32 %v2794, 2147483648
        %v2803 = vxor.u32 %v2795, 2147483648
        %v2804 = vxor.u32 %v2796, 2147483648
        %v2805 = vxor.u32 %v2797, 2147483648
        %v2806 = vxor.u32 %v2798, 2147483648
        %v2807 = vxor.u32 %v2799, 2147483648
        %v2808 = vmul.f32 %v2800, 1.442695
        %v2809 = vpow.pop %v2808
        %v2810 = vmul.f32 %v2801, 1.442695
        %v2811 = vpow.pop %v2810
        %v2812 = vmul.f32 %v2802, 1.442695
        %v2813 = vpow.pop %v2812
        %v2814 = vmul.f32 %v2803, 1.442695
        %v2815 = vpow.pop %v2814
        %v2816 = vmul.f32 %v2804, 1.442695
        %v2817 = vpow.pop %v2816
        %v2818 = vmul.f32 %v2805, 1.442695
        %v2819 = vpow.pop %v2818
        %v2820 = vmul.f32 %v2806, 1.442695
        %v2821 = vpow.pop %v2820
        %v2822 = vmul.f32 %v2807, 1.442695
        %v2823 = vpow.pop %v2822
        %v2824 = vadd.f32 %v2809, 1.0
        %v2825 = vadd.f32 %v2811, 1.0
        %v2826 = vadd.f32 %v2813, 1.0
        %v2827 = vadd.f32 %v2815, 1.0
        %v2828 = vadd.f32 %v2817, 1.0
        %v2829 = vadd.f32 %v2819, 1.0
        %v2830 = vadd.f32 %v2821, 1.0
        %v2831 = vadd.f32 %v2823, 1.0
        %v2832 = vrcp.pop %v2824
        %v2833 = vmul.f32 1.0, %v2832
        %v2834 = vrcp.pop %v2825
        %v2835 = vmul.f32 1.0, %v2834
        %v2836 = vrcp.pop %v2826
        %v2837 = vmul.f32 1.0, %v2836
        %v2838 = vrcp.pop %v2827
        %v2839 = vmul.f32 1.0, %v2838
        %v2840 = vrcp.pop %v2828
        %v2841 = vmul.f32 1.0, %v2840
        %v2842 = vrcp.pop %v2829
        %v2843 = vmul.f32 1.0, %v2842
        %v2844 = vrcp.pop %v2830
        %v2845 = vmul.f32 1.0, %v2844
        %v2846 = vrcp.pop %v2831
        %v2847 = vmul.f32 1.0, %v2846
        %v2849 = vrot.slane %v2773, 4
        %v2850 = vrot.slane %v2773, 5
        %v2851 = vrot.slane %v2773, 6
        %v2852 = vrot.slane %v2773, 7
        %v2853 = vrot.slane %v2773, 1
        %v2854 = vrot.slane %v2773, 2
        %v2855 = vrot.slane %v2773, 3
        %v2864 = vadd.f32 %v589, %v2849
        %v2865 = vadd.f32 %v594, %v2850
        %v2866 = vadd.f32 %v599, %v2851
        %v2867 = vadd.f32 %v604, %v2852
        %v2868 = vadd.f32 %v609, %v2773
        %v2869 = vadd.f32 %v614, %v2853
        %v2870 = vadd.f32 %v619, %v2854
        %v2871 = vadd.f32 %v624, %v2855
        %v2872 = vxor.u32 %v2864, 2147483648
        %v2873 = vxor.u32 %v2865, 2147483648
        %v2874 = vxor.u32 %v2866, 2147483648
        %v2875 = vxor.u32 %v2867, 2147483648
        %v2876 = vxor.u32 %v2868, 2147483648
        %v2877 = vxor.u32 %v2869, 2147483648
        %v2878 = vxor.u32 %v2870, 2147483648
        %v2879 = vxor.u32 %v2871, 2147483648
        %v2880 = vmul.f32 %v2872, 1.442695
        %v2881 = vpow.pop %v2880
        %v2882 = vmul.f32 %v2873, 1.442695
        %v2883 = vpow.pop %v2882
        %v2884 = vmul.f32 %v2874, 1.442695
        %v2885 = vpow.pop %v2884
        %v2886 = vmul.f32 %v2875, 1.442695
        %v2887 = vpow.pop %v2886
        %v2888 = vmul.f32 %v2876, 1.442695
        %v2889 = vpow.pop %v2888
        %v2890 = vmul.f32 %v2877, 1.442695
        %v2891 = vpow.pop %v2890
        %v2892 = vmul.f32 %v2878, 1.442695
        %v2893 = vpow.pop %v2892
        %v2894 = vmul.f32 %v2879, 1.442695
        %v2895 = vpow.pop %v2894
        %v2896 = vadd.f32 %v2881, 1.0
        %v2897 = vadd.f32 %v2883, 1.0
        %v2898 = vadd.f32 %v2885, 1.0
        %v2899 = vadd.f32 %v2887, 1.0
        %v2900 = vadd.f32 %v2889, 1.0
        %v2901 = vadd.f32 %v2891, 1.0
        %v2902 = vadd.f32 %v2893, 1.0
        %v2903 = vadd.f32 %v2895, 1.0
        %v2904 = vrcp.pop %v2896
        %v2905 = vmul.f32 1.0, %v2904
        %v2906 = vrcp.pop %v2897
        %v2907 = vmul.f32 1.0, %v2906
        %v2908 = vrcp.pop %v2898
        %v2909 = vmul.f32 1.0, %v2908
        %v2910 = vrcp.pop %v2899
        %v2911 = vmul.f32 1.0, %v2910
        %v2912 = vrcp.pop %v2900
        %v2913 = vmul.f32 1.0, %v2912
        %v2914 = vrcp.pop %v2901
        %v2915 = vmul.f32 1.0, %v2914
        %v2916 = vrcp.pop %v2902
        %v2917 = vmul.f32 1.0, %v2916
        %v2918 = vrcp.pop %v2903
        %v2919 = vmul.f32 1.0, %v2918
        %2920 = vmatprep.subr.mxu0 0.0
        %2921 = vmatpush1.msra.mxu0 %v753
        %2922 = vmatprep.subr.mxu0 0.0
        %2923 = vmatpush1.msra.mxu0 %v754
        %2924 = vmatprep.subr.mxu0 0.0
        %2925 = vmatpush1.msra.mxu0 %v755
        %2926 = vmatprep.subr.mxu0 0.0
        %2927 = vmatpush1.msra.mxu0 %v756
        %2928 = vmatprep.subr.mxu0 0.0
        %2929 = vmatpush1.msra.mxu0 0.0
        %2930 = vmatprep.subr.mxu0 0.0
        %2931 = vmatpush1.msra.mxu0 0.0
        %2932 = vmatprep.subr.mxu0 0.0
        %2933 = vmatpush1.msra.mxu0 0.0
        %2934 = vmatprep.subr.mxu0 0.0
        %2935 = vmatpush1.msra.mxu0 0.0
        %2936 = vmatprep.subr.mxu0 0.0
        %2937 = vmatpush1.msra.mxu0 0.0
        %2938 = vmatprep.subr.mxu0 0.0
        %2939 = vmatpush1.msra.mxu0 0.0
        %2940 = vmatprep.subr.mxu0 0.0
        %2941 = vmatpush1.msra.mxu0 0.0
        %2942 = vmatprep.subr.mxu0 0.0
        %2943 = vmatpush1.msra.mxu0 0.0
        %2944 = vmatprep.subr.mxu0 0.0
        %2945 = vmatpush1.msra.mxu0 0.0
        %2946 = vmatprep.subr.mxu0 0.0
        %2947 = vmatpush1.msra.mxu0 0.0
        %2948 = vmatprep.subr.mxu0 0.0
        %2949 = vmatpush1.msra.mxu0 0.0
        %2950 = vmatprep.subr.mxu0 0.0
        %2951 = vmatpush1.msra.mxu0 0.0
        %2952 = vmatprep.subr.mxu0 0.0
        %2953 = vmatpush1.msra.mxu0 0.0
        %2954 = vmatprep.subr.mxu0 0.0
        %2955 = vmatpush1.msra.mxu0 0.0
        %2956 = vmatprep.subr.mxu0 0.0
        %2957 = vmatpush1.msra.mxu0 0.0
        %2958 = vmatprep.subr.mxu0 0.0
        %2959 = vmatpush1.msra.mxu0 0.0
        %2960 = vmatprep.subr.mxu0 0.0
        %2961 = vmatpush1.msra.mxu0 0.0
        %2962 = vmatprep.subr.mxu0 0.0
        %2963 = vmatpush1.msra.mxu0 0.0
        %2964 = vmatprep.subr.mxu0 0.0
        %2965 = vmatpush1.msra.mxu0 0.0
        %2966 = vmatprep.subr.mxu0 0.0
        %2967 = vmatpush1.msra.mxu0 0.0
        %2968 = vmatprep.subr.mxu0 0.0
        %2969 = vmatpush1.msra.mxu0 0.0
        %2970 = vmatprep.subr.mxu0 0.0
        %2971 = vmatpush1.msra.mxu0 0.0
        %2972 = vmatprep.subr.mxu0 0.0
        %2973 = vmatpush1.msra.mxu0 0.0
        %2974 = vmatprep.subr.mxu0 0.0
        %2975 = vmatpush1.msra.mxu0 0.0
        %2976 = vmatprep.subr.mxu0 0.0
        %2977 = vmatpush1.msra.mxu0 0.0
        %2978 = vmatprep.subr.mxu0 0.0
        %2979 = vmatpush1.msra.mxu0 0.0
        %2980 = vmatprep.subr.mxu0 0.0
        %2981 = vmatpush1.msra.mxu0 0.0
        %2982 = vmatprep.subr.mxu0 0.0
        %2983 = vmatpush1.msra.mxu0 0.0
        %2984 = vmatprep.mubr.f32.mxu0 0.0
        %2985 = vmatmul.mubr.f32.gmra.mrb[0].mxu0 %v2634
        %v2986 = vpop.f32.mrb[0].mxu0
        %v2987 = vadd.f32 %v762, %v2986
        %v2988 = vpop.f32.mrb[0].mxu0
        %2989 = vdwg.mxu0
        %v2991 = vrot.slane %v2987, 4
        %v2992 = vrot.slane %v2987, 5
        %v2993 = vrot.slane %v2987, 6
        %v2994 = vrot.slane %v2987, 7
        %v2995 = vrot.slane %v2987, 1
        %v2996 = vrot.slane %v2987, 2
        %v2997 = vrot.slane %v2987, 3
        %v3006 = vmul.f32 %v2833, %v2991
        %v3007 = vmul.f32 %v2835, %v2992
        %v3008 = vmul.f32 %v2837, %v2993
        %v3009 = vmul.f32 %v2839, %v2994
        %v3010 = vmul.f32 %v2841, %v2987
        %v3011 = vmul.f32 %v2843, %v2995
        %v3012 = vmul.f32 %v2845, %v2996
        %v3013 = vmul.f32 %v2847, %v2997
        %v3014 = vadd.f32 %v705, %v3006
        %v3015 = vadd.f32 %v710, %v3007
        %v3016 = vadd.f32 %v715, %v3008
        %v3017 = vadd.f32 %v720, %v3009
        %v3018 = vadd.f32 %v725, %v3010
        %v3019 = vadd.f32 %v730, %v3011
        %v3020 = vadd.f32 %v735, %v3012
        %v3021 = vadd.f32 %v740, %v3013
        %v3022 = vtanh.pop %v3014
        %v3023 = vtanh.pop %v3015
        %v3024 = vtanh.pop %v3016
        %v3025 = vtanh.pop %v3017
        %v3026 = vtanh.pop %v3018
        %v3027 = vtanh.pop %v3019
        %v3028 = vtanh.pop %v3020
        %v3029 = vtanh.pop %v3021
        %v3030 = vsub.f32 1.0, %v2905
        %v3031 = vsub.f32 1.0, %v2907
        %v3032 = vsub.f32 1.0, %v2909
        %v3033 = vsub.f32 1.0, %v2911
        %v3034 = vsub.f32 1.0, %v2913
        %v3035 = vsub.f32 1.0, %v2915
        %v3036 = vsub.f32 1.0, %v2917
        %v3037 = vsub.f32 1.0, %v2919
        %v3038 = vmul.f32 %v3030, %v3022
        %v3039 = vmul.f32 %v3031, %v3023
        %v3040 = vmul.f32 %v3032, %v3024
        %v3041 = vmul.f32 %v3033, %v3025
        %v3042 = vmul.f32 %v3034, %v3026
        %v3043 = vmul.f32 %v3035, %v3027
        %v3044 = vmul.f32 %v3036, %v3028
        %v3045 = vmul.f32 %v3037, %v3029
        %v3046 = vrot.slane %v2604, 7
        %v3047 = vrot.slane %v2605, 7
        %v3048 = vrot.slane %v2606, 7
        %v3049 = vrot.slane %v2607, 7
        %v3050 = vrot.slane %v2609, 7
        %v3051 = vrot.slane %v2610, 7
        %v3052 = vrot.slane %v2611, 7
        %v3061 = vmul.f32 %v2905, %v3046
        %v3062 = vmul.f32 %v2907, %v3047
        %v3063 = vmul.f32 %v2909, %v3048
        %v3064 = vmul.f32 %v2911, %v3049
        %v3065 = vmul.f32 %v2913, %v2626
        %v3066 = vmul.f32 %v2915, %v3050
        %v3067 = vmul.f32 %v2917, %v3051
        %v3068 = vmul.f32 %v2919, %v3052
        %v3069 = vadd.f32 %v3038, %v3061
        %v3070 = vadd.f32 %v3039, %v3062
        %v3071 = vadd.f32 %v3040, %v3063
        %v3072 = vadd.f32 %v3041, %v3064
        %v3073 = vadd.f32 %v3042, %v3065
        %v3074 = vadd.f32 %v3043, %v3066
        %v3075 = vadd.f32 %v3044, %v3067
        %v3076 = vadd.f32 %v3045, %v3068
        %v3085 = vrot.slane %v3069, 4
        %v3086 = vrot.slane %v3070, 3
        %v3087 = vsel %vm1219, %v3086, %v3085
        %v3088 = vrot.slane %v3071, 2
        %v3089 = vsel %vm1222, %v3088, %v3087
        %v3090 = vrot.slane %v3072, 1
        %v3091 = vsel %vm1225, %v3090, %v3089
        %v3092 = vsel %vm1228, %v3073, %v3091
        %v3093 = vrot.slane %v3074, 7
        %v3094 = vsel %vm1231, %v3093, %v3092
        %v3095 = vrot.slane %v3075, 6
        %v3096 = vsel %vm1234, %v3095, %v3094
        %v3097 = vrot.slane %v3076, 5
        %v3098 = vsel %vm1237, %v3097, %v3096
        %v3099 = vsel %vm765, %v3098, 0
        %3101 = vmatprep.subr.mxu0 0.0
        %3102 = vmatpush1.msra.mxu0 %v743
        %3103 = vmatprep.subr.mxu0 0.0
        %3104 = vmatpush1.msra.mxu0 %v744
        %3105 = vmatprep.subr.mxu0 0.0
        %3106 = vmatpush1.msra.mxu0 %v745
        %3107 = vmatprep.subr.mxu0 0.0
        %3108 = vmatpush1.msra.mxu0 %v746
        %3109 = vmatprep.subr.mxu0 0.0
        %3110 = vmatpush1.msra.mxu0 0.0
        %3111 = vmatprep.subr.mxu0 0.0
        %3112 = vmatpush1.msra.mxu0 0.0
        %3113 = vmatprep.subr.mxu0 0.0
        %3114 = vmatpush1.msra.mxu0 0.0
        %3115 = vmatprep.subr.mxu0 0.0
        %3116 = vmatpush1.msra.mxu0 0.0
        %3117 = vmatprep.subr.mxu0 0.0
        %3118 = vmatpush1.msra.mxu0 0.0
        %3119 = vmatprep.subr.mxu0 0.0
        %3120 = vmatpush1.msra.mxu0 0.0
        %3121 = vmatprep.subr.mxu0 0.0
        %3122 = vmatpush1.msra.mxu0 0.0
        %3123 = vmatprep.subr.mxu0 0.0
        %3124 = vmatpush1.msra.mxu0 0.0
        %3125 = vmatprep.subr.mxu0 0.0
        %3126 = vmatpush1.msra.mxu0 0.0
        %3127 = vmatprep.subr.mxu0 0.0
        %3128 = vmatpush1.msra.mxu0 0.0
        %3129 = vmatprep.subr.mxu0 0.0
        %3130 = vmatpush1.msra.mxu0 0.0
        %3131 = vmatprep.subr.mxu0 0.0
        %3132 = vmatpush1.msra.mxu0 0.0
        %3133 = vmatprep.subr.mxu0 0.0
        %3134 = vmatpush1.msra.mxu0 0.0
        %3135 = vmatprep.subr.mxu0 0.0
        %3136 = vmatpush1.msra.mxu0 0.0
        %3137 = vmatprep.subr.mxu0 0.0
        %3138 = vmatpush1.msra.mxu0 0.0
        %3139 = vmatprep.subr.mxu0 0.0
        %3140 = vmatpush1.msra.mxu0 0.0
        %3141 = vmatprep.subr.mxu0 0.0
        %3142 = vmatpush1.msra.mxu0 0.0
        %3143 = vmatprep.subr.mxu0 0.0
        %3144 = vmatpush1.msra.mxu0 0.0
        %3145 = vmatprep.subr.mxu0 0.0
        %3146 = vmatpush1.msra.mxu0 0.0
        %3147 = vmatprep.subr.mxu0 0.0
        %3148 = vmatpush1.msra.mxu0 0.0
        %3149 = vmatprep.subr.mxu0 0.0
        %3150 = vmatpush1.msra.mxu0 0.0
        %3151 = vmatprep.subr.mxu0 0.0
        %3152 = vmatpush1.msra.mxu0 0.0
        %3153 = vmatprep.subr.mxu0 0.0
        %3154 = vmatpush1.msra.mxu0 0.0
        %3155 = vmatprep.subr.mxu0 0.0
        %3156 = vmatpush1.msra.mxu0 0.0
        %3157 = vmatprep.subr.mxu0 0.0
        %3158 = vmatpush1.msra.mxu0 0.0
        %3159 = vmatprep.subr.mxu0 0.0
        %3160 = vmatpush1.msra.mxu0 0.0
        %3161 = vmatprep.subr.mxu0 0.0
        %3162 = vmatpush1.msra.mxu0 0.0
        %3163 = vmatprep.subr.mxu0 0.0
        %3164 = vmatpush1.msra.mxu0 0.0
        %3165 = vmatprep.mubr.f32.mxu0 0.0
        %3166 = vmatmul.mubr.f32.gmra.mrb[0].mxu0 %v3099
        %v3167 = vpop.f32.mrb[0].mxu0
        %v3168 = vadd.f32 0.0, %v3167
        %v3169 = vpop.f32.mrb[0].mxu0
        %3170 = vdwg.mxu0
        %3171 = vmatprep.subr.mxu0 0.0
        %3172 = vmatpush1.msra.mxu0 %v748
        %3173 = vmatprep.subr.mxu0 0.0
        %3174 = vmatpush1.msra.mxu0 %v749
        %3175 = vmatprep.subr.mxu0 0.0
        %3176 = vmatpush1.msra.mxu0 %v750
        %3177 = vmatprep.subr.mxu0 0.0
        %3178 = vmatpush1.msra.mxu0 %v751
        %3179 = vmatprep.subr.mxu0 0.0
        %3180 = vmatpush1.msra.mxu0 0.0
        %3181 = vmatprep.subr.mxu0 0.0
        %3182 = vmatpush1.msra.mxu0 0.0
        %3183 = vmatprep.subr.mxu0 0.0
        %3184 = vmatpush1.msra.mxu0 0.0
        %3185 = vmatprep.subr.mxu0 0.0
        %3186 = vmatpush1.msra.mxu0 0.0
        %3187 = vmatprep.subr.mxu0 0.0
        %3188 = vmatpush1.msra.mxu0 0.0
        %3189 = vmatprep.subr.mxu0 0.0
        %3190 = vmatpush1.msra.mxu0 0.0
        %3191 = vmatprep.subr.mxu0 0.0
        %3192 = vmatpush1.msra.mxu0 0.0
        %3193 = vmatprep.subr.mxu0 0.0
        %3194 = vmatpush1.msra.mxu0 0.0
        %3195 = vmatprep.subr.mxu0 0.0
        %3196 = vmatpush1.msra.mxu0 0.0
        %3197 = vmatprep.subr.mxu0 0.0
        %3198 = vmatpush1.msra.mxu0 0.0
        %3199 = vmatprep.subr.mxu0 0.0
        %3200 = vmatpush1.msra.mxu0 0.0
        %3201 = vmatprep.subr.mxu0 0.0
        %3202 = vmatpush1.msra.mxu0 0.0
        %3203 = vmatprep.subr.mxu0 0.0
        %3204 = vmatpush1.msra.mxu0 0.0
        %3205 = vmatprep.subr.mxu0 0.0
        %3206 = vmatpush1.msra.mxu0 0.0
        %3207 = vmatprep.subr.mxu0 0.0
        %3208 = vmatpush1.msra.mxu0 0.0
        %3209 = vmatprep.subr.mxu0 0.0
        %3210 = vmatpush1.msra.mxu0 0.0
        %3211 = vmatprep.subr.mxu0 0.0
        %3212 = vmatpush1.msra.mxu0 0.0
        %3213 = vmatprep.subr.mxu0 0.0
        %3214 = vmatpush1.msra.mxu0 0.0
        %3215 = vmatprep.subr.mxu0 0.0
        %3216 = vmatpush1.msra.mxu0 0.0
        %3217 = vmatprep.subr.mxu0 0.0
        %3218 = vmatpush1.msra.mxu0 0.0
        %3219 = vmatprep.subr.mxu0 0.0
        %3220 = vmatpush1.msra.mxu0 0.0
        %3221 = vmatprep.subr.mxu0 0.0
        %3222 = vmatpush1.msra.mxu0 0.0
        %3223 = vmatprep.subr.mxu0 0.0
        %3224 = vmatpush1.msra.mxu0 0.0
        %3225 = vmatprep.subr.mxu0 0.0
        %3226 = vmatpush1.msra.mxu0 0.0
        %3227 = vmatprep.subr.mxu0 0.0
        %3228 = vmatpush1.msra.mxu0 0.0
        %3229 = vmatprep.subr.mxu0 0.0
        %3230 = vmatpush1.msra.mxu0 0.0
        %3231 = vmatprep.subr.mxu0 0.0
        %3232 = vmatpush1.msra.mxu0 0.0
        %3233 = vmatprep.subr.mxu0 0.0
        %3234 = vmatpush1.msra.mxu0 0.0
        %3235 = vmatprep.mubr.f32.mxu0 0.0
        %3236 = vmatmul.mubr.f32.gmra.mrb[0].mxu0 %v3099
        %v3237 = vpop.f32.mrb[0].mxu0
        %v3238 = vadd.f32 0.0, %v3237
        %v3239 = vpop.f32.mrb[0].mxu0
        %3240 = vdwg.mxu0
        %v3242 = vrot.slane %v3168, 3
        %v3243 = vrot.slane %v3168, 4
        %v3244 = vrot.slane %v3168, 5
        %v3245 = vrot.slane %v3168, 6
        %v3246 = vrot.slane %v3168, 7
        %v3247 = vrot.slane %v3168, 1
        %v3248 = vrot.slane %v3168, 2
        %v3257 = vadd.f32 %v473, %v3242
        %v3258 = vadd.f32 %v478, %v3243
        %v3259 = vadd.f32 %v483, %v3244
        %v3260 = vadd.f32 %v488, %v3245
        %v3261 = vadd.f32 %v493, %v3246
        %v3262 = vadd.f32 %v498, %v3168
        %v3263 = vadd.f32 %v503, %v3247
        %v3264 = vadd.f32 %v508, %v3248
        %v3265 = vxor.u32 %v3257, 2147483648
        %v3266 = vxor.u32 %v3258, 2147483648
        %v3267 = vxor.u32 %v3259, 2147483648
        %v3268 = vxor.u32 %v3260, 2147483648
        %v3269 = vxor.u32 %v3261, 2147483648
        %v3270 = vxor.u32 %v3262, 2147483648
        %v3271 = vxor.u32 %v3263, 2147483648
        %v3272 = vxor.u32 %v3264, 2147483648
        %v3273 = vmul.f32 %v3265, 1.442695
        %v3274 = vpow.pop %v3273
        %v3275 = vmul.f32 %v3266, 1.442695
        %v3276 = vpow.pop %v3275
        %v3277 = vmul.f32 %v3267, 1.442695
        %v3278 = vpow.pop %v3277
        %v3279 = vmul.f32 %v3268, 1.442695
        %v3280 = vpow.pop %v3279
        %v3281 = vmul.f32 %v3269, 1.442695
        %v3282 = vpow.pop %v3281
        %v3283 = vmul.f32 %v3270, 1.442695
        %v3284 = vpow.pop %v3283
        %v3285 = vmul.f32 %v3271, 1.442695
        %v3286 = vpow.pop %v3285
        %v3287 = vmul.f32 %v3272, 1.442695
        %v3288 = vpow.pop %v3287
        %v3289 = vadd.f32 %v3274, 1.0
        %v3290 = vadd.f32 %v3276, 1.0
        %v3291 = vadd.f32 %v3278, 1.0
        %v3292 = vadd.f32 %v3280, 1.0
        %v3293 = vadd.f32 %v3282, 1.0
        %v3294 = vadd.f32 %v3284, 1.0
        %v3295 = vadd.f32 %v3286, 1.0
        %v3296 = vadd.f32 %v3288, 1.0
        %v3297 = vrcp.pop %v3289
        %v3298 = vmul.f32 1.0, %v3297
        %v3299 = vrcp.pop %v3290
        %v3300 = vmul.f32 1.0, %v3299
        %v3301 = vrcp.pop %v3291
        %v3302 = vmul.f32 1.0, %v3301
        %v3303 = vrcp.pop %v3292
        %v3304 = vmul.f32 1.0, %v3303
        %v3305 = vrcp.pop %v3293
        %v3306 = vmul.f32 1.0, %v3305
        %v3307 = vrcp.pop %v3294
        %v3308 = vmul.f32 1.0, %v3307
        %v3309 = vrcp.pop %v3295
        %v3310 = vmul.f32 1.0, %v3309
        %v3311 = vrcp.pop %v3296
        %v3312 = vmul.f32 1.0, %v3311
        %v3314 = vrot.slane %v3238, 3
        %v3315 = vrot.slane %v3238, 4
        %v3316 = vrot.slane %v3238, 5
        %v3317 = vrot.slane %v3238, 6
        %v3318 = vrot.slane %v3238, 7
        %v3319 = vrot.slane %v3238, 1
        %v3320 = vrot.slane %v3238, 2
        %v3329 = vadd.f32 %v589, %v3314
        %v3330 = vadd.f32 %v594, %v3315
        %v3331 = vadd.f32 %v599, %v3316
        %v3332 = vadd.f32 %v604, %v3317
        %v3333 = vadd.f32 %v609, %v3318
        %v3334 = vadd.f32 %v614, %v3238
        %v3335 = vadd.f32 %v619, %v3319
        %v3336 = vadd.f32 %v624, %v3320
        %v3337 = vxor.u32 %v3329, 2147483648
        %v3338 = vxor.u32 %v3330, 2147483648
        %v3339 = vxor.u32 %v3331, 2147483648
        %v3340 = vxor.u32 %v3332, 2147483648
        %v3341 = vxor.u32 %v3333, 2147483648
        %v3342 = vxor.u32 %v3334, 2147483648
        %v3343 = vxor.u32 %v3335, 2147483648
        %v3344 = vxor.u32 %v3336, 2147483648
        %v3345 = vmul.f32 %v3337, 1.442695
        %v3346 = vpow.pop %v3345
        %v3347 = vmul.f32 %v3338, 1.442695
        %v3348 = vpow.pop %v3347
        %v3349 = vmul.f32 %v3339, 1.442695
        %v3350 = vpow.pop %v3349
        %v3351 = vmul.f32 %v3340, 1.442695
        %v3352 = vpow.pop %v3351
        %v3353 = vmul.f32 %v3341, 1.442695
        %v3354 = vpow.pop %v3353
        %v3355 = vmul.f32 %v3342, 1.442695
        %v3356 = vpow.pop %v3355
        %v3357 = vmul.f32 %v3343, 1.442695
        %v3358 = vpow.pop %v3357
        %v3359 = vmul.f32 %v3344, 1.442695
        %v3360 = vpow.pop %v3359
        %v3361 = vadd.f32 %v3346, 1.0
        %v3362 = vadd.f32 %v3348, 1.0
        %v3363 = vadd.f32 %v3350, 1.0
        %v3364 = vadd.f32 %v3352, 1.0
        %v3365 = vadd.f32 %v3354, 1.0
        %v3366 = vadd.f32 %v3356, 1.0
        %v3367 = vadd.f32 %v3358, 1.0
        %v3368 = vadd.f32 %v3360, 1.0
        %v3369 = vrcp.pop %v3361
        %v3370 = vmul.f32 1.0, %v3369
        %v3371 = vrcp.pop %v3362
        %v3372 = vmul.f32 1.0, %v3371
        %v3373 = vrcp.pop %v3363
        %v3374 = vmul.f32 1.0, %v3373
        %v3375 = vrcp.pop %v3364
        %v3376 = vmul.f32 1.0, %v3375
        %v3377 = vrcp.pop %v3365
        %v3378 = vmul.f32 1.0, %v3377
        %v3379 = vrcp.pop %v3366
        %v3380 = vmul.f32 1.0, %v3379
        %v3381 = vrcp.pop %v3367
        %v3382 = vmul.f32 1.0, %v3381
        %v3383 = vrcp.pop %v3368
        %v3384 = vmul.f32 1.0, %v3383
        %3385 = vmatprep.subr.mxu0 0.0
        %3386 = vmatpush1.msra.mxu0 %v753
        %3387 = vmatprep.subr.mxu0 0.0
        %3388 = vmatpush1.msra.mxu0 %v754
        %3389 = vmatprep.subr.mxu0 0.0
        %3390 = vmatpush1.msra.mxu0 %v755
        %3391 = vmatprep.subr.mxu0 0.0
        %3392 = vmatpush1.msra.mxu0 %v756
        %3393 = vmatprep.subr.mxu0 0.0
        %3394 = vmatpush1.msra.mxu0 0.0
        %3395 = vmatprep.subr.mxu0 0.0
        %3396 = vmatpush1.msra.mxu0 0.0
        %3397 = vmatprep.subr.mxu0 0.0
        %3398 = vmatpush1.msra.mxu0 0.0
        %3399 = vmatprep.subr.mxu0 0.0
        %3400 = vmatpush1.msra.mxu0 0.0
        %3401 = vmatprep.subr.mxu0 0.0
        %3402 = vmatpush1.msra.mxu0 0.0
        %3403 = vmatprep.subr.mxu0 0.0
        %3404 = vmatpush1.msra.mxu0 0.0
        %3405 = vmatprep.subr.mxu0 0.0
        %3406 = vmatpush1.msra.mxu0 0.0
        %3407 = vmatprep.subr.mxu0 0.0
        %3408 = vmatpush1.msra.mxu0 0.0
        %3409 = vmatprep.subr.mxu0 0.0
        %3410 = vmatpush1.msra.mxu0 0.0
        %3411 = vmatprep.subr.mxu0 0.0
        %3412 = vmatpush1.msra.mxu0 0.0
        %3413 = vmatprep.subr.mxu0 0.0
        %3414 = vmatpush1.msra.mxu0 0.0
        %3415 = vmatprep.subr.mxu0 0.0
        %3416 = vmatpush1.msra.mxu0 0.0
        %3417 = vmatprep.subr.mxu0 0.0
        %3418 = vmatpush1.msra.mxu0 0.0
        %3419 = vmatprep.subr.mxu0 0.0
        %3420 = vmatpush1.msra.mxu0 0.0
        %3421 = vmatprep.subr.mxu0 0.0
        %3422 = vmatpush1.msra.mxu0 0.0
        %3423 = vmatprep.subr.mxu0 0.0
        %3424 = vmatpush1.msra.mxu0 0.0
        %3425 = vmatprep.subr.mxu0 0.0
        %3426 = vmatpush1.msra.mxu0 0.0
        %3427 = vmatprep.subr.mxu0 0.0
        %3428 = vmatpush1.msra.mxu0 0.0
        %3429 = vmatprep.subr.mxu0 0.0
        %3430 = vmatpush1.msra.mxu0 0.0
        %3431 = vmatprep.subr.mxu0 0.0
        %3432 = vmatpush1.msra.mxu0 0.0
        %3433 = vmatprep.subr.mxu0 0.0
        %3434 = vmatpush1.msra.mxu0 0.0
        %3435 = vmatprep.subr.mxu0 0.0
        %3436 = vmatpush1.msra.mxu0 0.0
        %3437 = vmatprep.subr.mxu0 0.0
        %3438 = vmatpush1.msra.mxu0 0.0
        %3439 = vmatprep.subr.mxu0 0.0
        %3440 = vmatpush1.msra.mxu0 0.0
        %3441 = vmatprep.subr.mxu0 0.0
        %3442 = vmatpush1.msra.mxu0 0.0
        %3443 = vmatprep.subr.mxu0 0.0
        %3444 = vmatpush1.msra.mxu0 0.0
        %3445 = vmatprep.subr.mxu0 0.0
        %3446 = vmatpush1.msra.mxu0 0.0
        %3447 = vmatprep.subr.mxu0 0.0
        %3448 = vmatpush1.msra.mxu0 0.0
        %3449 = vmatprep.mubr.f32.mxu0 0.0
        %3450 = vmatmul.mubr.f32.gmra.mrb[0].mxu0 %v3099
        %v3451 = vpop.f32.mrb[0].mxu0
        %v3452 = vadd.f32 %v762, %v3451
        %v3453 = vpop.f32.mrb[0].mxu0
        %3454 = vdwg.mxu0
        %v3456 = vrot.slane %v3452, 3
        %v3457 = vrot.slane %v3452, 4
        %v3458 = vrot.slane %v3452, 5
        %v3459 = vrot.slane %v3452, 6
        %v3460 = vrot.slane %v3452, 7
        %v3461 = vrot.slane %v3452, 1
        %v3462 = vrot.slane %v3452, 2
        %v3471 = vmul.f32 %v3298, %v3456
        %v3472 = vmul.f32 %v3300, %v3457
        %v3473 = vmul.f32 %v3302, %v3458
        %v3474 = vmul.f32 %v3304, %v3459
        %v3475 = vmul.f32 %v3306, %v3460
        %v3476 = vmul.f32 %v3308, %v3452
        %v3477 = vmul.f32 %v3310, %v3461
        %v3478 = vmul.f32 %v3312, %v3462
        %v3479 = vadd.f32 %v705, %v3471
        %v3480 = vadd.f32 %v710, %v3472
        %v3481 = vadd.f32 %v715, %v3473
        %v3482 = vadd.f32 %v720, %v3474
        %v3483 = vadd.f32 %v725, %v3475
        %v3484 = vadd.f32 %v730, %v3476
        %v3485 = vadd.f32 %v735, %v3477
        %v3486 = vadd.f32 %v740, %v3478
        %v3487 = vtanh.pop %v3479
        %v3488 = vtanh.pop %v3480
        %v3489 = vtanh.pop %v3481
        %v3490 = vtanh.pop %v3482
        %v3491 = vtanh.pop %v3483
        %v3492 = vtanh.pop %v3484
        %v3493 = vtanh.pop %v3485
        %v3494 = vtanh.pop %v3486
        %v3495 = vsub.f32 1.0, %v3370
        %v3496 = vsub.f32 1.0, %v3372
        %v3497 = vsub.f32 1.0, %v3374
        %v3498 = vsub.f32 1.0, %v3376
        %v3499 = vsub.f32 1.0, %v3378
        %v3500 = vsub.f32 1.0, %v3380
        %v3501 = vsub.f32 1.0, %v3382
        %v3502 = vsub.f32 1.0, %v3384
        %v3503 = vmul.f32 %v3495, %v3487
        %v3504 = vmul.f32 %v3496, %v3488
        %v3505 = vmul.f32 %v3497, %v3489
        %v3506 = vmul.f32 %v3498, %v3490
        %v3507 = vmul.f32 %v3499, %v3491
        %v3508 = vmul.f32 %v3500, %v3492
        %v3509 = vmul.f32 %v3501, %v3493
        %v3510 = vmul.f32 %v3502, %v3494
        %v3511 = vrot.slane %v3069, 7
        %v3512 = vrot.slane %v3070, 7
        %v3513 = vrot.slane %v3071, 7
        %v3514 = vrot.slane %v3072, 7
        %v3515 = vrot.slane %v3073, 7
        %v3516 = vrot.slane %v3075, 7
        %v3517 = vrot.slane %v3076, 7
        %v3526 = vmul.f32 %v3370, %v3511
        %v3527 = vmul.f32 %v3372, %v3512
        %v3528 = vmul.f32 %v3374, %v3513
        %v3529 = vmul.f32 %v3376, %v3514
        %v3530 = vmul.f32 %v3378, %v3515
        %v3531 = vmul.f32 %v3380, %v3093
        %v3532 = vmul.f32 %v3382, %v3516
        %v3533 = vmul.f32 %v3384, %v3517
        %v3534 = vadd.f32 %v3503, %v3526
        %v3535 = vadd.f32 %v3504, %v3527
        %v3536 = vadd.f32 %v3505, %v3528
        %v3537 = vadd.f32 %v3506, %v3529
        %v3538 = vadd.f32 %v3507, %v3530
        %v3539 = vadd.f32 %v3508, %v3531
        %v3540 = vadd.f32 %v3509, %v3532
        %v3541 = vadd.f32 %v3510, %v3533
        %v3550 = vrot.slane %v3534, 5
        %v3551 = vrot.slane %v3535, 4
        %v3552 = vsel %vm1219, %v3551, %v3550
        %v3553 = vrot.slane %v3536, 3
        %v3554 = vsel %vm1222, %v3553, %v3552
        %v3555 = vrot.slane %v3537, 2
        %v3556 = vsel %vm1225, %v3555, %v3554
        %v3557 = vrot.slane %v3538, 1
        %v3558 = vsel %vm1228, %v3557, %v3556
        %v3559 = vsel %vm1231, %v3539, %v3558
        %v3560 = vrot.slane %v3540, 7
        %v3561 = vsel %vm1234, %v3560, %v3559
        %v3562 = vrot.slane %v3541, 6
        %v3563 = vsel %vm1237, %v3562, %v3561
        %v3564 = vsel %vm765, %v3563, 0
        %3566 = vmatprep.subr.mxu0 0.0
        %3567 = vmatpush1.msra.mxu0 %v743
        %3568 = vmatprep.subr.mxu0 0.0
        %3569 = vmatpush1.msra.mxu0 %v744
        %3570 = vmatprep.subr.mxu0 0.0
        %3571 = vmatpush1.msra.mxu0 %v745
        %3572 = vmatprep.subr.mxu0 0.0
        %3573 = vmatpush1.msra.mxu0 %v746
        %3574 = vmatprep.subr.mxu0 0.0
        %3575 = vmatpush1.msra.mxu0 0.0
        %3576 = vmatprep.subr.mxu0 0.0
        %3577 = vmatpush1.msra.mxu0 0.0
        %3578 = vmatprep.subr.mxu0 0.0
        %3579 = vmatpush1.msra.mxu0 0.0
        %3580 = vmatprep.subr.mxu0 0.0
        %3581 = vmatpush1.msra.mxu0 0.0
        %3582 = vmatprep.subr.mxu0 0.0
        %3583 = vmatpush1.msra.mxu0 0.0
        %3584 = vmatprep.subr.mxu0 0.0
        %3585 = vmatpush1.msra.mxu0 0.0
        %3586 = vmatprep.subr.mxu0 0.0
        %3587 = vmatpush1.msra.mxu0 0.0
        %3588 = vmatprep.subr.mxu0 0.0
        %3589 = vmatpush1.msra.mxu0 0.0
        %3590 = vmatprep.subr.mxu0 0.0
        %3591 = vmatpush1.msra.mxu0 0.0
        %3592 = vmatprep.subr.mxu0 0.0
        %3593 = vmatpush1.msra.mxu0 0.0
        %3594 = vmatprep.subr.mxu0 0.0
        %3595 = vmatpush1.msra.mxu0 0.0
        %3596 = vmatprep.subr.mxu0 0.0
        %3597 = vmatpush1.msra.mxu0 0.0
        %3598 = vmatprep.subr.mxu0 0.0
        %3599 = vmatpush1.msra.mxu0 0.0
        %3600 = vmatprep.subr.mxu0 0.0
        %3601 = vmatpush1.msra.mxu0 0.0
        %3602 = vmatprep.subr.mxu0 0.0
        %3603 = vmatpush1.msra.mxu0 0.0
        %3604 = vmatprep.subr.mxu0 0.0
        %3605 = vmatpush1.msra.mxu0 0.0
        %3606 = vmatprep.subr.mxu0 0.0
        %3607 = vmatpush1.msra.mxu0 0.0
        %3608 = vmatprep.subr.mxu0 0.0
        %3609 = vmatpush1.msra.mxu0 0.0
        %3610 = vmatprep.subr.mxu0 0.0
        %3611 = vmatpush1.msra.mxu0 0.0
        %3612 = vmatprep.subr.mxu0 0.0
        %3613 = vmatpush1.msra.mxu0 0.0
        %3614 = vmatprep.subr.mxu0 0.0
        %3615 = vmatpush1.msra.mxu0 0.0
        %3616 = vmatprep.subr.mxu0 0.0
        %3617 = vmatpush1.msra.mxu0 0.0
        %3618 = vmatprep.subr.mxu0 0.0
        %3619 = vmatpush1.msra.mxu0 0.0
        %3620 = vmatprep.subr.mxu0 0.0
        %3621 = vmatpush1.msra.mxu0 0.0
        %3622 = vmatprep.subr.mxu0 0.0
        %3623 = vmatpush1.msra.mxu0 0.0
        %3624 = vmatprep.subr.mxu0 0.0
        %3625 = vmatpush1.msra.mxu0 0.0
        %3626 = vmatprep.subr.mxu0 0.0
        %3627 = vmatpush1.msra.mxu0 0.0
        %3628 = vmatprep.subr.mxu0 0.0
        %3629 = vmatpush1.msra.mxu0 0.0
        %3630 = vmatprep.mubr.f32.mxu0 0.0
        %3631 = vmatmul.mubr.f32.gmra.mrb[0].mxu0 %v3564
        %v3632 = vpop.f32.mrb[0].mxu0
        %v3633 = vadd.f32 0.0, %v3632
        %v3634 = vpop.f32.mrb[0].mxu0
        %3635 = vdwg.mxu0
        %3636 = vmatprep.subr.mxu0 0.0
        %3637 = vmatpush1.msra.mxu0 %v748
        %3638 = vmatprep.subr.mxu0 0.0
        %3639 = vmatpush1.msra.mxu0 %v749
        %3640 = vmatprep.subr.mxu0 0.0
        %3641 = vmatpush1.msra.mxu0 %v750
        %3642 = vmatprep.subr.mxu0 0.0
        %3643 = vmatpush1.msra.mxu0 %v751
        %3644 = vmatprep.subr.mxu0 0.0
        %3645 = vmatpush1.msra.mxu0 0.0
        %3646 = vmatprep.subr.mxu0 0.0
        %3647 = vmatpush1.msra.mxu0 0.0
        %3648 = vmatprep.subr.mxu0 0.0
        %3649 = vmatpush1.msra.mxu0 0.0
        %3650 = vmatprep.subr.mxu0 0.0
        %3651 = vmatpush1.msra.mxu0 0.0
        %3652 = vmatprep.subr.mxu0 0.0
        %3653 = vmatpush1.msra.mxu0 0.0
        %3654 = vmatprep.subr.mxu0 0.0
        %3655 = vmatpush1.msra.mxu0 0.0
        %3656 = vmatprep.subr.mxu0 0.0
        %3657 = vmatpush1.msra.mxu0 0.0
        %3658 = vmatprep.subr.mxu0 0.0
        %3659 = vmatpush1.msra.mxu0 0.0
        %3660 = vmatprep.subr.mxu0 0.0
        %3661 = vmatpush1.msra.mxu0 0.0
        %3662 = vmatprep.subr.mxu0 0.0
        %3663 = vmatpush1.msra.mxu0 0.0
        %3664 = vmatprep.subr.mxu0 0.0
        %3665 = vmatpush1.msra.mxu0 0.0
        %3666 = vmatprep.subr.mxu0 0.0
        %3667 = vmatpush1.msra.mxu0 0.0
        %3668 = vmatprep.subr.mxu0 0.0
        %3669 = vmatpush1.msra.mxu0 0.0
        %3670 = vmatprep.subr.mxu0 0.0
        %3671 = vmatpush1.msra.mxu0 0.0
        %3672 = vmatprep.subr.mxu0 0.0
        %3673 = vmatpush1.msra.mxu0 0.0
        %3674 = vmatprep.subr.mxu0 0.0
        %3675 = vmatpush1.msra.mxu0 0.0
        %3676 = vmatprep.subr.mxu0 0.0
        %3677 = vmatpush1.msra.mxu0 0.0
        %3678 = vmatprep.subr.mxu0 0.0
        %3679 = vmatpush1.msra.mxu0 0.0
        %3680 = vmatprep.subr.mxu0 0.0
        %3681 = vmatpush1.msra.mxu0 0.0
        %3682 = vmatprep.subr.mxu0 0.0
        %3683 = vmatpush1.msra.mxu0 0.0
        %3684 = vmatprep.subr.mxu0 0.0
        %3685 = vmatpush1.msra.mxu0 0.0
        %3686 = vmatprep.subr.mxu0 0.0
        %3687 = vmatpush1.msra.mxu0 0.0
        %3688 = vmatprep.subr.mxu0 0.0
        %3689 = vmatpush1.msra.mxu0 0.0
        %3690 = vmatprep.subr.mxu0 0.0
        %3691 = vmatpush1.msra.mxu0 0.0
        %3692 = vmatprep.subr.mxu0 0.0
        %3693 = vmatpush1.msra.mxu0 0.0
        %3694 = vmatprep.subr.mxu0 0.0
        %3695 = vmatpush1.msra.mxu0 0.0
        %3696 = vmatprep.subr.mxu0 0.0
        %3697 = vmatpush1.msra.mxu0 0.0
        %3698 = vmatprep.subr.mxu0 0.0
        %3699 = vmatpush1.msra.mxu0 0.0
        %3700 = vmatprep.mubr.f32.mxu0 0.0
        %3701 = vmatmul.mubr.f32.gmra.mrb[0].mxu0 %v3564
        %v3702 = vpop.f32.mrb[0].mxu0
        %v3703 = vadd.f32 0.0, %v3702
        %v3704 = vpop.f32.mrb[0].mxu0
        %3705 = vdwg.mxu0
        %v3707 = vrot.slane %v3633, 2
        %v3708 = vrot.slane %v3633, 3
        %v3709 = vrot.slane %v3633, 4
        %v3710 = vrot.slane %v3633, 5
        %v3711 = vrot.slane %v3633, 6
        %v3712 = vrot.slane %v3633, 7
        %v3713 = vrot.slane %v3633, 1
        %v3722 = vadd.f32 %v473, %v3707
        %v3723 = vadd.f32 %v478, %v3708
        %v3724 = vadd.f32 %v483, %v3709
        %v3725 = vadd.f32 %v488, %v3710
        %v3726 = vadd.f32 %v493, %v3711
        %v3727 = vadd.f32 %v498, %v3712
        %v3728 = vadd.f32 %v503, %v3633
        %v3729 = vadd.f32 %v508, %v3713
        %v3730 = vxor.u32 %v3722, 2147483648
        %v3731 = vxor.u32 %v3723, 2147483648
        %v3732 = vxor.u32 %v3724, 2147483648
        %v3733 = vxor.u32 %v3725, 2147483648
        %v3734 = vxor.u32 %v3726, 2147483648
        %v3735 = vxor.u32 %v3727, 2147483648
        %v3736 = vxor.u32 %v3728, 2147483648
        %v3737 = vxor.u32 %v3729, 2147483648
        %v3738 = vmul.f32 %v3730, 1.442695
        %v3739 = vpow.pop %v3738
        %v3740 = vmul.f32 %v3731, 1.442695
        %v3741 = vpow.pop %v3740
        %v3742 = vmul.f32 %v3732, 1.442695
        %v3743 = vpow.pop %v3742
        %v3744 = vmul.f32 %v3733, 1.442695
        %v3745 = vpow.pop %v3744
        %v3746 = vmul.f32 %v3734, 1.442695
        %v3747 = vpow.pop %v3746
        %v3748 = vmul.f32 %v3735, 1.442695
        %v3749 = vpow.pop %v3748
        %v3750 = vmul.f32 %v3736, 1.442695
        %v3751 = vpow.pop %v3750
        %v3752 = vmul.f32 %v3737, 1.442695
        %v3753 = vpow.pop %v3752
        %v3754 = vadd.f32 %v3739, 1.0
        %v3755 = vadd.f32 %v3741, 1.0
        %v3756 = vadd.f32 %v3743, 1.0
        %v3757 = vadd.f32 %v3745, 1.0
        %v3758 = vadd.f32 %v3747, 1.0
        %v3759 = vadd.f32 %v3749, 1.0
        %v3760 = vadd.f32 %v3751, 1.0
        %v3761 = vadd.f32 %v3753, 1.0
        %v3762 = vrcp.pop %v3754
        %v3763 = vmul.f32 1.0, %v3762
        %v3764 = vrcp.pop %v3755
        %v3765 = vmul.f32 1.0, %v3764
        %v3766 = vrcp.pop %v3756
        %v3767 = vmul.f32 1.0, %v3766
        %v3768 = vrcp.pop %v3757
        %v3769 = vmul.f32 1.0, %v3768
        %v3770 = vrcp.pop %v3758
        %v3771 = vmul.f32 1.0, %v3770
        %v3772 = vrcp.pop %v3759
        %v3773 = vmul.f32 1.0, %v3772
        %v3774 = vrcp.pop %v3760
        %v3775 = vmul.f32 1.0, %v3774
        %v3776 = vrcp.pop %v3761
        %v3777 = vmul.f32 1.0, %v3776
        %v3779 = vrot.slane %v3703, 2
        %v3780 = vrot.slane %v3703, 3
        %v3781 = vrot.slane %v3703, 4
        %v3782 = vrot.slane %v3703, 5
        %v3783 = vrot.slane %v3703, 6
        %v3784 = vrot.slane %v3703, 7
        %v3785 = vrot.slane %v3703, 1
        %v3794 = vadd.f32 %v589, %v3779
        %v3795 = vadd.f32 %v594, %v3780
        %v3796 = vadd.f32 %v599, %v3781
        %v3797 = vadd.f32 %v604, %v3782
        %v3798 = vadd.f32 %v609, %v3783
        %v3799 = vadd.f32 %v614, %v3784
        %v3800 = vadd.f32 %v619, %v3703
        %v3801 = vadd.f32 %v624, %v3785
        %v3802 = vxor.u32 %v3794, 2147483648
        %v3803 = vxor.u32 %v3795, 2147483648
        %v3804 = vxor.u32 %v3796, 2147483648
        %v3805 = vxor.u32 %v3797, 2147483648
        %v3806 = vxor.u32 %v3798, 2147483648
        %v3807 = vxor.u32 %v3799, 2147483648
        %v3808 = vxor.u32 %v3800, 2147483648
        %v3809 = vxor.u32 %v3801, 2147483648
        %v3810 = vmul.f32 %v3802, 1.442695
        %v3811 = vpow.pop %v3810
        %v3812 = vmul.f32 %v3803, 1.442695
        %v3813 = vpow.pop %v3812
        %v3814 = vmul.f32 %v3804, 1.442695
        %v3815 = vpow.pop %v3814
        %v3816 = vmul.f32 %v3805, 1.442695
        %v3817 = vpow.pop %v3816
        %v3818 = vmul.f32 %v3806, 1.442695
        %v3819 = vpow.pop %v3818
        %v3820 = vmul.f32 %v3807, 1.442695
        %v3821 = vpow.pop %v3820
        %v3822 = vmul.f32 %v3808, 1.442695
        %v3823 = vpow.pop %v3822
        %v3824 = vmul.f32 %v3809, 1.442695
        %v3825 = vpow.pop %v3824
        %v3826 = vadd.f32 %v3811, 1.0
        %v3827 = vadd.f32 %v3813, 1.0
        %v3828 = vadd.f32 %v3815, 1.0
        %v3829 = vadd.f32 %v3817, 1.0
        %v3830 = vadd.f32 %v3819, 1.0
        %v3831 = vadd.f32 %v3821, 1.0
        %v3832 = vadd.f32 %v3823, 1.0
        %v3833 = vadd.f32 %v3825, 1.0
        %v3834 = vrcp.pop %v3826
        %v3835 = vmul.f32 1.0, %v3834
        %v3836 = vrcp.pop %v3827
        %v3837 = vmul.f32 1.0, %v3836
        %v3838 = vrcp.pop %v3828
        %v3839 = vmul.f32 1.0, %v3838
        %v3840 = vrcp.pop %v3829
        %v3841 = vmul.f32 1.0, %v3840
        %v3842 = vrcp.pop %v3830
        %v3843 = vmul.f32 1.0, %v3842
        %v3844 = vrcp.pop %v3831
        %v3845 = vmul.f32 1.0, %v3844
        %v3846 = vrcp.pop %v3832
        %v3847 = vmul.f32 1.0, %v3846
        %v3848 = vrcp.pop %v3833
        %v3849 = vmul.f32 1.0, %v3848
        %3850 = vmatprep.subr.mxu0 0.0
        %3851 = vmatpush1.msra.mxu0 %v753
        %3852 = vmatprep.subr.mxu0 0.0
        %3853 = vmatpush1.msra.mxu0 %v754
        %3854 = vmatprep.subr.mxu0 0.0
        %3855 = vmatpush1.msra.mxu0 %v755
        %3856 = vmatprep.subr.mxu0 0.0
        %3857 = vmatpush1.msra.mxu0 %v756
        %3858 = vmatprep.subr.mxu0 0.0
        %3859 = vmatpush1.msra.mxu0 0.0
        %3860 = vmatprep.subr.mxu0 0.0
        %3861 = vmatpush1.msra.mxu0 0.0
        %3862 = vmatprep.subr.mxu0 0.0
        %3863 = vmatpush1.msra.mxu0 0.0
        %3864 = vmatprep.subr.mxu0 0.0
        %3865 = vmatpush1.msra.mxu0 0.0
        %3866 = vmatprep.subr.mxu0 0.0
        %3867 = vmatpush1.msra.mxu0 0.0
        %3868 = vmatprep.subr.mxu0 0.0
        %3869 = vmatpush1.msra.mxu0 0.0
        %3870 = vmatprep.subr.mxu0 0.0
        %3871 = vmatpush1.msra.mxu0 0.0
        %3872 = vmatprep.subr.mxu0 0.0
        %3873 = vmatpush1.msra.mxu0 0.0
        %3874 = vmatprep.subr.mxu0 0.0
        %3875 = vmatpush1.msra.mxu0 0.0
        %3876 = vmatprep.subr.mxu0 0.0
        %3877 = vmatpush1.msra.mxu0 0.0
        %3878 = vmatprep.subr.mxu0 0.0
        %3879 = vmatpush1.msra.mxu0 0.0
        %3880 = vmatprep.subr.mxu0 0.0
        %3881 = vmatpush1.msra.mxu0 0.0
        %3882 = vmatprep.subr.mxu0 0.0
        %3883 = vmatpush1.msra.mxu0 0.0
        %3884 = vmatprep.subr.mxu0 0.0
        %3885 = vmatpush1.msra.mxu0 0.0
        %3886 = vmatprep.subr.mxu0 0.0
        %3887 = vmatpush1.msra.mxu0 0.0
        %3888 = vmatprep.subr.mxu0 0.0
        %3889 = vmatpush1.msra.mxu0 0.0
        %3890 = vmatprep.subr.mxu0 0.0
        %3891 = vmatpush1.msra.mxu0 0.0
        %3892 = vmatprep.subr.mxu0 0.0
        %3893 = vmatpush1.msra.mxu0 0.0
        %3894 = vmatprep.subr.mxu0 0.0
        %3895 = vmatpush1.msra.mxu0 0.0
        %3896 = vmatprep.subr.mxu0 0.0
        %3897 = vmatpush1.msra.mxu0 0.0
        %3898 = vmatprep.subr.mxu0 0.0
        %3899 = vmatpush1.msra.mxu0 0.0
        %3900 = vmatprep.subr.mxu0 0.0
        %3901 = vmatpush1.msra.mxu0 0.0
        %3902 = vmatprep.subr.mxu0 0.0
        %3903 = vmatpush1.msra.mxu0 0.0
        %3904 = vmatprep.subr.mxu0 0.0
        %3905 = vmatpush1.msra.mxu0 0.0
        %3906 = vmatprep.subr.mxu0 0.0
        %3907 = vmatpush1.msra.mxu0 0.0
        %3908 = vmatprep.subr.mxu0 0.0
        %3909 = vmatpush1.msra.mxu0 0.0
        %3910 = vmatprep.subr.mxu0 0.0
        %3911 = vmatpush1.msra.mxu0 0.0
        %3912 = vmatprep.subr.mxu0 0.0
        %3913 = vmatpush1.msra.mxu0 0.0
        %3914 = vmatprep.mubr.f32.mxu0 0.0
        %3915 = vmatmul.mubr.f32.gmra.mrb[0].mxu0 %v3564
        %v3916 = vpop.f32.mrb[0].mxu0
        %v3917 = vadd.f32 %v762, %v3916
        %v3918 = vpop.f32.mrb[0].mxu0
        %3919 = vdwg.mxu0
        %v3921 = vrot.slane %v3917, 2
        %v3922 = vrot.slane %v3917, 3
        %v3923 = vrot.slane %v3917, 4
        %v3924 = vrot.slane %v3917, 5
        %v3925 = vrot.slane %v3917, 6
        %v3926 = vrot.slane %v3917, 7
        %v3927 = vrot.slane %v3917, 1
        %v3936 = vmul.f32 %v3763, %v3921
        %v3937 = vmul.f32 %v3765, %v3922
        %v3938 = vmul.f32 %v3767, %v3923
        %v3939 = vmul.f32 %v3769, %v3924
        %v3940 = vmul.f32 %v3771, %v3925
        %v3941 = vmul.f32 %v3773, %v3926
        %v3942 = vmul.f32 %v3775, %v3917
        %v3943 = vmul.f32 %v3777, %v3927
        %v3944 = vadd.f32 %v705, %v3936
        %v3945 = vadd.f32 %v710, %v3937
        %v3946 = vadd.f32 %v715, %v3938
        %v3947 = vadd.f32 %v720, %v3939
        %v3948 = vadd.f32 %v725, %v3940
        %v3949 = vadd.f32 %v730, %v3941
        %v3950 = vadd.f32 %v735, %v3942
        %v3951 = vadd.f32 %v740, %v3943
        %v3952 = vtanh.pop %v3944
        %v3953 = vtanh.pop %v3945
        %v3954 = vtanh.pop %v3946
        %v3955 = vtanh.pop %v3947
        %v3956 = vtanh.pop %v3948
        %v3957 = vtanh.pop %v3949
        %v3958 = vtanh.pop %v3950
        %v3959 = vtanh.pop %v3951
        %v3960 = vsub.f32 1.0, %v3835
        %v3961 = vsub.f32 1.0, %v3837
        %v3962 = vsub.f32 1.0, %v3839
        %v3963 = vsub.f32 1.0, %v3841
        %v3964 = vsub.f32 1.0, %v3843
        %v3965 = vsub.f32 1.0, %v3845
        %v3966 = vsub.f32 1.0, %v3847
        %v3967 = vsub.f32 1.0, %v3849
        %v3968 = vmul.f32 %v3960, %v3952
        %v3969 = vmul.f32 %v3961, %v3953
        %v3970 = vmul.f32 %v3962, %v3954
        %v3971 = vmul.f32 %v3963, %v3955
        %v3972 = vmul.f32 %v3964, %v3956
        %v3973 = vmul.f32 %v3965, %v3957
        %v3974 = vmul.f32 %v3966, %v3958
        %v3975 = vmul.f32 %v3967, %v3959
        %v3976 = vrot.slane %v3534, 7
        %v3977 = vrot.slane %v3535, 7
        %v3978 = vrot.slane %v3536, 7
        %v3979 = vrot.slane %v3537, 7
        %v3980 = vrot.slane %v3538, 7
        %v3981 = vrot.slane %v3539, 7
        %v3982 = vrot.slane %v3541, 7
        %v3991 = vmul.f32 %v3835, %v3976
        %v3992 = vmul.f32 %v3837, %v3977
        %v3993 = vmul.f32 %v3839, %v3978
        %v3994 = vmul.f32 %v3841, %v3979
        %v3995 = vmul.f32 %v3843, %v3980
        %v3996 = vmul.f32 %v3845, %v3981
        %v3997 = vmul.f32 %v3847, %v3560
        %v3998 = vmul.f32 %v3849, %v3982
        %v3999 = vadd.f32 %v3968, %v3991
        %v4000 = vadd.f32 %v3969, %v3992
        %v4001 = vadd.f32 %v3970, %v3993
        %v4002 = vadd.f32 %v3971, %v3994
        %v4003 = vadd.f32 %v3972, %v3995
        %v4004 = vadd.f32 %v3973, %v3996
        %v4005 = vadd.f32 %v3974, %v3997
        %v4006 = vadd.f32 %v3975, %v3998
        %v4015 = vrot.slane %v3999, 6
        %v4016 = vrot.slane %v4000, 5
        %v4017 = vsel %vm1219, %v4016, %v4015
        %v4018 = vrot.slane %v4001, 4
        %v4019 = vsel %vm1222, %v4018, %v4017
        %v4020 = vrot.slane %v4002, 3
        %v4021 = vsel %vm1225, %v4020, %v4019
        %v4022 = vrot.slane %v4003, 2
        %v4023 = vsel %vm1228, %v4022, %v4021
        %v4024 = vrot.slane %v4004, 1
        %v4025 = vsel %vm1231, %v4024, %v4023
        %v4026 = vsel %vm1234, %v4005, %v4025
        %v4027 = vrot.slane %v4006, 7
        %v4028 = vsel %vm1237, %v4027, %v4026
        %v4029 = vsel %vm765, %v4028, 0
        %4031 = vmatprep.subr.mxu0 0.0
        %4032 = vmatpush1.msra.mxu0 %v743
        %4033 = vmatprep.subr.mxu0 0.0
        %4034 = vmatpush1.msra.mxu0 %v744
        %4035 = vmatprep.subr.mxu0 0.0
        %4036 = vmatpush1.msra.mxu0 %v745
        %4037 = vmatprep.subr.mxu0 0.0
        %4038 = vmatpush1.msra.mxu0 %v746
        %4039 = vmatprep.subr.mxu0 0.0
        %4040 = vmatpush1.msra.mxu0 0.0
        %4041 = vmatprep.subr.mxu0 0.0
        %4042 = vmatpush1.msra.mxu0 0.0
        %4043 = vmatprep.subr.mxu0 0.0
        %4044 = vmatpush1.msra.mxu0 0.0
        %4045 = vmatprep.subr.mxu0 0.0
        %4046 = vmatpush1.msra.mxu0 0.0
        %4047 = vmatprep.subr.mxu0 0.0
        %4048 = vmatpush1.msra.mxu0 0.0
        %4049 = vmatprep.subr.mxu0 0.0
        %4050 = vmatpush1.msra.mxu0 0.0
        %4051 = vmatprep.subr.mxu0 0.0
        %4052 = vmatpush1.msra.mxu0 0.0
        %4053 = vmatprep.subr.mxu0 0.0
        %4054 = vmatpush1.msra.mxu0 0.0
        %4055 = vmatprep.subr.mxu0 0.0
        %4056 = vmatpush1.msra.mxu0 0.0
        %4057 = vmatprep.subr.mxu0 0.0
        %4058 = vmatpush1.msra.mxu0 0.0
        %4059 = vmatprep.subr.mxu0 0.0
        %4060 = vmatpush1.msra.mxu0 0.0
        %4061 = vmatprep.subr.mxu0 0.0
        %4062 = vmatpush1.msra.mxu0 0.0
        %4063 = vmatprep.subr.mxu0 0.0
        %4064 = vmatpush1.msra.mxu0 0.0
        %4065 = vmatprep.subr.mxu0 0.0
        %4066 = vmatpush1.msra.mxu0 0.0
        %4067 = vmatprep.subr.mxu0 0.0
        %4068 = vmatpush1.msra.mxu0 0.0
        %4069 = vmatprep.subr.mxu0 0.0
        %4070 = vmatpush1.msra.mxu0 0.0
        %4071 = vmatprep.subr.mxu0 0.0
        %4072 = vmatpush1.msra.mxu0 0.0
        %4073 = vmatprep.subr.mxu0 0.0
        %4074 = vmatpush1.msra.mxu0 0.0
        %4075 = vmatprep.subr.mxu0 0.0
        %4076 = vmatpush1.msra.mxu0 0.0
        %4077 = vmatprep.subr.mxu0 0.0
        %4078 = vmatpush1.msra.mxu0 0.0
        %4079 = vmatprep.subr.mxu0 0.0
        %4080 = vmatpush1.msra.mxu0 0.0
        %4081 = vmatprep.subr.mxu0 0.0
        %4082 = vmatpush1.msra.mxu0 0.0
        %4083 = vmatprep.subr.mxu0 0.0
        %4084 = vmatpush1.msra.mxu0 0.0
        %4085 = vmatprep.subr.mxu0 0.0
        %4086 = vmatpush1.msra.mxu0 0.0
        %4087 = vmatprep.subr.mxu0 0.0
        %4088 = vmatpush1.msra.mxu0 0.0
        %4089 = vmatprep.subr.mxu0 0.0
        %4090 = vmatpush1.msra.mxu0 0.0
        %4091 = vmatprep.subr.mxu0 0.0
        %4092 = vmatpush1.msra.mxu0 0.0
        %4093 = vmatprep.subr.mxu0 0.0
        %4094 = vmatpush1.msra.mxu0 0.0
        %4095 = vmatprep.mubr.f32.mxu0 0.0
        %4096 = vmatmul.mubr.f32.gmra.mrb[0].mxu0 %v4029
        %v4097 = vpop.f32.mrb[0].mxu0
        %v4098 = vadd.f32 0.0, %v4097
        %v4099 = vpop.f32.mrb[0].mxu0
        %4100 = vdwg.mxu0
        %4101 = vmatprep.subr.mxu0 0.0
        %4102 = vmatpush1.msra.mxu0 %v748
        %4103 = vmatprep.subr.mxu0 0.0
        %4104 = vmatpush1.msra.mxu0 %v749
        %4105 = vmatprep.subr.mxu0 0.0
        %4106 = vmatpush1.msra.mxu0 %v750
        %4107 = vmatprep.subr.mxu0 0.0
        %4108 = vmatpush1.msra.mxu0 %v751
        %4109 = vmatprep.subr.mxu0 0.0
        %4110 = vmatpush1.msra.mxu0 0.0
        %4111 = vmatprep.subr.mxu0 0.0
        %4112 = vmatpush1.msra.mxu0 0.0
        %4113 = vmatprep.subr.mxu0 0.0
        %4114 = vmatpush1.msra.mxu0 0.0
        %4115 = vmatprep.subr.mxu0 0.0
        %4116 = vmatpush1.msra.mxu0 0.0
        %4117 = vmatprep.subr.mxu0 0.0
        %4118 = vmatpush1.msra.mxu0 0.0
        %4119 = vmatprep.subr.mxu0 0.0
        %4120 = vmatpush1.msra.mxu0 0.0
        %4121 = vmatprep.subr.mxu0 0.0
        %4122 = vmatpush1.msra.mxu0 0.0
        %4123 = vmatprep.subr.mxu0 0.0
        %4124 = vmatpush1.msra.mxu0 0.0
        %4125 = vmatprep.subr.mxu0 0.0
        %4126 = vmatpush1.msra.mxu0 0.0
        %4127 = vmatprep.subr.mxu0 0.0
        %4128 = vmatpush1.msra.mxu0 0.0
        %4129 = vmatprep.subr.mxu0 0.0
        %4130 = vmatpush1.msra.mxu0 0.0
        %4131 = vmatprep.subr.mxu0 0.0
        %4132 = vmatpush1.msra.mxu0 0.0
        %4133 = vmatprep.subr.mxu0 0.0
        %4134 = vmatpush1.msra.mxu0 0.0
        %4135 = vmatprep.subr.mxu0 0.0
        %4136 = vmatpush1.msra.mxu0 0.0
        %4137 = vmatprep.subr.mxu0 0.0
        %4138 = vmatpush1.msra.mxu0 0.0
        %4139 = vmatprep.subr.mxu0 0.0
        %4140 = vmatpush1.msra.mxu0 0.0
        %4141 = vmatprep.subr.mxu0 0.0
        %4142 = vmatpush1.msra.mxu0 0.0
        %4143 = vmatprep.subr.mxu0 0.0
        %4144 = vmatpush1.msra.mxu0 0.0
        %4145 = vmatprep.subr.mxu0 0.0
        %4146 = vmatpush1.msra.mxu0 0.0
        %4147 = vmatprep.subr.mxu0 0.0
        %4148 = vmatpush1.msra.mxu0 0.0
        %4149 = vmatprep.subr.mxu0 0.0
        %4150 = vmatpush1.msra.mxu0 0.0
        %4151 = vmatprep.subr.mxu0 0.0
        %4152 = vmatpush1.msra.mxu0 0.0
        %4153 = vmatprep.subr.mxu0 0.0
        %4154 = vmatpush1.msra.mxu0 0.0
        %4155 = vmatprep.subr.mxu0 0.0
        %4156 = vmatpush1.msra.mxu0 0.0
        %4157 = vmatprep.subr.mxu0 0.0
        %4158 = vmatpush1.msra.mxu0 0.0
        %4159 = vmatprep.subr.mxu0 0.0
        %4160 = vmatpush1.msra.mxu0 0.0
        %4161 = vmatprep.subr.mxu0 0.0
        %4162 = vmatpush1.msra.mxu0 0.0
        %4163 = vmatprep.subr.mxu0 0.0
        %4164 = vmatpush1.msra.mxu0 0.0
        %4165 = vmatprep.mubr.f32.mxu0 0.0
        %4166 = vmatmul.mubr.f32.gmra.mrb[0].mxu0 %v4029
        %v4167 = vpop.f32.mrb[0].mxu0
        %v4168 = vadd.f32 0.0, %v4167
        %v4169 = vpop.f32.mrb[0].mxu0
        %4170 = vdwg.mxu0
        %v4172 = vrot.slane %v4098, 1
        %v4173 = vrot.slane %v4098, 2
        %v4174 = vrot.slane %v4098, 3
        %v4175 = vrot.slane %v4098, 4
        %v4176 = vrot.slane %v4098, 5
        %v4177 = vrot.slane %v4098, 6
        %v4178 = vrot.slane %v4098, 7
        %v4187 = vadd.f32 %v473, %v4172
        %v4188 = vadd.f32 %v478, %v4173
        %v4189 = vadd.f32 %v483, %v4174
        %v4190 = vadd.f32 %v488, %v4175
        %v4191 = vadd.f32 %v493, %v4176
        %v4192 = vadd.f32 %v498, %v4177
        %v4193 = vadd.f32 %v503, %v4178
        %v4194 = vadd.f32 %v508, %v4098
        %v4195 = vxor.u32 %v4187, 2147483648
        %v4196 = vxor.u32 %v4188, 2147483648
        %v4197 = vxor.u32 %v4189, 2147483648
        %v4198 = vxor.u32 %v4190, 2147483648
        %v4199 = vxor.u32 %v4191, 2147483648
        %v4200 = vxor.u32 %v4192, 2147483648
        %v4201 = vxor.u32 %v4193, 2147483648
        %v4202 = vxor.u32 %v4194, 2147483648
        %v4203 = vmul.f32 %v4195, 1.442695
        %v4204 = vpow.pop %v4203
        %v4205 = vmul.f32 %v4196, 1.442695
        %v4206 = vpow.pop %v4205
        %v4207 = vmul.f32 %v4197, 1.442695
        %v4208 = vpow.pop %v4207
        %v4209 = vmul.f32 %v4198, 1.442695
        %v4210 = vpow.pop %v4209
        %v4211 = vmul.f32 %v4199, 1.442695
        %v4212 = vpow.pop %v4211
        %v4213 = vmul.f32 %v4200, 1.442695
        %v4214 = vpow.pop %v4213
        %v4215 = vmul.f32 %v4201, 1.442695
        %v4216 = vpow.pop %v4215
        %v4217 = vmul.f32 %v4202, 1.442695
        %v4218 = vpow.pop %v4217
        %v4219 = vadd.f32 %v4204, 1.0
        %v4220 = vadd.f32 %v4206, 1.0
        %v4221 = vadd.f32 %v4208, 1.0
        %v4222 = vadd.f32 %v4210, 1.0
        %v4223 = vadd.f32 %v4212, 1.0
        %v4224 = vadd.f32 %v4214, 1.0
        %v4225 = vadd.f32 %v4216, 1.0
        %v4226 = vadd.f32 %v4218, 1.0
        %v4227 = vrcp.pop %v4219
        %v4228 = vmul.f32 1.0, %v4227
        %v4229 = vrcp.pop %v4220
        %v4230 = vmul.f32 1.0, %v4229
        %v4231 = vrcp.pop %v4221
        %v4232 = vmul.f32 1.0, %v4231
        %v4233 = vrcp.pop %v4222
        %v4234 = vmul.f32 1.0, %v4233
        %v4235 = vrcp.pop %v4223
        %v4236 = vmul.f32 1.0, %v4235
        %v4237 = vrcp.pop %v4224
        %v4238 = vmul.f32 1.0, %v4237
        %v4239 = vrcp.pop %v4225
        %v4240 = vmul.f32 1.0, %v4239
        %v4241 = vrcp.pop %v4226
        %v4242 = vmul.f32 1.0, %v4241
        %v4244 = vrot.slane %v4168, 1
        %v4245 = vrot.slane %v4168, 2
        %v4246 = vrot.slane %v4168, 3
        %v4247 = vrot.slane %v4168, 4
        %v4248 = vrot.slane %v4168, 5
        %v4249 = vrot.slane %v4168, 6
        %v4250 = vrot.slane %v4168, 7
        %v4259 = vadd.f32 %v589, %v4244
        %v4260 = vadd.f32 %v594, %v4245
        %v4261 = vadd.f32 %v599, %v4246
        %v4262 = vadd.f32 %v604, %v4247
        %v4263 = vadd.f32 %v609, %v4248
        %v4264 = vadd.f32 %v614, %v4249
        %v4265 = vadd.f32 %v619, %v4250
        %v4266 = vadd.f32 %v624, %v4168
        %v4267 = vxor.u32 %v4259, 2147483648
        %v4268 = vxor.u32 %v4260, 2147483648
        %v4269 = vxor.u32 %v4261, 2147483648
        %v4270 = vxor.u32 %v4262, 2147483648
        %v4271 = vxor.u32 %v4263, 2147483648
        %v4272 = vxor.u32 %v4264, 2147483648
        %v4273 = vxor.u32 %v4265, 2147483648
        %v4274 = vxor.u32 %v4266, 2147483648
        %v4275 = vmul.f32 %v4267, 1.442695
        %v4276 = vpow.pop %v4275
        %v4277 = vmul.f32 %v4268, 1.442695
        %v4278 = vpow.pop %v4277
        %v4279 = vmul.f32 %v4269, 1.442695
        %v4280 = vpow.pop %v4279
        %v4281 = vmul.f32 %v4270, 1.442695
        %v4282 = vpow.pop %v4281
        %v4283 = vmul.f32 %v4271, 1.442695
        %v4284 = vpow.pop %v4283
        %v4285 = vmul.f32 %v4272, 1.442695
        %v4286 = vpow.pop %v4285
        %v4287 = vmul.f32 %v4273, 1.442695
        %v4288 = vpow.pop %v4287
        %v4289 = vmul.f32 %v4274, 1.442695
        %v4290 = vpow.pop %v4289
        %v4291 = vadd.f32 %v4276, 1.0
        %v4292 = vadd.f32 %v4278, 1.0
        %v4293 = vadd.f32 %v4280, 1.0
        %v4294 = vadd.f32 %v4282, 1.0
        %v4295 = vadd.f32 %v4284, 1.0
        %v4296 = vadd.f32 %v4286, 1.0
        %v4297 = vadd.f32 %v4288, 1.0
        %v4298 = vadd.f32 %v4290, 1.0
        %v4299 = vrcp.pop %v4291
        %v4300 = vmul.f32 1.0, %v4299
        %v4301 = vrcp.pop %v4292
        %v4302 = vmul.f32 1.0, %v4301
        %v4303 = vrcp.pop %v4293
        %v4304 = vmul.f32 1.0, %v4303
        %v4305 = vrcp.pop %v4294
        %v4306 = vmul.f32 1.0, %v4305
        %v4307 = vrcp.pop %v4295
        %v4308 = vmul.f32 1.0, %v4307
        %v4309 = vrcp.pop %v4296
        %v4310 = vmul.f32 1.0, %v4309
        %v4311 = vrcp.pop %v4297
        %v4312 = vmul.f32 1.0, %v4311
        %v4313 = vrcp.pop %v4298
        %v4314 = vmul.f32 1.0, %v4313
        %4315 = vmatprep.subr.mxu0 0.0
        %4316 = vmatpush1.msra.mxu0 %v753
        %4317 = vmatprep.subr.mxu0 0.0
        %4318 = vmatpush1.msra.mxu0 %v754
        %4319 = vmatprep.subr.mxu0 0.0
        %4320 = vmatpush1.msra.mxu0 %v755
        %4321 = vmatprep.subr.mxu0 0.0
        %4322 = vmatpush1.msra.mxu0 %v756
        %4323 = vmatprep.subr.mxu0 0.0
        %4324 = vmatpush1.msra.mxu0 0.0
        %4325 = vmatprep.subr.mxu0 0.0
        %4326 = vmatpush1.msra.mxu0 0.0
        %4327 = vmatprep.subr.mxu0 0.0
        %4328 = vmatpush1.msra.mxu0 0.0
        %4329 = vmatprep.subr.mxu0 0.0
        %4330 = vmatpush1.msra.mxu0 0.0
        %4331 = vmatprep.subr.mxu0 0.0
        %4332 = vmatpush1.msra.mxu0 0.0
        %4333 = vmatprep.subr.mxu0 0.0
        %4334 = vmatpush1.msra.mxu0 0.0
        %4335 = vmatprep.subr.mxu0 0.0
        %4336 = vmatpush1.msra.mxu0 0.0
        %4337 = vmatprep.subr.mxu0 0.0
        %4338 = vmatpush1.msra.mxu0 0.0
        %4339 = vmatprep.subr.mxu0 0.0
        %4340 = vmatpush1.msra.mxu0 0.0
        %4341 = vmatprep.subr.mxu0 0.0
        %4342 = vmatpush1.msra.mxu0 0.0
        %4343 = vmatprep.subr.mxu0 0.0
        %4344 = vmatpush1.msra.mxu0 0.0
        %4345 = vmatprep.subr.mxu0 0.0
        %4346 = vmatpush1.msra.mxu0 0.0
        %4347 = vmatprep.subr.mxu0 0.0
        %4348 = vmatpush1.msra.mxu0 0.0
        %4349 = vmatprep.subr.mxu0 0.0
        %4350 = vmatpush1.msra.mxu0 0.0
        %4351 = vmatprep.subr.mxu0 0.0
        %4352 = vmatpush1.msra.mxu0 0.0
        %4353 = vmatprep.subr.mxu0 0.0
        %4354 = vmatpush1.msra.mxu0 0.0
        %4355 = vmatprep.subr.mxu0 0.0
        %4356 = vmatpush1.msra.mxu0 0.0
        %4357 = vmatprep.subr.mxu0 0.0
        %4358 = vmatpush1.msra.mxu0 0.0
        %4359 = vmatprep.subr.mxu0 0.0
        %4360 = vmatpush1.msra.mxu0 0.0
        %4361 = vmatprep.subr.mxu0 0.0
        %4362 = vmatpush1.msra.mxu0 0.0
        %4363 = vmatprep.subr.mxu0 0.0
        %4364 = vmatpush1.msra.mxu0 0.0
        %4365 = vmatprep.subr.mxu0 0.0
        %4366 = vmatpush1.msra.mxu0 0.0
        %4367 = vmatprep.subr.mxu0 0.0
        %4368 = vmatpush1.msra.mxu0 0.0
        %4369 = vmatprep.subr.mxu0 0.0
        %4370 = vmatpush1.msra.mxu0 0.0
        %4371 = vmatprep.subr.mxu0 0.0
        %4372 = vmatpush1.msra.mxu0 0.0
        %4373 = vmatprep.subr.mxu0 0.0
        %4374 = vmatpush1.msra.mxu0 0.0
        %4375 = vmatprep.subr.mxu0 0.0
        %4376 = vmatpush1.msra.mxu0 0.0
        %4377 = vmatprep.subr.mxu0 0.0
        %4378 = vmatpush1.msra.mxu0 0.0
        %4379 = vmatprep.mubr.f32.mxu0 0.0
        %4380 = vmatmul.mubr.f32.gmra.mrb[0].mxu0 %v4029
        %v4381 = vpop.f32.mrb[0].mxu0
        %v4382 = vadd.f32 %v762, %v4381
        %v4383 = vpop.f32.mrb[0].mxu0
        %4384 = vdwg.mxu0
        %v4386 = vrot.slane %v4382, 1
        %v4387 = vrot.slane %v4382, 2
        %v4388 = vrot.slane %v4382, 3
        %v4389 = vrot.slane %v4382, 4
        %v4390 = vrot.slane %v4382, 5
        %v4391 = vrot.slane %v4382, 6
        %v4392 = vrot.slane %v4382, 7
        %v4401 = vmul.f32 %v4228, %v4386
        %v4402 = vmul.f32 %v4230, %v4387
        %v4403 = vmul.f32 %v4232, %v4388
        %v4404 = vmul.f32 %v4234, %v4389
        %v4405 = vmul.f32 %v4236, %v4390
        %v4406 = vmul.f32 %v4238, %v4391
        %v4407 = vmul.f32 %v4240, %v4392
        %v4408 = vmul.f32 %v4242, %v4382
        %v4409 = vadd.f32 %v705, %v4401
        %v4410 = vadd.f32 %v710, %v4402
        %v4411 = vadd.f32 %v715, %v4403
        %v4412 = vadd.f32 %v720, %v4404
        %v4413 = vadd.f32 %v725, %v4405
        %v4414 = vadd.f32 %v730, %v4406
        %v4415 = vadd.f32 %v735, %v4407
        %v4416 = vadd.f32 %v740, %v4408
        %v4417 = vtanh.pop %v4409
        %v4418 = vtanh.pop %v4410
        %v4419 = vtanh.pop %v4411
        %v4420 = vtanh.pop %v4412
        %v4421 = vtanh.pop %v4413
        %v4422 = vtanh.pop %v4414
        %v4423 = vtanh.pop %v4415
        %v4424 = vtanh.pop %v4416
        %v4425 = vsub.f32 1.0, %v4300
        %v4426 = vsub.f32 1.0, %v4302
        %v4427 = vsub.f32 1.0, %v4304
        %v4428 = vsub.f32 1.0, %v4306
        %v4429 = vsub.f32 1.0, %v4308
        %v4430 = vsub.f32 1.0, %v4310
        %v4431 = vsub.f32 1.0, %v4312
        %v4432 = vsub.f32 1.0, %v4314
        %v4433 = vmul.f32 %v4425, %v4417
        %v4434 = vmul.f32 %v4426, %v4418
        %v4435 = vmul.f32 %v4427, %v4419
        %v4436 = vmul.f32 %v4428, %v4420
        %v4437 = vmul.f32 %v4429, %v4421
        %v4438 = vmul.f32 %v4430, %v4422
        %v4439 = vmul.f32 %v4431, %v4423
        %v4440 = vmul.f32 %v4432, %v4424
        %v4441 = vrot.slane %v3999, 7
        %v4442 = vrot.slane %v4000, 7
        %v4443 = vrot.slane %v4001, 7
        %v4444 = vrot.slane %v4002, 7
        %v4445 = vrot.slane %v4003, 7
        %v4446 = vrot.slane %v4004, 7
        %v4447 = vrot.slane %v4005, 7
        %v4456 = vmul.f32 %v4300, %v4441
        %v4457 = vmul.f32 %v4302, %v4442
        %v4458 = vmul.f32 %v4304, %v4443
        %v4459 = vmul.f32 %v4306, %v4444
        %v4460 = vmul.f32 %v4308, %v4445
        %v4461 = vmul.f32 %v4310, %v4446
        %v4462 = vmul.f32 %v4312, %v4447
        %v4463 = vmul.f32 %v4314, %v4027
        %v4464 = vadd.f32 %v4433, %v4456
        %v4465 = vadd.f32 %v4434, %v4457
        %v4466 = vadd.f32 %v4435, %v4458
        %v4467 = vadd.f32 %v4436, %v4459
        %v4468 = vadd.f32 %v4437, %v4460
        %v4469 = vadd.f32 %v4438, %v4461
        %v4470 = vadd.f32 %v4439, %v4462
        %v4471 = vadd.f32 %v4440, %v4463
        %v4480 = vrot.slane %v4465, 7
        %v4481 = vrot.slane %v4466, 6
        %v4482 = vsel %vm1219, %v4481, %v4480
        %v4483 = vrot.slane %v4467, 5
        %v4484 = vsel %vm1222, %v4483, %v4482
        %v4485 = vrot.slane %v4468, 4
        %v4486 = vsel %vm1225, %v4485, %v4484
        %v4487 = vrot.slane %v4469, 3
        %v4488 = vsel %vm1228, %v4487, %v4486
        %v4489 = vrot.slane %v4470, 2
        %v4490 = vsel %vm1231, %v4489, %v4488
        %v4491 = vrot.slane %v4471, 1
        %v4492 = vsel %vm1234, %v4491, %v4490
        %vm4495 = vcmask 261127
        %4496 = vst.msk [vmem:[#allocation2 - $0x7] sm:$0x80] %vm4495, %v4464
        %vm4497 = vcmask 260096
        %4498 = vst.msk [vmem:[#allocation2 + $0x1] sm:$0x7f] %vm4497, %v4492
        %p4499 = scmp.eq.s32.totalorder %s31, 1
        // Predicated region
        $region69: #{tpu_custom_call.1} parent=47 // pred_check
          %p4500 = pneg %p4499
        $region70: #{tpu_custom_call.1} parent=47 // pred_check_branch
          %4502 = sbr.rel (%p4500) target = $region72
        $region71: #{tpu_custom_call.1} parent=47 // pred_region
          %v4503 = vld [vmem:[#allocation9] sm:$0xff]
          %v4504 = vld [vmem:[#allocation9 + $0x8] sm:$0xff]
          %v4505 = vld [vmem:[#allocation9 + $0x10] sm:$0xff]
          %v4506 = vld [vmem:[#allocation9 + $0x18] sm:$0xff]
          %v4507 = vld [vmem:[%s6] sm:$0x1]
          %v4509 = vlaneseq
          %v4510 = vshrl.u32 %v4509, 7
          %v4511 = vsub.s32 0, %v4510
          %v4512 = vrot.slane %v4507, %v4511
          %v4514 = vrot.slane %v4464, 7
          %v4515 = vrot.slane %v4465, 6
          %v4516 = vsel %vm1219, %v4515, %v4514
          %v4517 = vrot.slane %v4466, 5
          %v4518 = vsel %vm1222, %v4517, %v4516
          %v4519 = vrot.slane %v4467, 4
          %v4520 = vsel %vm1225, %v4519, %v4518
          %v4521 = vrot.slane %v4468, 3
          %v4522 = vsel %vm1228, %v4521, %v4520
          %v4523 = vrot.slane %v4469, 2
          %v4524 = vsel %vm1231, %v4523, %v4522
          %v4525 = vrot.slane %v4470, 1
          %v4526 = vsel %vm1234, %v4525, %v4524
          %v4527 = vsel %vm1237, %v4471, %v4526
          %v4528 = vsel %vm765, %v4527, 0
          %4530 = vmatprep.subr.mxu0 0.0
          %4531 = vmatpush1.msra.mxu0 %v4503
          %4532 = vmatprep.subr.mxu0 0.0
          %4533 = vmatpush1.msra.mxu0 %v4504
          %4534 = vmatprep.subr.mxu0 0.0
          %4535 = vmatpush1.msra.mxu0 %v4505
          %4536 = vmatprep.subr.mxu0 0.0
          %4537 = vmatpush1.msra.mxu0 %v4506
          %4538 = vmatprep.subr.mxu0 0.0
          %4539 = vmatpush1.msra.mxu0 0.0
          %4540 = vmatprep.subr.mxu0 0.0
          %4541 = vmatpush1.msra.mxu0 0.0
          %4542 = vmatprep.subr.mxu0 0.0
          %4543 = vmatpush1.msra.mxu0 0.0
          %4544 = vmatprep.subr.mxu0 0.0
          %4545 = vmatpush1.msra.mxu0 0.0
          %4546 = vmatprep.subr.mxu0 0.0
          %4547 = vmatpush1.msra.mxu0 0.0
          %4548 = vmatprep.subr.mxu0 0.0
          %4549 = vmatpush1.msra.mxu0 0.0
          %4550 = vmatprep.subr.mxu0 0.0
          %4551 = vmatpush1.msra.mxu0 0.0
          %4552 = vmatprep.subr.mxu0 0.0
          %4553 = vmatpush1.msra.mxu0 0.0
          %4554 = vmatprep.subr.mxu0 0.0
          %4555 = vmatpush1.msra.mxu0 0.0
          %4556 = vmatprep.subr.mxu0 0.0
          %4557 = vmatpush1.msra.mxu0 0.0
          %4558 = vmatprep.subr.mxu0 0.0
          %4559 = vmatpush1.msra.mxu0 0.0
          %4560 = vmatprep.subr.mxu0 0.0
          %4561 = vmatpush1.msra.mxu0 0.0
          %4562 = vmatprep.subr.mxu0 0.0
          %4563 = vmatpush1.msra.mxu0 0.0
          %4564 = vmatprep.subr.mxu0 0.0
          %4565 = vmatpush1.msra.mxu0 0.0
          %4566 = vmatprep.subr.mxu0 0.0
          %4567 = vmatpush1.msra.mxu0 0.0
          %4568 = vmatprep.subr.mxu0 0.0
          %4569 = vmatpush1.msra.mxu0 0.0
          %4570 = vmatprep.subr.mxu0 0.0
          %4571 = vmatpush1.msra.mxu0 0.0
          %4572 = vmatprep.subr.mxu0 0.0
          %4573 = vmatpush1.msra.mxu0 0.0
          %4574 = vmatprep.subr.mxu0 0.0
          %4575 = vmatpush1.msra.mxu0 0.0
          %4576 = vmatprep.subr.mxu0 0.0
          %4577 = vmatpush1.msra.mxu0 0.0
          %4578 = vmatprep.subr.mxu0 0.0
          %4579 = vmatpush1.msra.mxu0 0.0
          %4580 = vmatprep.subr.mxu0 0.0
          %4581 = vmatpush1.msra.mxu0 0.0
          %4582 = vmatprep.subr.mxu0 0.0
          %4583 = vmatpush1.msra.mxu0 0.0
          %4584 = vmatprep.subr.mxu0 0.0
          %4585 = vmatpush1.msra.mxu0 0.0
          %4586 = vmatprep.subr.mxu0 0.0
          %4587 = vmatpush1.msra.mxu0 0.0
          %4588 = vmatprep.subr.mxu0 0.0
          %4589 = vmatpush1.msra.mxu0 0.0
          %4590 = vmatprep.subr.mxu0 0.0
          %4591 = vmatpush1.msra.mxu0 0.0
          %4592 = vmatprep.subr.mxu0 0.0
          %4593 = vmatpush1.msra.mxu0 0.0
          %4594 = vmatprep.mubr.f32.mxu0 0.0
          %4595 = vmatmul.mubr.f32.gmra.mrb[0].mxu0 %v4528
          %v4596 = vpop.f32.mrb[0].mxu0
          %v4597 = vadd.f32 %v4512, %v4596
          %v4598 = vpop.f32.mrb[0].mxu0
          %4599 = vdwg.mxu0
          %4600 = vmax.xlane.f32.xlu0 %v4597
          %v4601 = vpop.xlane.xlu0 %4600
          %v4602 = vsub.f32 %v4597, %v4601
          %v4603 = vmul.f32 %v4602, 1.442695
          %v4604 = vpow.pop %v4603
          %4605 = vadd.xlane.f32.xlu0 %v4604
          %v4606 = vpop.xlane.xlu0 %4605
          %v4607 = vlog2.pop %v4606
          %v4608 = vmul.f32 %v4607, 0.6931472
          %v4609 = vadd.f32 %v4608, %v4601
          %v4610 = vsub.f32 %v4597, %v4609
          %4611 = vst [vmem:[%s356] sm:$0xff] %v4610
        $region72: #{tpu_custom_call.1} parent=47 // pred_fallthru
          _
        %s4612 = sand.u32 %s200, 1
        %s4613 = scalar_lea.sflag [#allocation5], %s4612
        %s4614 = sand.u32 %s200, 1
        %s4615 = smul.addr %s4614, 8
        %s4616 = scalar_lea.vmem [#allocation11], %s4615
        // Predicated region
        $region73: #{tpu_custom_call.1} parent=47 // pred_check
          %p4617 = pneg %p210
        $region74: #{tpu_custom_call.1} parent=47 // pred_check_branch
          %4619 = sbr.rel (%p4617) target = $region76
        $region75: #{tpu_custom_call.1} parent=47 // pred_region
          %s4621 = ssub.s32 128, 128
          %4622 = vsyncadd %s4613, %s4621
          %s4623 = smul.addr %s30, 128
          %s4624 = scalar_lea.hbm %s7, %s4623
          %s4626 = sshll.u32 %s4616, 4
          %s4627 = int_to_ptr.vmem [resolvable:$true] %s4626
          %4629 = dma.vmem_to_hbm [thread:$0]  %s4627, 128, %s4624, %s4613
        $region76: #{tpu_custom_call.1} parent=47 // pred_fallthru
          _
      $region48: #{tpu_custom_call.1} parent=5 // pred_fallthru
        _
      %p4630 = scmp.le.s32.totalorder 2, %s21
      // Predicated region
      $region77: #{tpu_custom_call.1} parent=5 // pred_check
        %p4631 = pneg %p4630
      $region78: #{tpu_custom_call.1} parent=5 // pred_check_branch
        %4633 = sbr.rel (%p4631) target = $region80
      $region79: #{tpu_custom_call.1} parent=5 // pred_region
        %s4634 = ssub.s32 %s21, 2
        // Predicated region
        $region81: #{tpu_custom_call.1} parent=79 // pred_check
          %p4635 = pneg %p216
        $region82: #{tpu_custom_call.1} parent=79 // pred_check_branch
          %4637 = sbr.rel (%p4635) target = $region84
        $region83: #{tpu_custom_call.1} parent=79 // pred_region
          %s4638 = sand.u32 %s201, 1
          %s4639 = scalar_lea.sflag [#allocation5], %s4638
          %s4640 = sand.u32 %s201, 1
          %s4641 = smul.addr %s4640, 8
          %s4642 = scalar_lea.vmem [#allocation11], %s4641
          %4643 = dma.done %s4639, 128
        $region84: #{tpu_custom_call.1} parent=79 // pred_fallthru
          _
      $region80: #{tpu_custom_call.1} parent=5 // pred_fallthru
        _
    $region6: #{tpu_custom_call.1} parent=1 // loop_footer
      %s25 = sadd.s32 1, %s21
    $region7: #{tpu_custom_call.1} parent=1 // loop_footer_branch
      %20 = sbr.rel target = $region3
    $region8: #{tpu_custom_call.1} parent=1 // loop_exit
      _
    %4644 = vsyncpa [#allocation4], 1
    %s4645 = scalar_lea.sflag [#allocation4], 1
    %4646 = vsyncpa %s4645, 1
    %4647 = vsyncpa [#allocation7], 1
    %4648 = vsyncpa [#allocation10], 1
    %4649 = vsyncpa [#allocation5], 1
    %s4650 = scalar_lea.sflag [#allocation5], 1
    %4651 = vsyncpa %s4650, 1

</llo_original>
